<compile_context>
chip_gen: v6e
topology: v6e:2x2x1
jax: 0.10.0
libtpu: 0.0.40
codegen_flags: <defaults>
</compile_context>

<pallas_src>
import functools

import jax
import jax.numpy as jnp
import numpy as np
from jax.experimental import pallas as pl
from jax.experimental.pallas import tpu as pltpu


def _round_up(x, m):
    return (x + m - 1) // m * m


def _ceil_div(a, b):
    return -(-a // b)


def _tpu_generation():
    """Coarse chip detection for tile/VMEM defaults. Safe fallback otherwise."""
    try:
        kind = jax.devices()[0].device_kind.lower()
    except Exception:
        kind = ""
    if "v7" in kind or "7x" in kind:
        return "v7x"            # 64 MiB physical VMEM, 2 TensorCores
    if any(t in kind for t in ("v4", "v5", "v6")):
        return "128mib"         # 128 MiB physical VMEM, 1 TensorCore
    return "unknown"


def _grid_push_kernel(lo_ref, hi_ref, inp_ref, grid_ref, out_ref, col_ids_ref,
                      *, Hout, Wout, tile_out):
    # lo_ref/hi_ref : (B, num_p) int32 SMEM  conservative touched-column range
    # inp_ref       : (1, C, TILE_P)         flattened input tile
    # grid_ref      : (1, TILE_P, 2)         voxel coords (col 0 -> H, col 1 -> W)
    # out_ref       : (1, C, TILE_OUT) f32   output tile, resident across P axis
    # col_ids_ref   : (TILE_P, TILE_OUT) i32 cached in-tile column ids
    b_idx = pl.program_id(0)
    o_idx = pl.program_id(1)
    p_idx = pl.program_id(2)
    col_start = o_idx * tile_out                     # global column offset

    @pl.when(p_idx == 0)
    def _():
        # The output block is the accumulator (f32): zero it once per (b, o).
        out_ref[...] = jnp.zeros(out_ref.shape, out_ref.dtype)
        # Cache the in-tile column ids: regenerating the iota every step burns
        # a full-tile op on the saturated VALU slot; re-reading it uses the
        # vld slots, which have slack.
        col_ids_ref[...] = jax.lax.broadcasted_iota(
            jnp.int32, col_ids_ref.shape, 1)

    # Tile-overlap skip: if no in-FOV sample of this P tile can reach the
    # current OUT tile, skip the dense weight build + matmuls entirely.
    tile_lo = lo_ref[b_idx, p_idx]
    tile_hi = hi_ref[b_idx, p_idx]

    @pl.when((tile_lo < col_start + tile_out) & (tile_hi >= col_start))
    def _():
        g = grid_ref[0]                              # (TILE_P, 2)
        g0 = g[:, 0:1]                               # coordinate along H
        g1 = g[:, 1:2]                               # coordinate along W

        f0 = jnp.floor(g0)
        f1 = jnp.floor(g1)
        t0 = g0 - f0
        t1 = g1 - f1
        # Clamp in float *before* casting so wild / padded coordinates never
        # hit implementation-defined float->int behaviour or int32 overflow.
        i0 = jnp.clip(f0, -1.0, jnp.float32(Hout - 1)).astype(jnp.int32)
        i1 = jnp.clip(f1, -1.0, jnp.float32(Wout - 1)).astype(jnp.int32)

        # extrapolate=False: drop samples outside the voxel-centre FOV
        # (torch-interpol tolerance 5e-2).
        tol = jnp.float32(5e-2)
        inb = ((g0 >= -tol) & (g0 <= jnp.float32(Hout - 1) + tol) &
               (g1 >= -tol) & (g1 <= jnp.float32(Wout - 1) + tol))  # (TILE_P,1)

        col_ids = col_ids_ref[...]                   # (TILE_P, TILE_OUT)
        x = inp_ref[0]                               # (C, TILE_P)

        total = None
        for dy in (0, 1):
            for dx in (0, 1):
                iy = i0 + dy
                ix = i1 + dx
                wy = t0 if dy else (1.0 - t0)
                wx = t1 if dx else (1.0 - t1)
                # bound='zero': corners landing outside the output get nothing
                valid = (iy >= 0) & (iy < Hout) & (ix >= 0) & (ix < Wout)
                w = jnp.where(valid & inb, wy * wx, 0.0)          # (TILE_P,1)
                flat = iy * Wout + ix - col_start                 # (TILE_P,1)
                # Per-corner full-tile work is just compare + select; each
                # weighted one-hot goes straight to its own MXU dot (MXU has
                # slack) instead of 3 full-size (TILE_P, TILE_OUT) adds.
                contrib = jnp.where(col_ids == flat, w, 0.0)
                d = jnp.dot(x, contrib, preferred_element_type=jnp.float32)
                total = d if total is None else total + d         # (C,TILE_OUT)

        out_ref[0] += total


def grid_push(inp, grid, shape=None, *, tile_p=None, tile_out=None,
              vmem_limit_bytes=None):
    """Pallas GridPush.forward. inp (B,C,H,W), grid (B,2,H,W) -> (B,C,*shape)."""
    B, C, H, W = inp.shape
    if shape is None:
        shape = (H, W)
    Hout, Wout = shape
    P = H * W
    OUT = Hout * Wout

    gen = _tpu_generation()
    if tile_p is None:
        tile_p = 512
    if tile_out is None:
        # 128 MiB-VMEM parts (v4/v5/v6) take bigger OUT tiles; v7x (64 MiB
        # physical VMEM) and unknown chips stay at the safe 512x2048 f32 tile.
        tile_out = 4096 if gen == "128mib" else 2048
    if vmem_limit_bytes is None:
        vmem_limit_bytes = (64 if gen == "128mib" else 32) * 1024 * 1024

    # Lane-aligned tiles.
    TILE_P = min(tile_p, _round_up(P, 128))
    TILE_OUT = min(tile_out, _round_up(OUT, 128))

    # v7x megacore: two TensorCores shard the "parallel" (b, o) axes; keep
    # B * num_o even so neither core idles on the tail.
    if gen == "v7x":
        n0 = _ceil_div(OUT, TILE_OUT)
        if n0 > 1 and (B * n0) % 2 == 1:
            t = TILE_OUT
            while t > 128:
                t -= 128
                if (B * _ceil_div(OUT, t)) % 2 == 0:
                    TILE_OUT = t
                    break

    P_pad = _round_up(P, TILE_P)
    OUT_pad = _round_up(OUT, TILE_OUT)
    num_p = P_pad // TILE_P
    num_o = OUT_pad // TILE_OUT

    inp_flat = inp.reshape(B, C, P).astype(jnp.float32)
    # movedim(1, -1) like the torch module, then flatten spatial dims.
    grid_t = jnp.moveaxis(grid, 1, -1).reshape(B, P, 2).astype(jnp.float32)
    if P_pad != P:
        inp_flat = jnp.pad(inp_flat, ((0, 0), (0, 0), (0, P_pad - P)))
        # Pad with an out-of-FOV coordinate so padded samples contribute 0.
        grid_t = jnp.pad(grid_t, ((0, 0), (0, P_pad - P), (0, 0)),
                         constant_values=-2.0)

    # ---- per-(batch, P-tile) conservative touched-column range (for the
    # tile-overlap skip); tiny O(B*P) XLA work, branched on in SMEM in-kernel.
    tol = 5e-2
    gg0 = grid_t[..., 0]
    gg1 = grid_t[..., 1]
    ii0 = jnp.clip(jnp.floor(gg0), -1.0, float(Hout - 1)).astype(jnp.int32)
    ii1 = jnp.clip(jnp.floor(gg1), -1.0, float(Wout - 1)).astype(jnp.int32)
    inb = ((gg0 >= -tol) & (gg0 <= Hout - 1 + tol) &
           (gg1 >= -tol) & (gg1 <= Wout - 1 + tol))
    base = ii0 * Wout + ii1
    big = jnp.int32(2 ** 30)
    lo = jnp.min(jnp.where(inb, base, big).reshape(B, num_p, TILE_P),
                 axis=-1).astype(jnp.int32)                       # (B, num_p)
    hi = jnp.max(jnp.where(inb, base + (Wout + 1), -big).reshape(B, num_p, TILE_P),
                 axis=-1).astype(jnp.int32)                       # (B, num_p)

    # NOTE: full C stays inside the kernel on purpose -- it amortizes the
    # dominant (TILE_P, TILE_OUT) weight build across all channels.  Do NOT
    # add a C grid axis unless the weight tile is also cached per (o, p).
    kernel = functools.partial(_grid_push_kernel, Hout=Hout, Wout=Wout,
                               tile_out=TILE_OUT)
    flops = int(B * (8 * C + 12) * P_pad * OUT_pad)
    bytes_accessed = int(4 * B * (num_o * (C + 2) * P_pad + C * OUT_pad))

    out_flat = pl.pallas_call(
        kernel,
        out_shape=jax.ShapeDtypeStruct((B, C, OUT_pad), jnp.float32),
        grid_spec=pltpu.PrefetchScalarGridSpec(
            num_scalar_prefetch=2,
            grid=(B, num_o, num_p),          # reduction (P) axis last
            in_specs=[
                pl.BlockSpec((1, C, TILE_P), lambda b, o, p, lo, hi: (b, 0, p)),
                pl.BlockSpec((1, TILE_P, 2), lambda b, o, p, lo, hi: (b, p, 0)),
            ],
            out_specs=pl.BlockSpec((1, C, TILE_OUT),
                                   lambda b, o, p, lo, hi: (b, 0, o)),
            scratch_shapes=[pltpu.VMEM((TILE_P, TILE_OUT), jnp.int32)],
        ),
        compiler_params=pltpu.CompilerParams(
            dimension_semantics=("parallel", "parallel", "arbitrary"),
            vmem_limit_bytes=vmem_limit_bytes),
        cost_estimate=pl.CostEstimate(flops=flops, transcendentals=0,
                                      bytes_accessed=bytes_accessed),
    )(lo, hi, inp_flat, grid_t)

    if OUT_pad != OUT:
        out_flat = out_flat[:, :, :OUT]
    return out_flat.reshape(B, C, Hout, Wout)


def grid_push_ref(inp, grid, shape=None):
    """Pure-JAX reference (scatter-add) with identical semantics."""
    B, C, H, W = inp.shape
    if shape is None:
        shape = (H, W)
    Hout, Wout = shape
    x = inp.reshape(B, C, -1).astype(jnp.float32)
    g = jnp.moveaxis(grid, 1, -1).reshape(B, -1, 2).astype(jnp.float32)
    tol = 5e-2

    def push_one(x_b, g_b):
        g0, g1 = g_b[:, 0], g_b[:, 1]
        f0, f1 = jnp.floor(g0), jnp.floor(g1)
        t0, t1 = g0 - f0, g1 - f1
        i0, i1 = f0.astype(jnp.int32), f1.astype(jnp.int32)
        inb = ((g0 >= -tol) & (g0 <= Hout - 1 + tol) &
               (g1 >= -tol) & (g1 <= Wout - 1 + tol)).astype(jnp.float32)
        out = jnp.zeros((C, Hout * Wout), jnp.float32)
        for dy in (0, 1):
            for dx in (0, 1):
                iy, ix = i0 + dy, i1 + dx
                wy = t0 if dy else 1.0 - t0
                wx = t1 if dx else 1.0 - t1
                valid = ((iy >= 0) & (iy < Hout) & (ix >= 0) & (ix < Wout))
                w = wy * wx * valid.astype(jnp.float32) * inb
                flat = iy * Wout + ix  # OOB updates carry weight 0
                out = out.at[:, flat].add(x_b * w[None, :])
        return out

    out = jax.vmap(push_one)(x, g)
    return out.reshape(B, C, Hout, Wout)


if __name__ == "__main__":
    key = jax.random.PRNGKey(0)

    def make_case(k, B, C, H, W, shape=None):
        Hout, Wout = (H, W) if shape is None else shape
        k1, k2 = jax.random.split(k)
        inp = jax.random.normal(k1, (B, C, H, W), jnp.float32)
        ii = jnp.broadcast_to(jnp.linspace(0.0, Hout - 1.0, H)[:, None], (H, W))
        jj = jnp.broadcast_to(jnp.linspace(0.0, Wout - 1.0, W)[None, :], (H, W))
        ident = jnp.stack([ii, jj], axis=0)                      # (2, H, W)
        disp = 1.5 * jax.random.normal(k2, (B, 2, H, W), jnp.float32)
        grid = ident[None] + disp                                # (B, 2, H, W)
        return inp, grid

    k1, k2 = jax.random.split(key)

    # Case 1: small single-tile path (matches module defaults).
    inp, grid = make_case(k1, 2, 4, 16, 16)
    out = jax.block_until_ready(grid_push(inp, grid))
    ref = grid_push_ref(inp, grid)
    assert out.shape == (2, 4, 16, 16)
    np.testing.assert_allclose(np.asarray(out), np.asarray(ref),
                               atol=1e-4, rtol=1e-4)

    # Case 2: force multiple OUT tiles and a multi-step P reduction
    # (exercises the p==0 init, the accumulator path and the overlap skip).
    out2 = jax.block_until_ready(grid_push(inp, grid, tile_p=128, tile_out=128))
    np.testing.assert_allclose(np.asarray(out2), np.asarray(ref),
                               atol=1e-4, rtol=1e-4)

    # Case 3: non-square input, different output shape, padded P / OUT.
    inp3, grid3 = make_case(k2, 2, 3, 13, 11, shape=(10, 14))
    out3 = jax.block_until_ready(grid_push(inp3, grid3, shape=(10, 14)))
    ref3 = grid_push_ref(inp3, grid3, shape=(10, 14))
    assert out3.shape == (2, 3, 10, 14)
    np.testing.assert_allclose(np.asarray(out3), np.asarray(ref3),
                               atol=1e-4, rtol=1e-4)

    print("KERNEL_OK")
</pallas_src>

<mosaic_0001>
module attributes {stable_mosaic.version = 11 : i64} {
  func.func @_grid_push_kernel(%arg0: i32, %arg1: i32, %arg2: i32, %arg3: memref<2x1xi32, #tpu.memory_space<smem>>, %arg4: memref<2x1xi32, #tpu.memory_space<smem>>, %arg5: memref<1x4x256xf32, #tpu.memory_space<vmem>>, %arg6: memref<1x256x2xf32, #tpu.memory_space<vmem>>, %arg7: memref<1x4x256xf32, #tpu.memory_space<vmem>>, %arg8: memref<256x256xi32, #tpu.memory_space<vmem>>) attributes {dimension_semantics = [#tpu.dimension_semantics<parallel>, #tpu.dimension_semantics<parallel>, #tpu.dimension_semantics<arbitrary>], iteration_bounds = array<i64: 2, 1, 1>, scalar_prefetch = 2 : i64, scratch_operands = 1 : i64, tpu.core_type = #tpu.core_type<tc>, window_params = [{transform_indices = @transform_0, window_bounds = array<i64: 1, 4, 256>}, {transform_indices = @transform_1, window_bounds = array<i64: 1, 256, 2>}, {transform_indices = @transform_2, window_bounds = array<i64: 1, 4, 256>}]} {
    %c256_i32 = arith.constant 256 : i32
    %0 = arith.muli %arg1, %c256_i32 : i32
    %c0_i32 = arith.constant 0 : i32
    %1 = arith.cmpi eq, %arg2, %c0_i32 : i32
    %2 = arith.extui %1 : i1 to i32
    %c0_i32_0 = arith.constant 0 : i32
    %3 = arith.cmpi ne, %2, %c0_i32_0 : i32
    scf.if %3 {
      %cst = arith.constant 0.000000e+00 : f32
      %16 = vector.broadcast %cst : f32 to vector<1x4x256xf32>
      %c0 = arith.constant 0 : index
      %c0_3 = arith.constant 0 : index
      %c0_4 = arith.constant 0 : index
      %17 = vector.load %arg7[%c0, %c0_3, %c0_4] : memref<1x4x256xf32, #tpu.memory_space<vmem>>, vector<1x4x256xf32>
      tpu.vector_store %arg7[%c0, %c0_3, %c0_4], %16 {strides = array<i32>} : memref<1x4x256xf32, #tpu.memory_space<vmem>>, vector<1x4x256xf32>,
      %18 = tpu.iota {dimensions = array<i32: 1>} : vector<256x256xi32>
      %c0_5 = arith.constant 0 : index
      %c0_6 = arith.constant 0 : index
      %19 = vector.load %arg8[%c0_5, %c0_6] : memref<256x256xi32, #tpu.memory_space<vmem>>, vector<256x256xi32>
      tpu.vector_store %arg8[%c0_5, %c0_6], %18 {strides = array<i32>} : memref<256x256xi32, #tpu.memory_space<vmem>>, vector<256x256xi32>,
    } else {
    }
    %4 = arith.index_cast %arg0 : i32 to index
    %5 = arith.index_cast %arg2 : i32 to index
    %6 = memref.load %arg3[%4, %5] : memref<2x1xi32, #tpu.memory_space<smem>>
    %7 = arith.index_cast %arg0 : i32 to index
    %8 = arith.index_cast %arg2 : i32 to index
    %9 = memref.load %arg4[%7, %8] : memref<2x1xi32, #tpu.memory_space<smem>>
    %c256_i32_1 = arith.constant 256 : i32
    %10 = arith.addi %0, %c256_i32_1 : i32
    %11 = arith.cmpi slt, %6, %10 : i32
    %12 = arith.cmpi sge, %9, %0 : i32
    %13 = arith.andi %11, %12 : i1
    %14 = arith.extui %13 : i1 to i32
    %c0_i32_2 = arith.constant 0 : i32
    %15 = arith.cmpi ne, %14, %c0_i32_2 : i32
    scf.if %15 {
      %c0 = arith.constant 0 : index
      %c0_3 = arith.constant 0 : index
      %c0_4 = arith.constant 0 : index
      %16 = vector.load %arg6[%c0, %c0_3, %c0_4] : memref<1x256x2xf32, #tpu.memory_space<vmem>>, vector<1x256x2xf32>
      %17 = vector.shape_cast %16 : vector<1x256x2xf32> to vector<256x2xf32>
      %18 = vector.extract_strided_slice %17 {offsets = [0, 0], sizes = [256, 1], strides = [1, 1]} : vector<256x2xf32> to vector<256x1xf32>
      %19 = vector.extract_strided_slice %17 {offsets = [0, 1], sizes = [256, 1], strides = [1, 1]} : vector<256x2xf32> to vector<256x1xf32>
      %20 = math.floor %18 : vector<256x1xf32>
      %21 = math.floor %19 : vector<256x1xf32>
      %22 = arith.subf %18, %20 : vector<256x1xf32>
      %23 = arith.subf %19, %21 : vector<256x1xf32>
      %cst = arith.constant -1.000000e+00 : f32
      %cst_5 = arith.constant 1.500000e+01 : f32
      %24 = vector.broadcast %cst : f32 to vector<256x1xf32>
      %25 = arith.maximumf %24, %20 : vector<256x1xf32>
      %26 = vector.broadcast %cst_5 : f32 to vector<256x1xf32>
      %27 = arith.minimumf %26, %25 : vector<256x1xf32>
      %28 = arith.fptosi %27 : vector<256x1xf32> to vector<256x1xi32>
      %cst_6 = arith.constant -1.000000e+00 : f32
      %cst_7 = arith.constant 1.500000e+01 : f32
      %29 = vector.broadcast %cst_6 : f32 to vector<256x1xf32>
      %30 = arith.maximumf %29, %21 : vector<256x1xf32>
      %31 = vector.broadcast %cst_7 : f32 to vector<256x1xf32>
      %32 = arith.minimumf %31, %30 : vector<256x1xf32>
      %33 = arith.fptosi %32 : vector<256x1xf32> to vector<256x1xi32>
      %cst_8 = arith.constant 0.000000e+00 : f32
      %cst_9 = arith.constant 5.000000e-02 : f32
      %34 = arith.subf %cst_8, %cst_9 : f32
      %35 = vector.broadcast %34 : f32 to vector<256x1xf32>
      %36 = arith.cmpf oge, %18, %35 : vector<256x1xf32>
      %cst_10 = arith.constant 1.500000e+01 : f32
      %cst_11 = arith.constant 5.000000e-02 : f32
      %37 = arith.addf %cst_10, %cst_11 : f32
      %38 = vector.broadcast %37 : f32 to vector<256x1xf32>
      %39 = arith.cmpf ole, %18, %38 : vector<256x1xf32>
      %40 = arith.andi %36, %39 : vector<256x1xi1>
      %cst_12 = arith.constant 0.000000e+00 : f32
      %cst_13 = arith.constant 5.000000e-02 : f32
      %41 = arith.subf %cst_12, %cst_13 : f32
      %42 = vector.broadcast %41 : f32 to vector<256x1xf32>
      %43 = arith.cmpf oge, %19, %42 : vector<256x1xf32>
      %44 = arith.andi %40, %43 : vector<256x1xi1>
      %cst_14 = arith.constant 1.500000e+01 : f32
      %cst_15 = arith.constant 5.000000e-02 : f32
      %45 = arith.addf %cst_14, %cst_15 : f32
      %46 = vector.broadcast %45 : f32 to vector<256x1xf32>
      %47 = arith.cmpf ole, %19, %46 : vector<256x1xf32>
      %48 = arith.andi %44, %47 : vector<256x1xi1>
      %c0_16 = arith.constant 0 : index
      %c0_17 = arith.constant 0 : index
      %49 = vector.load %arg8[%c0_16, %c0_17] : memref<256x256xi32, #tpu.memory_space<vmem>>, vector<256x256xi32>
      %c0_18 = arith.constant 0 : index
      %c0_19 = arith.constant 0 : index
      %c0_20 = arith.constant 0 : index
      %50 = vector.load %arg5[%c0_18, %c0_19, %c0_20] : memref<1x4x256xf32, #tpu.memory_space<vmem>>, vector<1x4x256xf32>
      %51 = vector.shape_cast %50 : vector<1x4x256xf32> to vector<4x256xf32>
      %c0_i32_21 = arith.constant 0 : i32
      %52 = vector.broadcast %c0_i32_21 : i32 to vector<256x1xi32>
      %53 = arith.addi %28, %52 : vector<256x1xi32>
      %c0_i32_22 = arith.constant 0 : i32
      %54 = vector.broadcast %c0_i32_22 : i32 to vector<256x1xi32>
      %55 = arith.addi %33, %54 : vector<256x1xi32>
      %cst_23 = arith.constant 1.000000e+00 : f32
      %56 = vector.broadcast %cst_23 : f32 to vector<256x1xf32>
      %57 = arith.subf %56, %22 : vector<256x1xf32>
      %cst_24 = arith.constant 1.000000e+00 : f32
      %58 = vector.broadcast %cst_24 : f32 to vector<256x1xf32>
      %59 = arith.subf %58, %23 : vector<256x1xf32>
      %c0_i32_25 = arith.constant 0 : i32
      %60 = vector.broadcast %c0_i32_25 : i32 to vector<256x1xi32>
      %61 = arith.cmpi sge, %53, %60 : vector<256x1xi32>
      %c16_i32 = arith.constant 16 : i32
      %62 = vector.broadcast %c16_i32 : i32 to vector<256x1xi32>
      %63 = arith.cmpi slt, %53, %62 : vector<256x1xi32>
      %64 = arith.andi %61, %63 : vector<256x1xi1>
      %c0_i32_26 = arith.constant 0 : i32
      %65 = vector.broadcast %c0_i32_26 : i32 to vector<256x1xi32>
      %66 = arith.cmpi sge, %55, %65 : vector<256x1xi32>
      %67 = arith.andi %64, %66 : vector<256x1xi1>
      %c16_i32_27 = arith.constant 16 : i32
      %68 = vector.broadcast %c16_i32_27 : i32 to vector<256x1xi32>
      %69 = arith.cmpi slt, %55, %68 : vector<256x1xi32>
      %70 = arith.andi %67, %69 : vector<256x1xi1>
      %71 = arith.andi %70, %48 : vector<256x1xi1>
      %72 = arith.mulf %57, %59 : vector<256x1xf32>
      %cst_28 = arith.constant 0.000000e+00 : f32
      %73 = vector.broadcast %cst_28 : f32 to vector<256x1xf32>
      %74 = arith.select %71, %72, %73 : vector<256x1xi1>, vector<256x1xf32>
      %c16_i32_29 = arith.constant 16 : i32
      %75 = vector.broadcast %c16_i32_29 : i32 to vector<256x1xi32>
      %76 = arith.muli %53, %75 : vector<256x1xi32>
      %77 = arith.addi %76, %55 : vector<256x1xi32>
      %78 = vector.broadcast %0 : i32 to vector<256x1xi32>
      %79 = arith.subi %77, %78 : vector<256x1xi32>
      %80 = vector.broadcast %79 : vector<256x1xi32> to vector<256x256xi32>
      %81 = arith.cmpi eq, %49, %80 : vector<256x256xi32>
      %cst_30 = arith.constant 0.000000e+00 : f32
      %82 = vector.shape_cast %74 : vector<256x1xf32> to vector<256x1xf32>
      %83 = vector.broadcast %82 : vector<256x1xf32> to vector<256x256xf32>
      %84 = vector.broadcast %cst_30 : f32 to vector<256x256xf32>
      %85 = arith.select %81, %83, %84 : vector<256x256xi1>, vector<256x256xf32>
      %cst_31 = arith.constant dense<0.000000e+00> : vector<4x256xf32>
      %86 = tpu.matmul %51, %85, %cst_31 {dimension_numbers = #tpu.dot_dimension_numbers<[1], [0], [0], [1], [0, 0, 1, 1], [], []>} : vector<4x256xf32>, vector<256x256xf32>, vector<4x256xf32> -> vector<4x256xf32>
      %c0_i32_32 = arith.constant 0 : i32
      %87 = vector.broadcast %c0_i32_32 : i32 to vector<256x1xi32>
      %88 = arith.addi %28, %87 : vector<256x1xi32>
      %c1_i32 = arith.constant 1 : i32
      %89 = vector.broadcast %c1_i32 : i32 to vector<256x1xi32>
      %90 = arith.addi %33, %89 : vector<256x1xi32>
      %cst_33 = arith.constant 1.000000e+00 : f32
      %91 = vector.broadcast %cst_33 : f32 to vector<256x1xf32>
      %92 = arith.subf %91, %22 : vector<256x1xf32>
      %c0_i32_34 = arith.constant 0 : i32
      %93 = vector.broadcast %c0_i32_34 : i32 to vector<256x1xi32>
      %94 = arith.cmpi sge, %88, %93 : vector<256x1xi32>
      %c16_i32_35 = arith.constant 16 : i32
      %95 = vector.broadcast %c16_i32_35 : i32 to vector<256x1xi32>
      %96 = arith.cmpi slt, %88, %95 : vector<256x1xi32>
      %97 = arith.andi %94, %96 : vector<256x1xi1>
      %c0_i32_36 = arith.constant 0 : i32
      %98 = vector.broadcast %c0_i32_36 : i32 to vector<256x1xi32>
      %99 = arith.cmpi sge, %90, %98 : vector<256x1xi32>
      %100 = arith.andi %97, %99 : vector<256x1xi1>
      %c16_i32_37 = arith.constant 16 : i32
      %101 = vector.broadcast %c16_i32_37 : i32 to vector<256x1xi32>
      %102 = arith.cmpi slt, %90, %101 : vector<256x1xi32>
      %103 = arith.andi %100, %102 : vector<256x1xi1>
      %104 = arith.andi %103, %48 : vector<256x1xi1>
      %105 = arith.mulf %92, %23 : vector<256x1xf32>
      %cst_38 = arith.constant 0.000000e+00 : f32
      %106 = vector.broadcast %cst_38 : f32 to vector<256x1xf32>
      %107 = arith.select %104, %105, %106 : vector<256x1xi1>, vector<256x1xf32>
      %c16_i32_39 = arith.constant 16 : i32
      %108 = vector.broadcast %c16_i32_39 : i32 to vector<256x1xi32>
      %109 = arith.muli %88, %108 : vector<256x1xi32>
      %110 = arith.addi %109, %90 : vector<256x1xi32>
      %111 = vector.broadcast %0 : i32 to vector<256x1xi32>
      %112 = arith.subi %110, %111 : vector<256x1xi32>
      %113 = vector.broadcast %112 : vector<256x1xi32> to vector<256x256xi32>
      %114 = arith.cmpi eq, %49, %113 : vector<256x256xi32>
      %cst_40 = arith.constant 0.000000e+00 : f32
      %115 = vector.shape_cast %107 : vector<256x1xf32> to vector<256x1xf32>
      %116 = vector.broadcast %115 : vector<256x1xf32> to vector<256x256xf32>
      %117 = vector.broadcast %cst_40 : f32 to vector<256x256xf32>
      %118 = arith.select %114, %116, %117 : vector<256x256xi1>, vector<256x256xf32>
      %cst_41 = arith.constant dense<0.000000e+00> : vector<4x256xf32>
      %119 = tpu.matmul %51, %118, %cst_41 {dimension_numbers = #tpu.dot_dimension_numbers<[1], [0], [0], [1], [0, 0, 1, 1], [], []>} : vector<4x256xf32>, vector<256x256xf32>, vector<4x256xf32> -> vector<4x256xf32>
      %120 = arith.addf %86, %119 : vector<4x256xf32>
      %c1_i32_42 = arith.constant 1 : i32
      %121 = vector.broadcast %c1_i32_42 : i32 to vector<256x1xi32>
      %122 = arith.addi %28, %121 : vector<256x1xi32>
      %c0_i32_43 = arith.constant 0 : i32
      %123 = vector.broadcast %c0_i32_43 : i32 to vector<256x1xi32>
      %124 = arith.addi %33, %123 : vector<256x1xi32>
      %cst_44 = arith.constant 1.000000e+00 : f32
      %125 = vector.broadcast %cst_44 : f32 to vector<256x1xf32>
      %126 = arith.subf %125, %23 : vector<256x1xf32>
      %c0_i32_45 = arith.constant 0 : i32
      %127 = vector.broadcast %c0_i32_45 : i32 to vector<256x1xi32>
      %128 = arith.cmpi sge, %122, %127 : vector<256x1xi32>
      %c16_i32_46 = arith.constant 16 : i32
      %129 = vector.broadcast %c16_i32_46 : i32 to vector<256x1xi32>
      %130 = arith.cmpi slt, %122, %129 : vector<256x1xi32>
      %131 = arith.andi %128, %130 : vector<256x1xi1>
      %c0_i32_47 = arith.constant 0 : i32
      %132 = vector.broadcast %c0_i32_47 : i32 to vector<256x1xi32>
      %133 = arith.cmpi sge, %124, %132 : vector<256x1xi32>
      %134 = arith.andi %131, %133 : vector<256x1xi1>
      %c16_i32_48 = arith.constant 16 : i32
      %135 = vector.broadcast %c16_i32_48 : i32 to vector<256x1xi32>
      %136 = arith.cmpi slt, %124, %135 : vector<256x1xi32>
      %137 = arith.andi %134, %136 : vector<256x1xi1>
      %138 = arith.andi %137, %48 : vector<256x1xi1>
      %139 = arith.mulf %22, %126 : vector<256x1xf32>
      %cst_49 = arith.constant 0.000000e+00 : f32
      %140 = vector.broadcast %cst_49 : f32 to vector<256x1xf32>
      %141 = arith.select %138, %139, %140 : vector<256x1xi1>, vector<256x1xf32>
      %c16_i32_50 = arith.constant 16 : i32
      %142 = vector.broadcast %c16_i32_50 : i32 to vector<256x1xi32>
      %143 = arith.muli %122, %142 : vector<256x1xi32>
      %144 = arith.addi %143, %124 : vector<256x1xi32>
      %145 = vector.broadcast %0 : i32 to vector<256x1xi32>
      %146 = arith.subi %144, %145 : vector<256x1xi32>
      %147 = vector.broadcast %146 : vector<256x1xi32> to vector<256x256xi32>
      %148 = arith.cmpi eq, %49, %147 : vector<256x256xi32>
      %cst_51 = arith.constant 0.000000e+00 : f32
      %149 = vector.shape_cast %141 : vector<256x1xf32> to vector<256x1xf32>
      %150 = vector.broadcast %149 : vector<256x1xf32> to vector<256x256xf32>
      %151 = vector.broadcast %cst_51 : f32 to vector<256x256xf32>
      %152 = arith.select %148, %150, %151 : vector<256x256xi1>, vector<256x256xf32>
      %cst_52 = arith.constant dense<0.000000e+00> : vector<4x256xf32>
      %153 = tpu.matmul %51, %152, %cst_52 {dimension_numbers = #tpu.dot_dimension_numbers<[1], [0], [0], [1], [0, 0, 1, 1], [], []>} : vector<4x256xf32>, vector<256x256xf32>, vector<4x256xf32> -> vector<4x256xf32>
      %154 = arith.addf %120, %153 : vector<4x256xf32>
      %c1_i32_53 = arith.constant 1 : i32
      %155 = vector.broadcast %c1_i32_53 : i32 to vector<256x1xi32>
      %156 = arith.addi %28, %155 : vector<256x1xi32>
      %c1_i32_54 = arith.constant 1 : i32
      %157 = vector.broadcast %c1_i32_54 : i32 to vector<256x1xi32>
      %158 = arith.addi %33, %157 : vector<256x1xi32>
      %c0_i32_55 = arith.constant 0 : i32
      %159 = vector.broadcast %c0_i32_55 : i32 to vector<256x1xi32>
      %160 = arith.cmpi sge, %156, %159 : vector<256x1xi32>
      %c16_i32_56 = arith.constant 16 : i32
      %161 = vector.broadcast %c16_i32_56 : i32 to vector<256x1xi32>
      %162 = arith.cmpi slt, %156, %161 : vector<256x1xi32>
      %163 = arith.andi %160, %162 : vector<256x1xi1>
      %c0_i32_57 = arith.constant 0 : i32
      %164 = vector.broadcast %c0_i32_57 : i32 to vector<256x1xi32>
      %165 = arith.cmpi sge, %158, %164 : vector<256x1xi32>
      %166 = arith.andi %163, %165 : vector<256x1xi1>
      %c16_i32_58 = arith.constant 16 : i32
      %167 = vector.broadcast %c16_i32_58 : i32 to vector<256x1xi32>
      %168 = arith.cmpi slt, %158, %167 : vector<256x1xi32>
      %169 = arith.andi %166, %168 : vector<256x1xi1>
      %170 = arith.andi %169, %48 : vector<256x1xi1>
      %171 = arith.mulf %22, %23 : vector<256x1xf32>
      %cst_59 = arith.constant 0.000000e+00 : f32
      %172 = vector.broadcast %cst_59 : f32 to vector<256x1xf32>
      %173 = arith.select %170, %171, %172 : vector<256x1xi1>, vector<256x1xf32>
      %c16_i32_60 = arith.constant 16 : i32
      %174 = vector.broadcast %c16_i32_60 : i32 to vector<256x1xi32>
      %175 = arith.muli %156, %174 : vector<256x1xi32>
      %176 = arith.addi %175, %158 : vector<256x1xi32>
      %177 = vector.broadcast %0 : i32 to vector<256x1xi32>
      %178 = arith.subi %176, %177 : vector<256x1xi32>
      %179 = vector.broadcast %178 : vector<256x1xi32> to vector<256x256xi32>
      %180 = arith.cmpi eq, %49, %179 : vector<256x256xi32>
      %cst_61 = arith.constant 0.000000e+00 : f32
      %181 = vector.shape_cast %173 : vector<256x1xf32> to vector<256x1xf32>
      %182 = vector.broadcast %181 : vector<256x1xf32> to vector<256x256xf32>
      %183 = vector.broadcast %cst_61 : f32 to vector<256x256xf32>
      %184 = arith.select %180, %182, %183 : vector<256x256xi1>, vector<256x256xf32>
      %cst_62 = arith.constant dense<0.000000e+00> : vector<4x256xf32>
      %185 = tpu.matmul %51, %184, %cst_62 {dimension_numbers = #tpu.dot_dimension_numbers<[1], [0], [0], [1], [0, 0, 1, 1], [], []>} : vector<4x256xf32>, vector<256x256xf32>, vector<4x256xf32> -> vector<4x256xf32>
      %186 = arith.addf %154, %185 : vector<4x256xf32>
      %c0_63 = arith.constant 0 : index
      %c0_64 = arith.constant 0 : index
      %c0_65 = arith.constant 0 : index
      %187 = vector.load %arg7[%c0_63, %c0_64, %c0_65] : memref<1x4x256xf32, #tpu.memory_space<vmem>>, vector<1x4x256xf32>
      %188 = vector.shape_cast %187 : vector<1x4x256xf32> to vector<4x256xf32>
      %189 = arith.addf %188, %186 : vector<4x256xf32>
      %c0_66 = arith.constant 0 : index
      %c0_67 = arith.constant 0 : index
      %c0_68 = arith.constant 0 : index
      %190 = vector.load %arg7[%c0_66, %c0_67, %c0_68] : memref<1x4x256xf32, #tpu.memory_space<vmem>>, vector<1x4x256xf32>
      %191 = vector.shape_cast %190 : vector<1x4x256xf32> to vector<4x256xf32>
      %192 = vector.shape_cast %189 : vector<4x256xf32> to vector<1x4x256xf32>
      tpu.vector_store %arg7[%c0_66, %c0_67, %c0_68], %192 {strides = array<i32>} : memref<1x4x256xf32, #tpu.memory_space<vmem>>, vector<1x4x256xf32>,
    } else {
    }
    return
  }
  func.func @transform_0(%arg0: i32, %arg1: i32, %arg2: i32, %arg3: memref<2x1xi32, #tpu.memory_space<smem>>, %arg4: memref<2x1xi32, #tpu.memory_space<smem>>) -> (i32, i32, i32) {
    %c0_i32 = arith.constant 0 : i32
    %c0_i32_0 = arith.constant 0 : i32
    return %arg0, %c0_i32, %arg2 : i32, i32, i32
  }
  func.func @transform_1(%arg0: i32, %arg1: i32, %arg2: i32, %arg3: memref<2x1xi32, #tpu.memory_space<smem>>, %arg4: memref<2x1xi32, #tpu.memory_space<smem>>) -> (i32, i32, i32) {
    %c0_i32 = arith.constant 0 : i32
    %c0_i32_0 = arith.constant 0 : i32
    return %arg0, %arg2, %c0_i32 : i32, i32, i32
  }
  func.func @transform_2(%arg0: i32, %arg1: i32, %arg2: i32, %arg3: memref<2x1xi32, #tpu.memory_space<smem>>, %arg4: memref<2x1xi32, #tpu.memory_space<smem>>) -> (i32, i32, i32) {
    %c0_i32 = arith.constant 0 : i32
    %c0_i32_0 = arith.constant 0 : i32
    return %arg0, %c0_i32, %arg1 : i32, i32, i32
  }
}

</mosaic_0001>

<llo_original>
// kernel: tpu_custom_call.1
$region0: #{tpu_custom_call.1}
  #allocation0 [shape = 'u32[]', space=smem, size = 0x4, offset = 0x4, fixed_abs, tag = 'smem constant byte address 0x4 - core index']
  #allocation1 [shape = 'u32[144,128]{1,0:T(1,128)}', space=vmem, size = 0x12000, scoped, tag = 'internal scratch']
  #allocation2 [shape = 's32[256,256]{1,0:T(8,128)}', space=vmem, size = 0x40000, scoped, tag = 'scratch operand']
  #allocation3 [shape = 's32[1]{0}', space=sflag, size = 0x4, scoped, tag = 'scoped memory for tpu_custom_call.1']
  #allocation4 [shape = 'u8[1024]{0}', space=smem, size = 0x400, scoped, tag = 'prefetched SMEM operand 0']
  #allocation5 [shape = 'u8[1024]{0}', space=smem, size = 0x400, scoped, tag = 'prefetched SMEM operand 1']
  %s0 = inlined_call_operand.vmem [shape: s32[2,1], index: 0, kind: input, shape index: {}]
  %s1 = inlined_call_operand.vmem [shape: s32[2,1], index: 1, kind: input, shape index: {}]
  %s2 = inlined_call_operand.vmem [shape: f32[2,4,256], index: 2, kind: input, shape index: {}]
  %s3 = inlined_call_operand.vmem [shape: f32[2,256,2], index: 3, kind: input, shape index: {}]
  %s4 = inlined_call_operand.hbm [shape: f32[2,4,256], index: 4, kind: output, shape index: {}]
  %s5 = sld [smem:[#allocation0]]
  $region49: #{tpu_custom_call.1} parent=0
    _
  %s7 = ssub.s32 1, %s5
  %s8 = scalar_select 0, %s7, %s5
  %s9 = sshll.u32 %s0, 4
  %s10 = int_to_ptr.vmem [resolvable:$true] %s9
  %12 = dma.vmem_to_smem %s10, 32, [#allocation4], [#allocation3]
  %s13 = sshll.u32 %s1, 4
  %s14 = int_to_ptr.vmem [resolvable:$true] %s13
  %16 = dma.vmem_to_smem %s14, 32, [#allocation5], [#allocation3]
  %17 = dma.done [#allocation3], 64
  %18 = sfence
  $region1: #{tpu_custom_call.1} parent=0
    #allocation6 [shape = 'u8[8192]{0}', space=vmem, size = 0x2000, scoped, tag = 'output window, operand 0']
    #allocation7 [shape = 's32[2]{0}', space=sflag, size = 0x8, scoped, tag = 'scoped memory for tpu_custom_call.1']
    %19 = vsyncpa [#allocation7], 0
    %s20 = scalar_lea.sflag [#allocation7], 1
    %21 = vsyncpa %s20, 0
    loop: start=0, step=1, limit=4
    $region2: #{tpu_custom_call.1} parent=1 // loop_pre_header
      _
    $region3: #{tpu_custom_call.1} parent=1 // loop_header
      %s23 = sphi 0, %s27
      %p24 = scmp.ge.s32.totalorder %s23, 4
      %s30 = sphi 0, %s49
      %s31 = sphi 0, %s45
      %s32 = sphi 0, %s41
      %s33 = sphi 0, %s30
      %s34 = sphi 0, %s31
      %s35 = sphi 0, %s32
      %s36 = sphi 0, %s33
      %s37 = sphi 0, %s34
      %s38 = sphi 0, %s35
      %s54 = sphi 0, %s56
      %s57 = sphi 0, %s54
      %s58 = sphi 0, %s57
      %s74 = sphi 0, %s58
      %s82 = sphi 0, %s84
      %s85 = sphi 0, %s82
      %s86 = sphi 0, %s85
      %s102 = sphi 0, %s86
      %s110 = sphi 0, %s112
      %s113 = sphi 0, %s110
      %s114 = sphi 0, %s113
      %s130 = sphi 0, %s114
    $region4: #{tpu_custom_call.1} parent=1 // loop_header_branch
      %26 = sbr.rel (%p24) target = $region8
    $region5: #{tpu_custom_call.1} parent=1 // loop_body
      %s28 = ssub.s32 %s23, 1
      %s29 = ssub.s32 %s23, 2
      %s39 = sadd.s32 1, %s32
      %p40 = scmp.ge.s32.totalorder %s39, 1
      %s41 = scalar_select %p40, 0, %s39
      %s42 = sadd.s32 1, %s31
      %s43 = scalar_select %p40, %s42, %s31
      %p44 = scmp.ge.s32.totalorder %s43, 1
      %s45 = scalar_select %p44, 0, %s43
      %s46 = sadd.s32 1, %s30
      %s47 = scalar_select %p44, %s46, %s30
      %p48 = scmp.ge.s32.totalorder %s47, 2
      %s49 = scalar_select %p48, 0, %s47
      %s50 = ssub.s32 %s30, %s49
      %s51 = ssub.s32 %s32, %s41
      %s52 = sor.u32 %s50, %s51
      %p53 = scmp.eq.s32.totalorder %s52, 0
      %s55 = sadd.s32 %s54, 1
      %s56 = scalar_select %p53, %s54, %s55
      %p59 = pneg %p53
      %p60 = scmp.eq.s32.totalorder %s23, 1
      %p61 = por %p59, %p60
      %p62 = scmp.ne.s32.totalorder %s54, %s57
      %p63 = scmp.eq.s32.totalorder %s23, 0
      %p64 = por %p62, %p63
      %p65 = scmp.ne.s32.totalorder %s54, %s57
      %p66 = scmp.eq.s32.totalorder %s28, 1
      %p67 = por %p65, %p66
      %p68 = scmp.ne.s32.totalorder %s57, %s58
      %p69 = scmp.eq.s32.totalorder %s28, 0
      %p70 = por %p68, %p69
      %p71 = scmp.ne.s32.totalorder %s57, %s58
      %p72 = scmp.eq.s32.totalorder %s29, 1
      %p73 = por %p71, %p72
      %p75 = scmp.ne.s32.totalorder %s58, %s74
      %p76 = scmp.eq.s32.totalorder %s29, 0
      %p77 = por %p75, %p76
      %s78 = ssub.s32 %s30, %s49
      %s79 = ssub.s32 %s32, %s41
      %s80 = sor.u32 %s78, %s79
      %p81 = scmp.eq.s32.totalorder %s80, 0
      %s83 = sadd.s32 %s82, 1
      %s84 = scalar_select %p81, %s82, %s83
      %p87 = pneg %p81
      %p88 = scmp.eq.s32.totalorder %s23, 1
      %p89 = por %p87, %p88
      %p90 = scmp.ne.s32.totalorder %s82, %s85
      %p91 = scmp.eq.s32.totalorder %s23, 0
      %p92 = por %p90, %p91
      %p93 = scmp.ne.s32.totalorder %s82, %s85
      %p94 = scmp.eq.s32.totalorder %s28, 1
      %p95 = por %p93, %p94
      %p96 = scmp.ne.s32.totalorder %s85, %s86
      %p97 = scmp.eq.s32.totalorder %s28, 0
      %p98 = por %p96, %p97
      %p99 = scmp.ne.s32.totalorder %s85, %s86
      %p100 = scmp.eq.s32.totalorder %s29, 1
      %p101 = por %p99, %p100
      %p103 = scmp.ne.s32.totalorder %s86, %s102
      %p104 = scmp.eq.s32.totalorder %s29, 0
      %p105 = por %p103, %p104
      %s106 = ssub.s32 %s30, %s49
      %s107 = ssub.s32 %s31, %s45
      %s108 = sor.u32 %s106, %s107
      %p109 = scmp.eq.s32.totalorder %s108, 0
      %s111 = sadd.s32 %s110, 1
      %s112 = scalar_select %p109, %s110, %s111
      %p115 = pneg %p109
      %p116 = scmp.eq.s32.totalorder %s23, 1
      %p117 = por %p115, %p116
      %p118 = scmp.ne.s32.totalorder %s110, %s113
      %p119 = scmp.eq.s32.totalorder %s23, 0
      %p120 = por %p118, %p119
      %p121 = scmp.ne.s32.totalorder %s110, %s113
      %p122 = scmp.eq.s32.totalorder %s28, 1
      %p123 = por %p121, %p122
      %p124 = scmp.ne.s32.totalorder %s113, %s114
      %p125 = scmp.eq.s32.totalorder %s28, 0
      %p126 = por %p124, %p125
      %p127 = scmp.ne.s32.totalorder %s113, %s114
      %p128 = scmp.eq.s32.totalorder %s29, 1
      %p129 = por %p127, %p128
      %p131 = scmp.ne.s32.totalorder %s114, %s130
      %p132 = scmp.eq.s32.totalorder %s29, 0
      %p133 = por %p131, %p132
      %p134 = scmp.le.s32.totalorder 1, %s23
      %p135 = scmp.lt.s32.totalorder %s23, 3
      %p136 = pnand %p134, %p135
      %p137 = pneg %p136
      // Predicated region
      $region9: #{tpu_custom_call.1} parent=5 // pred_check
        _
      $region10: #{tpu_custom_call.1} parent=5 // pred_check_branch
        %139 = sbr.rel (%p136) target = $region12
      $region11: #{tpu_custom_call.1} parent=5 // pred_region
        %s140 = ssub.s32 %s23, 1
      $region12: #{tpu_custom_call.1} parent=5 // pred_fallthru
        _
      %p141 = scmp.lt.s32.totalorder %s23, 2
      // Predicated region
      $region13: #{tpu_custom_call.1} parent=5 // pred_check
        %p142 = pneg %p141
      $region14: #{tpu_custom_call.1} parent=5 // pred_check_branch
        %144 = sbr.rel (%p142) target = $region16
      $region15: #{tpu_custom_call.1} parent=5 // pred_region
        // Predicated region
        $region17: #{tpu_custom_call.1} parent=15 // pred_check
          %p145 = pneg %p64
        $region18: #{tpu_custom_call.1} parent=15 // pred_check_branch
          %147 = sbr.rel (%p145) target = $region20
        $region19: #{tpu_custom_call.1} parent=15 // pred_region
          %s148 = smul.u32 2, %s32
          %p149 = scmp.lt.s32.totalorder %s30, 1
          %s150 = scalar_select %p149, %s30, 1
          %p151 = scmp.lt.s32.totalorder %s148, 1
          %s152 = scalar_select %p151, %s148, 1
          %s153 = smul.addr %s150, 2
          %s154 = sadd.s32 %s152, %s153
          %s155 = smul.addr %s154, 4
          %s156 = scalar_lea.vmem %s2, %s155
          %s157 = smul.u32 2, %s32
        $region20: #{tpu_custom_call.1} parent=15 // pred_fallthru
          _
        // Predicated region
        $region21: #{tpu_custom_call.1} parent=15 // pred_check
          %p158 = pneg %p92
        $region22: #{tpu_custom_call.1} parent=15 // pred_check_branch
          %160 = sbr.rel (%p158) target = $region24
        $region23: #{tpu_custom_call.1} parent=15 // pred_region
          %s161 = smul.u32 32, %s32
          %p162 = scmp.lt.s32.totalorder %s30, 1
          %s163 = scalar_select %p162, %s30, 1
          %p164 = scmp.lt.s32.totalorder %s161, 31
          %s165 = scalar_select %p164, %s161, 31
          %s166 = smul.addr %s163, 32
          %s167 = sadd.s32 %s165, %s166
          %s168 = smul.addr %s167, 8
          %s169 = scalar_lea.vmem %s3, %s168
          %s170 = smul.u32 32, %s32
        $region24: #{tpu_custom_call.1} parent=15 // pred_fallthru
          _
      $region16: #{tpu_custom_call.1} parent=5 // pred_fallthru
        _
      %p171 = scmp.le.s32.totalorder 1, %s23
      %p172 = scmp.lt.s32.totalorder %s23, 3
      %p173 = pnand %p171, %p172
      %p174 = pneg %p173
      // Predicated region
      $region25: #{tpu_custom_call.1} parent=5 // pred_check
        _
      $region26: #{tpu_custom_call.1} parent=5 // pred_check_branch
        %176 = sbr.rel (%p173) target = $region28
      $region27: #{tpu_custom_call.1} parent=5 // pred_region
        %s177 = ssub.s32 %s23, 1
        %s178 = smul.u32 2, %s35
        %p179 = scmp.lt.s32.totalorder %s33, 1
        %s180 = scalar_select %p179, %s33, 1
        %p181 = scmp.lt.s32.totalorder %s178, 1
        %s182 = scalar_select %p181, %s178, 1
        %s183 = smul.addr %s180, 2
        %s184 = sadd.s32 %s182, %s183
        %s185 = smul.addr %s184, 4
        %s186 = scalar_lea.vmem %s2, %s185
        %p187 = pneg %p70
        %p188 = pneg %p67
        %s189 = smul.u32 32, %s35
        %p190 = scmp.lt.s32.totalorder %s33, 1
        %s191 = scalar_select %p190, %s33, 1
        %p192 = scmp.lt.s32.totalorder %s189, 31
        %s193 = scalar_select %p192, %s189, 31
        %s194 = smul.addr %s191, 32
        %s195 = sadd.s32 %s193, %s194
        %s196 = smul.addr %s195, 8
        %s197 = scalar_lea.vmem %s3, %s196
        %p198 = pneg %p98
        %p199 = pneg %p95
        %p200 = pneg %p126
        %p201 = pneg %p123
        %s202 = sand.u32 %s113, 1
        %s203 = scalar_lea.sflag [#allocation7], %s202
        %s204 = sand.u32 %s113, 1
        %s205 = smul.addr %s204, 8
        %s206 = scalar_lea.vmem [#allocation6], %s205
        %s207 = smul.u32 2, %s35
        %p208 = scmp.lt.s32.totalorder %s33, 1
        %s209 = scalar_select %p208, %s33, 1
        %p210 = scmp.lt.s32.totalorder %s207, 1
        %s211 = scalar_select %p210, %s207, 1
        %s212 = smul.addr %s209, 2
        %s213 = sadd.s32 %s211, %s212
        %s214 = smul.addr %s213, 4
        %s215 = scalar_lea.vmem %s2, %s214
        %s216 = smul.u32 2, %s35
        %s217 = smul.u32 32, %s35
        %p218 = scmp.lt.s32.totalorder %s33, 1
        %s219 = scalar_select %p218, %s33, 1
        %p220 = scmp.lt.s32.totalorder %s217, 31
        %s221 = scalar_select %p220, %s217, 31
        %s222 = smul.addr %s219, 32
        %s223 = sadd.s32 %s221, %s222
        %s224 = smul.addr %s223, 8
        %s225 = scalar_lea.vmem %s3, %s224
        %s226 = smul.u32 32, %s35
        %s227 = smul.u32 2, %s34
        %s228 = smul.u32 %s34, 256
        %p229 = scmp.eq.s32.totalorder %s35, 0
        // Predicated region
        $region29: #{tpu_custom_call.1} parent=27 // pred_check
          %p230 = pneg %p229
        $region30: #{tpu_custom_call.1} parent=27 // pred_check_branch
          %232 = sbr.rel (%p230) target = $region32
        $region31: #{tpu_custom_call.1} parent=27 // pred_region
          %233 = vst [vmem:[%s206] sm:$0xff] 0.0
          %v234 = vlaneseq
          %v235 = vand.u32 %v234, 127
          %v236 = vadd.s32 %v235, 128
          %237 = vst [vmem:[#allocation2] sm:$0xff] %v235
          %238 = vst [vmem:[#allocation2 + $0x8] sm:$0xff] %v236
          %239 = vst [vmem:[#allocation2 + $0x10] sm:$0xff] %v235
          %240 = vst [vmem:[#allocation2 + $0x18] sm:$0xff] %v236
          %241 = vst [vmem:[#allocation2 + $0x20] sm:$0xff] %v235
          %242 = vst [vmem:[#allocation2 + $0x28] sm:$0xff] %v236
          %243 = vst [vmem:[#allocation2 + $0x30] sm:$0xff] %v235
          %244 = vst [vmem:[#allocation2 + $0x38] sm:$0xff] %v236
          %245 = vst [vmem:[#allocation2 + $0x40] sm:$0xff] %v235
          %246 = vst [vmem:[#allocation2 + $0x48] sm:$0xff] %v236
          %247 = vst [vmem:[#allocation2 + $0x50] sm:$0xff] %v235
          %248 = vst [vmem:[#allocation2 + $0x58] sm:$0xff] %v236
          %249 = vst [vmem:[#allocation2 + $0x60] sm:$0xff] %v235
          %250 = vst [vmem:[#allocation2 + $0x68] sm:$0xff] %v236
          %251 = vst [vmem:[#allocation2 + $0x70] sm:$0xff] %v235
          %252 = vst [vmem:[#allocation2 + $0x78] sm:$0xff] %v236
          %253 = vst [vmem:[#allocation2 + $0x80] sm:$0xff] %v235
          %254 = vst [vmem:[#allocation2 + $0x88] sm:$0xff] %v236
          %255 = vst [vmem:[#allocation2 + $0x90] sm:$0xff] %v235
          %256 = vst [vmem:[#allocation2 + $0x98] sm:$0xff] %v236
          %257 = vst [vmem:[#allocation2 + $0xa0] sm:$0xff] %v235
          %258 = vst [vmem:[#allocation2 + $0xa8] sm:$0xff] %v236
          %259 = vst [vmem:[#allocation2 + $0xb0] sm:$0xff] %v235
          %260 = vst [vmem:[#allocation2 + $0xb8] sm:$0xff] %v236
          %261 = vst [vmem:[#allocation2 + $0xc0] sm:$0xff] %v235
          %262 = vst [vmem:[#allocation2 + $0xc8] sm:$0xff] %v236
          %263 = vst [vmem:[#allocation2 + $0xd0] sm:$0xff] %v235
          %264 = vst [vmem:[#allocation2 + $0xd8] sm:$0xff] %v236
          %265 = vst [vmem:[#allocation2 + $0xe0] sm:$0xff] %v235
          %266 = vst [vmem:[#allocation2 + $0xe8] sm:$0xff] %v236
          %267 = vst [vmem:[#allocation2 + $0xf0] sm:$0xff] %v235
          %268 = vst [vmem:[#allocation2 + $0xf8] sm:$0xff] %v236
          %269 = vst [vmem:[#allocation2 + $0x100] sm:$0xff] %v235
          %270 = vst [vmem:[#allocation2 + $0x108] sm:$0xff] %v236
          %271 = vst [vmem:[#allocation2 + $0x110] sm:$0xff] %v235
          %272 = vst [vmem:[#allocation2 + $0x118] sm:$0xff] %v236
          %273 = vst [vmem:[#allocation2 + $0x120] sm:$0xff] %v235
          %274 = vst [vmem:[#allocation2 + $0x128] sm:$0xff] %v236
          %275 = vst [vmem:[#allocation2 + $0x130] sm:$0xff] %v235
          %276 = vst [vmem:[#allocation2 + $0x138] sm:$0xff] %v236
          %277 = vst [vmem:[#allocation2 + $0x140] sm:$0xff] %v235
          %278 = vst [vmem:[#allocation2 + $0x148] sm:$0xff] %v236
          %279 = vst [vmem:[#allocation2 + $0x150] sm:$0xff] %v235
          %280 = vst [vmem:[#allocation2 + $0x158] sm:$0xff] %v236
          %281 = vst [vmem:[#allocation2 + $0x160] sm:$0xff] %v235
          %282 = vst [vmem:[#allocation2 + $0x168] sm:$0xff] %v236
          %283 = vst [vmem:[#allocation2 + $0x170] sm:$0xff] %v235
          %284 = vst [vmem:[#allocation2 + $0x178] sm:$0xff] %v236
          %285 = vst [vmem:[#allocation2 + $0x180] sm:$0xff] %v235
          %286 = vst [vmem:[#allocation2 + $0x188] sm:$0xff] %v236
          %287 = vst [vmem:[#allocation2 + $0x190] sm:$0xff] %v235
          %288 = vst [vmem:[#allocation2 + $0x198] sm:$0xff] %v236
          %289 = vst [vmem:[#allocation2 + $0x1a0] sm:$0xff] %v235
          %290 = vst [vmem:[#allocation2 + $0x1a8] sm:$0xff] %v236
          %291 = vst [vmem:[#allocation2 + $0x1b0] sm:$0xff] %v235
          %292 = vst [vmem:[#allocation2 + $0x1b8] sm:$0xff] %v236
          %293 = vst [vmem:[#allocation2 + $0x1c0] sm:$0xff] %v235
          %294 = vst [vmem:[#allocation2 + $0x1c8] sm:$0xff] %v236
          %295 = vst [vmem:[#allocation2 + $0x1d0] sm:$0xff] %v235
          %296 = vst [vmem:[#allocation2 + $0x1d8] sm:$0xff] %v236
          %297 = vst [vmem:[#allocation2 + $0x1e0] sm:$0xff] %v235
          %298 = vst [vmem:[#allocation2 + $0x1e8] sm:$0xff] %v236
          %299 = vst [vmem:[#allocation2 + $0x1f0] sm:$0xff] %v235
          %300 = vst [vmem:[#allocation2 + $0x1f8] sm:$0xff] %v236
        $region32: #{tpu_custom_call.1} parent=27 // pred_fallthru
          _
        %s301 = sshra.s32 %s35, 7
        %s302 = sand.u32 %s35, 127
        %s303 = sadd.s32 %s301, %s33
        %s304 = smul.u32 %s303, 128
        %s305 = sshra.s32 %s35, 7
        %s306 = sand.u32 %s35, 127
        %s307 = sadd.s32 %s304, %s306
        %s308 = sld [smem:[#allocation4 + %s307]]
        %s309 = sld [smem:[#allocation5 + %s307]]
        %s310 = sadd.s32 %s228, 256
        %p311 = scmp.lt.s32.totalorder %s308, %s310
        %p312 = scmp.ge.s32.totalorder %s309, %s228
        %p313 = pnand %p311, %p312
        %p314 = pneg %p313
        // Predicated region
        $region33: #{tpu_custom_call.1} parent=27 // pred_check
          _
        $region34: #{tpu_custom_call.1} parent=27 // pred_check_branch
          %316 = sbr.rel (%p313) target = $region36
        $region35: #{tpu_custom_call.1} parent=27 // pred_region
          %v317 = vld [vmem:[%s225] sm:$0xff]
          %v318 = vld [vmem:[%s225 + $0x8] sm:$0xff]
          %v319 = vld [vmem:[%s225 + $0x10] sm:$0xff]
          %v320 = vld [vmem:[%s225 + $0x18] sm:$0xff]
          %v321 = vld [vmem:[%s225 + $0x20] sm:$0xff]
          %v322 = vld [vmem:[%s225 + $0x28] sm:$0xff]
          %v323 = vld [vmem:[%s225 + $0x30] sm:$0xff]
          %v324 = vld [vmem:[%s225 + $0x38] sm:$0xff]
          %v325 = vld [vmem:[%s225 + $0x40] sm:$0xff]
          %v326 = vld [vmem:[%s225 + $0x48] sm:$0xff]
          %v327 = vld [vmem:[%s225 + $0x50] sm:$0xff]
          %v328 = vld [vmem:[%s225 + $0x58] sm:$0xff]
          %v329 = vld [vmem:[%s225 + $0x60] sm:$0xff]
          %v330 = vld [vmem:[%s225 + $0x68] sm:$0xff]
          %v331 = vld [vmem:[%s225 + $0x70] sm:$0xff]
          %v332 = vld [vmem:[%s225 + $0x78] sm:$0xff]
          %v333 = vld [vmem:[%s225 + $0x80] sm:$0xff]
          %v334 = vld [vmem:[%s225 + $0x88] sm:$0xff]
          %v335 = vld [vmem:[%s225 + $0x90] sm:$0xff]
          %v336 = vld [vmem:[%s225 + $0x98] sm:$0xff]
          %v337 = vld [vmem:[%s225 + $0xa0] sm:$0xff]
          %v338 = vld [vmem:[%s225 + $0xa8] sm:$0xff]
          %v339 = vld [vmem:[%s225 + $0xb0] sm:$0xff]
          %v340 = vld [vmem:[%s225 + $0xb8] sm:$0xff]
          %v341 = vld [vmem:[%s225 + $0xc0] sm:$0xff]
          %v342 = vld [vmem:[%s225 + $0xc8] sm:$0xff]
          %v343 = vld [vmem:[%s225 + $0xd0] sm:$0xff]
          %v344 = vld [vmem:[%s225 + $0xd8] sm:$0xff]
          %v345 = vld [vmem:[%s225 + $0xe0] sm:$0xff]
          %v346 = vld [vmem:[%s225 + $0xe8] sm:$0xff]
          %v347 = vld [vmem:[%s225 + $0xf0] sm:$0xff]
          %v348 = vld [vmem:[%s225 + $0xf8] sm:$0xff]
          %v349 = vfloor.f32 %v317
          %v350 = vfloor.f32 %v318
          %v351 = vfloor.f32 %v319
          %v352 = vfloor.f32 %v320
          %v353 = vfloor.f32 %v321
          %v354 = vfloor.f32 %v322
          %v355 = vfloor.f32 %v323
          %v356 = vfloor.f32 %v324
          %v357 = vfloor.f32 %v325
          %v358 = vfloor.f32 %v326
          %v359 = vfloor.f32 %v327
          %v360 = vfloor.f32 %v328
          %v361 = vfloor.f32 %v329
          %v362 = vfloor.f32 %v330
          %v363 = vfloor.f32 %v331
          %v364 = vfloor.f32 %v332
          %v365 = vfloor.f32 %v333
          %v366 = vfloor.f32 %v334
          %v367 = vfloor.f32 %v335
          %v368 = vfloor.f32 %v336
          %v369 = vfloor.f32 %v337
          %v370 = vfloor.f32 %v338
          %v371 = vfloor.f32 %v339
          %v372 = vfloor.f32 %v340
          %v373 = vfloor.f32 %v341
          %v374 = vfloor.f32 %v342
          %v375 = vfloor.f32 %v343
          %v376 = vfloor.f32 %v344
          %v377 = vfloor.f32 %v345
          %v378 = vfloor.f32 %v346
          %v379 = vfloor.f32 %v347
          %v380 = vfloor.f32 %v348
          %v381 = vsub.f32 %v317, %v349
          %v382 = vsub.f32 %v318, %v350
          %v383 = vsub.f32 %v319, %v351
          %v384 = vsub.f32 %v320, %v352
          %v385 = vsub.f32 %v321, %v353
          %v386 = vsub.f32 %v322, %v354
          %v387 = vsub.f32 %v323, %v355
          %v388 = vsub.f32 %v324, %v356
          %v389 = vsub.f32 %v325, %v357
          %v390 = vsub.f32 %v326, %v358
          %v391 = vsub.f32 %v327, %v359
          %v392 = vsub.f32 %v328, %v360
          %v393 = vsub.f32 %v329, %v361
          %v394 = vsub.f32 %v330, %v362
          %v395 = vsub.f32 %v331, %v363
          %v396 = vsub.f32 %v332, %v364
          %v397 = vsub.f32 %v333, %v365
          %v398 = vsub.f32 %v334, %v366
          %v399 = vsub.f32 %v335, %v367
          %v400 = vsub.f32 %v336, %v368
          %v401 = vsub.f32 %v337, %v369
          %v402 = vsub.f32 %v338, %v370
          %v403 = vsub.f32 %v339, %v371
          %v404 = vsub.f32 %v340, %v372
          %v405 = vsub.f32 %v341, %v373
          %v406 = vsub.f32 %v342, %v374
          %v407 = vsub.f32 %v343, %v375
          %v408 = vsub.f32 %v344, %v376
          %v409 = vsub.f32 %v345, %v377
          %v410 = vsub.f32 %v346, %v378
          %v411 = vsub.f32 %v347, %v379
          %v412 = vsub.f32 %v348, %v380
          %v413 = vmax.f32 %v349, -1.0
          %v414 = vmax.f32 %v350, -1.0
          %v415 = vmax.f32 %v351, -1.0
          %v416 = vmax.f32 %v352, -1.0
          %v417 = vmax.f32 %v353, -1.0
          %v418 = vmax.f32 %v354, -1.0
          %v419 = vmax.f32 %v355, -1.0
          %v420 = vmax.f32 %v356, -1.0
          %v421 = vmax.f32 %v357, -1.0
          %v422 = vmax.f32 %v358, -1.0
          %v423 = vmax.f32 %v359, -1.0
          %v424 = vmax.f32 %v360, -1.0
          %v425 = vmax.f32 %v361, -1.0
          %v426 = vmax.f32 %v362, -1.0
          %v427 = vmax.f32 %v363, -1.0
          %v428 = vmax.f32 %v364, -1.0
          %v429 = vmax.f32 %v365, -1.0
          %v430 = vmax.f32 %v366, -1.0
          %v431 = vmax.f32 %v367, -1.0
          %v432 = vmax.f32 %v368, -1.0
          %v433 = vmax.f32 %v369, -1.0
          %v434 = vmax.f32 %v370, -1.0
          %v435 = vmax.f32 %v371, -1.0
          %v436 = vmax.f32 %v372, -1.0
          %v437 = vmax.f32 %v373, -1.0
          %v438 = vmax.f32 %v374, -1.0
          %v439 = vmax.f32 %v375, -1.0
          %v440 = vmax.f32 %v376, -1.0
          %v441 = vmax.f32 %v377, -1.0
          %v442 = vmax.f32 %v378, -1.0
          %v443 = vmax.f32 %v379, -1.0
          %v444 = vmax.f32 %v380, -1.0
          %v445 = vmin.f32 %v413, 15.0
          %v446 = vmin.f32 %v414, 15.0
          %v447 = vmin.f32 %v415, 15.0
          %v448 = vmin.f32 %v416, 15.0
          %v449 = vmin.f32 %v417, 15.0
          %v450 = vmin.f32 %v418, 15.0
          %v451 = vmin.f32 %v419, 15.0
          %v452 = vmin.f32 %v420, 15.0
          %v453 = vmin.f32 %v421, 15.0
          %v454 = vmin.f32 %v422, 15.0
          %v455 = vmin.f32 %v423, 15.0
          %v456 = vmin.f32 %v424, 15.0
          %v457 = vmin.f32 %v425, 15.0
          %v458 = vmin.f32 %v426, 15.0
          %v459 = vmin.f32 %v427, 15.0
          %v460 = vmin.f32 %v428, 15.0
          %v461 = vmin.f32 %v429, 15.0
          %v462 = vmin.f32 %v430, 15.0
          %v463 = vmin.f32 %v431, 15.0
          %v464 = vmin.f32 %v432, 15.0
          %v465 = vmin.f32 %v433, 15.0
          %v466 = vmin.f32 %v434, 15.0
          %v467 = vmin.f32 %v435, 15.0
          %v468 = vmin.f32 %v436, 15.0
          %v469 = vmin.f32 %v437, 15.0
          %v470 = vmin.f32 %v438, 15.0
          %v471 = vmin.f32 %v439, 15.0
          %v472 = vmin.f32 %v440, 15.0
          %v473 = vmin.f32 %v441, 15.0
          %v474 = vmin.f32 %v442, 15.0
          %v475 = vmin.f32 %v443, 15.0
          %v476 = vmin.f32 %v444, 15.0
          %v477 = vcvt.f32.s32.to.zero.pseudo %v445
          %v478 = vcvt.f32.s32.to.zero.pseudo %v446
          %v479 = vcvt.f32.s32.to.zero.pseudo %v447
          %v480 = vcvt.f32.s32.to.zero.pseudo %v448
          %v481 = vcvt.f32.s32.to.zero.pseudo %v449
          %v482 = vcvt.f32.s32.to.zero.pseudo %v450
          %v483 = vcvt.f32.s32.to.zero.pseudo %v451
          %v484 = vcvt.f32.s32.to.zero.pseudo %v452
          %v485 = vcvt.f32.s32.to.zero.pseudo %v453
          %v486 = vcvt.f32.s32.to.zero.pseudo %v454
          %v487 = vcvt.f32.s32.to.zero.pseudo %v455
          %v488 = vcvt.f32.s32.to.zero.pseudo %v456
          %v489 = vcvt.f32.s32.to.zero.pseudo %v457
          %v490 = vcvt.f32.s32.to.zero.pseudo %v458
          %v491 = vcvt.f32.s32.to.zero.pseudo %v459
          %v492 = vcvt.f32.s32.to.zero.pseudo %v460
          %v493 = vcvt.f32.s32.to.zero.pseudo %v461
          %v494 = vcvt.f32.s32.to.zero.pseudo %v462
          %v495 = vcvt.f32.s32.to.zero.pseudo %v463
          %v496 = vcvt.f32.s32.to.zero.pseudo %v464
          %v497 = vcvt.f32.s32.to.zero.pseudo %v465
          %v498 = vcvt.f32.s32.to.zero.pseudo %v466
          %v499 = vcvt.f32.s32.to.zero.pseudo %v467
          %v500 = vcvt.f32.s32.to.zero.pseudo %v468
          %v501 = vcvt.f32.s32.to.zero.pseudo %v469
          %v502 = vcvt.f32.s32.to.zero.pseudo %v470
          %v503 = vcvt.f32.s32.to.zero.pseudo %v471
          %v504 = vcvt.f32.s32.to.zero.pseudo %v472
          %v505 = vcvt.f32.s32.to.zero.pseudo %v473
          %v506 = vcvt.f32.s32.to.zero.pseudo %v474
          %v507 = vcvt.f32.s32.to.zero.pseudo %v475
          %v508 = vcvt.f32.s32.to.zero.pseudo %v476
          %vm509 = vcmp.ge.f32.partialorder %v317, -0.05
          %vm510 = vcmp.ge.f32.partialorder %v318, -0.05
          %vm511 = vcmp.ge.f32.partialorder %v319, -0.05
          %vm512 = vcmp.ge.f32.partialorder %v320, -0.05
          %vm513 = vcmp.ge.f32.partialorder %v321, -0.05
          %vm514 = vcmp.ge.f32.partialorder %v322, -0.05
          %vm515 = vcmp.ge.f32.partialorder %v323, -0.05
          %vm516 = vcmp.ge.f32.partialorder %v324, -0.05
          %vm517 = vcmp.ge.f32.partialorder %v325, -0.05
          %vm518 = vcmp.ge.f32.partialorder %v326, -0.05
          %vm519 = vcmp.ge.f32.partialorder %v327, -0.05
          %vm520 = vcmp.ge.f32.partialorder %v328, -0.05
          %vm521 = vcmp.ge.f32.partialorder %v329, -0.05
          %vm522 = vcmp.ge.f32.partialorder %v330, -0.05
          %vm523 = vcmp.ge.f32.partialorder %v331, -0.05
          %vm524 = vcmp.ge.f32.partialorder %v332, -0.05
          %vm525 = vcmp.ge.f32.partialorder %v333, -0.05
          %vm526 = vcmp.ge.f32.partialorder %v334, -0.05
          %vm527 = vcmp.ge.f32.partialorder %v335, -0.05
          %vm528 = vcmp.ge.f32.partialorder %v336, -0.05
          %vm529 = vcmp.ge.f32.partialorder %v337, -0.05
          %vm530 = vcmp.ge.f32.partialorder %v338, -0.05
          %vm531 = vcmp.ge.f32.partialorder %v339, -0.05
          %vm532 = vcmp.ge.f32.partialorder %v340, -0.05
          %vm533 = vcmp.ge.f32.partialorder %v341, -0.05
          %vm534 = vcmp.ge.f32.partialorder %v342, -0.05
          %vm535 = vcmp.ge.f32.partialorder %v343, -0.05
          %vm536 = vcmp.ge.f32.partialorder %v344, -0.05
          %vm537 = vcmp.ge.f32.partialorder %v345, -0.05
          %vm538 = vcmp.ge.f32.partialorder %v346, -0.05
          %vm539 = vcmp.ge.f32.partialorder %v347, -0.05
          %vm540 = vcmp.ge.f32.partialorder %v348, -0.05
          %vm541 = vcmp.le.f32.partialorder %v317, 15.05
          %vm542 = vcmp.le.f32.partialorder %v318, 15.05
          %vm543 = vcmp.le.f32.partialorder %v319, 15.05
          %vm544 = vcmp.le.f32.partialorder %v320, 15.05
          %vm545 = vcmp.le.f32.partialorder %v321, 15.05
          %vm546 = vcmp.le.f32.partialorder %v322, 15.05
          %vm547 = vcmp.le.f32.partialorder %v323, 15.05
          %vm548 = vcmp.le.f32.partialorder %v324, 15.05
          %vm549 = vcmp.le.f32.partialorder %v325, 15.05
          %vm550 = vcmp.le.f32.partialorder %v326, 15.05
          %vm551 = vcmp.le.f32.partialorder %v327, 15.05
          %vm552 = vcmp.le.f32.partialorder %v328, 15.05
          %vm553 = vcmp.le.f32.partialorder %v329, 15.05
          %vm554 = vcmp.le.f32.partialorder %v330, 15.05
          %vm555 = vcmp.le.f32.partialorder %v331, 15.05
          %vm556 = vcmp.le.f32.partialorder %v332, 15.05
          %vm557 = vcmp.le.f32.partialorder %v333, 15.05
          %vm558 = vcmp.le.f32.partialorder %v334, 15.05
          %vm559 = vcmp.le.f32.partialorder %v335, 15.05
          %vm560 = vcmp.le.f32.partialorder %v336, 15.05
          %vm561 = vcmp.le.f32.partialorder %v337, 15.05
          %vm562 = vcmp.le.f32.partialorder %v338, 15.05
          %vm563 = vcmp.le.f32.partialorder %v339, 15.05
          %vm564 = vcmp.le.f32.partialorder %v340, 15.05
          %vm565 = vcmp.le.f32.partialorder %v341, 15.05
          %vm566 = vcmp.le.f32.partialorder %v342, 15.05
          %vm567 = vcmp.le.f32.partialorder %v343, 15.05
          %vm568 = vcmp.le.f32.partialorder %v344, 15.05
          %vm569 = vcmp.le.f32.partialorder %v345, 15.05
          %vm570 = vcmp.le.f32.partialorder %v346, 15.05
          %vm571 = vcmp.le.f32.partialorder %v347, 15.05
          %vm572 = vcmp.le.f32.partialorder %v348, 15.05
          %vm573 = vmand %vm509, %vm541
          %vm574 = vmand %vm510, %vm542
          %vm575 = vmand %vm511, %vm543
          %vm576 = vmand %vm512, %vm544
          %vm577 = vmand %vm513, %vm545
          %vm578 = vmand %vm514, %vm546
          %vm579 = vmand %vm515, %vm547
          %vm580 = vmand %vm516, %vm548
          %vm581 = vmand %vm517, %vm549
          %vm582 = vmand %vm518, %vm550
          %vm583 = vmand %vm519, %vm551
          %vm584 = vmand %vm520, %vm552
          %vm585 = vmand %vm521, %vm553
          %vm586 = vmand %vm522, %vm554
          %vm587 = vmand %vm523, %vm555
          %vm588 = vmand %vm524, %vm556
          %vm589 = vmand %vm525, %vm557
          %vm590 = vmand %vm526, %vm558
          %vm591 = vmand %vm527, %vm559
          %vm592 = vmand %vm528, %vm560
          %vm593 = vmand %vm529, %vm561
          %vm594 = vmand %vm530, %vm562
          %vm595 = vmand %vm531, %vm563
          %vm596 = vmand %vm532, %vm564
          %vm597 = vmand %vm533, %vm565
          %vm598 = vmand %vm534, %vm566
          %vm599 = vmand %vm535, %vm567
          %vm600 = vmand %vm536, %vm568
          %vm601 = vmand %vm537, %vm569
          %vm602 = vmand %vm538, %vm570
          %vm603 = vmand %vm539, %vm571
          %vm604 = vmand %vm540, %vm572
          %v605 = vsel %vm509, 1, 0
          %v606 = vsel %vm510, 1, 0
          %v607 = vsel %vm511, 1, 0
          %v608 = vsel %vm512, 1, 0
          %v609 = vsel %vm513, 1, 0
          %v610 = vsel %vm514, 1, 0
          %v611 = vsel %vm515, 1, 0
          %v612 = vsel %vm516, 1, 0
          %v613 = vsel %vm517, 1, 0
          %v614 = vsel %vm518, 1, 0
          %v615 = vsel %vm519, 1, 0
          %v616 = vsel %vm520, 1, 0
          %v617 = vsel %vm521, 1, 0
          %v618 = vsel %vm522, 1, 0
          %v619 = vsel %vm523, 1, 0
          %v620 = vsel %vm524, 1, 0
          %v621 = vsel %vm525, 1, 0
          %v622 = vsel %vm526, 1, 0
          %v623 = vsel %vm527, 1, 0
          %v624 = vsel %vm528, 1, 0
          %v625 = vsel %vm529, 1, 0
          %v626 = vsel %vm530, 1, 0
          %v627 = vsel %vm531, 1, 0
          %v628 = vsel %vm532, 1, 0
          %v629 = vsel %vm533, 1, 0
          %v630 = vsel %vm534, 1, 0
          %v631 = vsel %vm535, 1, 0
          %v632 = vsel %vm536, 1, 0
          %v633 = vsel %vm537, 1, 0
          %v634 = vsel %vm538, 1, 0
          %v635 = vsel %vm539, 1, 0
          %v636 = vsel %vm540, 1, 0
          %637 = vrot.lane.b32.xlu0 %v605, 127
          %v638 = vpop.permute.xlu0 %637
          %639 = vrot.lane.b32.xlu0 %v606, 127
          %v640 = vpop.permute.xlu0 %639
          %641 = vrot.lane.b32.xlu0 %v607, 127
          %v642 = vpop.permute.xlu0 %641
          %643 = vrot.lane.b32.xlu0 %v608, 127
          %v644 = vpop.permute.xlu0 %643
          %645 = vrot.lane.b32.xlu0 %v609, 127
          %v646 = vpop.permute.xlu0 %645
          %647 = vrot.lane.b32.xlu0 %v610, 127
          %v648 = vpop.permute.xlu0 %647
          %649 = vrot.lane.b32.xlu0 %v611, 127
          %v650 = vpop.permute.xlu0 %649
          %651 = vrot.lane.b32.xlu0 %v612, 127
          %v652 = vpop.permute.xlu0 %651
          %653 = vrot.lane.b32.xlu0 %v613, 127
          %v654 = vpop.permute.xlu0 %653
          %655 = vrot.lane.b32.xlu0 %v614, 127
          %v656 = vpop.permute.xlu0 %655
          %657 = vrot.lane.b32.xlu0 %v615, 127
          %v658 = vpop.permute.xlu0 %657
          %659 = vrot.lane.b32.xlu0 %v616, 127
          %v660 = vpop.permute.xlu0 %659
          %661 = vrot.lane.b32.xlu0 %v617, 127
          %v662 = vpop.permute.xlu0 %661
          %663 = vrot.lane.b32.xlu0 %v618, 127
          %v664 = vpop.permute.xlu0 %663
          %665 = vrot.lane.b32.xlu0 %v619, 127
          %v666 = vpop.permute.xlu0 %665
          %667 = vrot.lane.b32.xlu0 %v620, 127
          %v668 = vpop.permute.xlu0 %667
          %669 = vrot.lane.b32.xlu0 %v621, 127
          %v670 = vpop.permute.xlu0 %669
          %671 = vrot.lane.b32.xlu0 %v622, 127
          %v672 = vpop.permute.xlu0 %671
          %673 = vrot.lane.b32.xlu0 %v623, 127
          %v674 = vpop.permute.xlu0 %673
          %675 = vrot.lane.b32.xlu0 %v624, 127
          %v676 = vpop.permute.xlu0 %675
          %677 = vrot.lane.b32.xlu0 %v625, 127
          %v678 = vpop.permute.xlu0 %677
          %679 = vrot.lane.b32.xlu0 %v626, 127
          %v680 = vpop.permute.xlu0 %679
          %681 = vrot.lane.b32.xlu0 %v627, 127
          %v682 = vpop.permute.xlu0 %681
          %683 = vrot.lane.b32.xlu0 %v628, 127
          %v684 = vpop.permute.xlu0 %683
          %685 = vrot.lane.b32.xlu0 %v629, 127
          %v686 = vpop.permute.xlu0 %685
          %687 = vrot.lane.b32.xlu0 %v630, 127
          %v688 = vpop.permute.xlu0 %687
          %689 = vrot.lane.b32.xlu0 %v631, 127
          %v690 = vpop.permute.xlu0 %689
          %691 = vrot.lane.b32.xlu0 %v632, 127
          %v692 = vpop.permute.xlu0 %691
          %693 = vrot.lane.b32.xlu0 %v633, 127
          %v694 = vpop.permute.xlu0 %693
          %695 = vrot.lane.b32.xlu0 %v634, 127
          %v696 = vpop.permute.xlu0 %695
          %697 = vrot.lane.b32.xlu0 %v635, 127
          %v698 = vpop.permute.xlu0 %697
          %699 = vrot.lane.b32.xlu0 %v636, 127
          %v700 = vpop.permute.xlu0 %699
          %vm701 = vcmp.ne.s32.totalorder %v638, 0
          %vm702 = vcmp.ne.s32.totalorder %v640, 0
          %vm703 = vcmp.ne.s32.totalorder %v642, 0
          %vm704 = vcmp.ne.s32.totalorder %v644, 0
          %vm705 = vcmp.ne.s32.totalorder %v646, 0
          %vm706 = vcmp.ne.s32.totalorder %v648, 0
          %vm707 = vcmp.ne.s32.totalorder %v650, 0
          %vm708 = vcmp.ne.s32.totalorder %v652, 0
          %vm709 = vcmp.ne.s32.totalorder %v654, 0
          %vm710 = vcmp.ne.s32.totalorder %v656, 0
          %vm711 = vcmp.ne.s32.totalorder %v658, 0
          %vm712 = vcmp.ne.s32.totalorder %v660, 0
          %vm713 = vcmp.ne.s32.totalorder %v662, 0
          %vm714 = vcmp.ne.s32.totalorder %v664, 0
          %vm715 = vcmp.ne.s32.totalorder %v666, 0
          %vm716 = vcmp.ne.s32.totalorder %v668, 0
          %vm717 = vcmp.ne.s32.totalorder %v670, 0
          %vm718 = vcmp.ne.s32.totalorder %v672, 0
          %vm719 = vcmp.ne.s32.totalorder %v674, 0
          %vm720 = vcmp.ne.s32.totalorder %v676, 0
          %vm721 = vcmp.ne.s32.totalorder %v678, 0
          %vm722 = vcmp.ne.s32.totalorder %v680, 0
          %vm723 = vcmp.ne.s32.totalorder %v682, 0
          %vm724 = vcmp.ne.s32.totalorder %v684, 0
          %vm725 = vcmp.ne.s32.totalorder %v686, 0
          %vm726 = vcmp.ne.s32.totalorder %v688, 0
          %vm727 = vcmp.ne.s32.totalorder %v690, 0
          %vm728 = vcmp.ne.s32.totalorder %v692, 0
          %vm729 = vcmp.ne.s32.totalorder %v694, 0
          %vm730 = vcmp.ne.s32.totalorder %v696, 0
          %vm731 = vcmp.ne.s32.totalorder %v698, 0
          %vm732 = vcmp.ne.s32.totalorder %v700, 0
          %vm733 = vmand %vm573, %vm701
          %vm734 = vmand %vm574, %vm702
          %vm735 = vmand %vm575, %vm703
          %vm736 = vmand %vm576, %vm704
          %vm737 = vmand %vm577, %vm705
          %vm738 = vmand %vm578, %vm706
          %vm739 = vmand %vm579, %vm707
          %vm740 = vmand %vm580, %vm708
          %vm741 = vmand %vm581, %vm709
          %vm742 = vmand %vm582, %vm710
          %vm743 = vmand %vm583, %vm711
          %vm744 = vmand %vm584, %vm712
          %vm745 = vmand %vm585, %vm713
          %vm746 = vmand %vm586, %vm714
          %vm747 = vmand %vm587, %vm715
          %vm748 = vmand %vm588, %vm716
          %vm749 = vmand %vm589, %vm717
          %vm750 = vmand %vm590, %vm718
          %vm751 = vmand %vm591, %vm719
          %vm752 = vmand %vm592, %vm720
          %vm753 = vmand %vm593, %vm721
          %vm754 = vmand %vm594, %vm722
          %vm755 = vmand %vm595, %vm723
          %vm756 = vmand %vm596, %vm724
          %vm757 = vmand %vm597, %vm725
          %vm758 = vmand %vm598, %vm726
          %vm759 = vmand %vm599, %vm727
          %vm760 = vmand %vm600, %vm728
          %vm761 = vmand %vm601, %vm729
          %vm762 = vmand %vm602, %vm730
          %vm763 = vmand %vm603, %vm731
          %vm764 = vmand %vm604, %vm732
          %v765 = vsel %vm541, 1, 0
          %v766 = vsel %vm542, 1, 0
          %v767 = vsel %vm543, 1, 0
          %v768 = vsel %vm544, 1, 0
          %v769 = vsel %vm545, 1, 0
          %v770 = vsel %vm546, 1, 0
          %v771 = vsel %vm547, 1, 0
          %v772 = vsel %vm548, 1, 0
          %v773 = vsel %vm549, 1, 0
          %v774 = vsel %vm550, 1, 0
          %v775 = vsel %vm551, 1, 0
          %v776 = vsel %vm552, 1, 0
          %v777 = vsel %vm553, 1, 0
          %v778 = vsel %vm554, 1, 0
          %v779 = vsel %vm555, 1, 0
          %v780 = vsel %vm556, 1, 0
          %v781 = vsel %vm557, 1, 0
          %v782 = vsel %vm558, 1, 0
          %v783 = vsel %vm559, 1, 0
          %v784 = vsel %vm560, 1, 0
          %v785 = vsel %vm561, 1, 0
          %v786 = vsel %vm562, 1, 0
          %v787 = vsel %vm563, 1, 0
          %v788 = vsel %vm564, 1, 0
          %v789 = vsel %vm565, 1, 0
          %v790 = vsel %vm566, 1, 0
          %v791 = vsel %vm567, 1, 0
          %v792 = vsel %vm568, 1, 0
          %v793 = vsel %vm569, 1, 0
          %v794 = vsel %vm570, 1, 0
          %v795 = vsel %vm571, 1, 0
          %v796 = vsel %vm572, 1, 0
          %797 = vrot.lane.b32.xlu0 %v765, 127
          %v798 = vpop.permute.xlu0 %797
          %799 = vrot.lane.b32.xlu0 %v766, 127
          %v800 = vpop.permute.xlu0 %799
          %801 = vrot.lane.b32.xlu0 %v767, 127
          %v802 = vpop.permute.xlu0 %801
          %803 = vrot.lane.b32.xlu0 %v768, 127
          %v804 = vpop.permute.xlu0 %803
          %805 = vrot.lane.b32.xlu0 %v769, 127
          %v806 = vpop.permute.xlu0 %805
          %807 = vrot.lane.b32.xlu0 %v770, 127
          %v808 = vpop.permute.xlu0 %807
          %809 = vrot.lane.b32.xlu0 %v771, 127
          %v810 = vpop.permute.xlu0 %809
          %811 = vrot.lane.b32.xlu0 %v772, 127
          %v812 = vpop.permute.xlu0 %811
          %813 = vrot.lane.b32.xlu0 %v773, 127
          %v814 = vpop.permute.xlu0 %813
          %815 = vrot.lane.b32.xlu0 %v774, 127
          %v816 = vpop.permute.xlu0 %815
          %817 = vrot.lane.b32.xlu0 %v775, 127
          %v818 = vpop.permute.xlu0 %817
          %819 = vrot.lane.b32.xlu0 %v776, 127
          %v820 = vpop.permute.xlu0 %819
          %821 = vrot.lane.b32.xlu0 %v777, 127
          %v822 = vpop.permute.xlu0 %821
          %823 = vrot.lane.b32.xlu0 %v778, 127
          %v824 = vpop.permute.xlu0 %823
          %825 = vrot.lane.b32.xlu0 %v779, 127
          %v826 = vpop.permute.xlu0 %825
          %827 = vrot.lane.b32.xlu0 %v780, 127
          %v828 = vpop.permute.xlu0 %827
          %829 = vrot.lane.b32.xlu0 %v781, 127
          %v830 = vpop.permute.xlu0 %829
          %831 = vrot.lane.b32.xlu0 %v782, 127
          %v832 = vpop.permute.xlu0 %831
          %833 = vrot.lane.b32.xlu0 %v783, 127
          %v834 = vpop.permute.xlu0 %833
          %835 = vrot.lane.b32.xlu0 %v784, 127
          %v836 = vpop.permute.xlu0 %835
          %837 = vrot.lane.b32.xlu0 %v785, 127
          %v838 = vpop.permute.xlu0 %837
          %839 = vrot.lane.b32.xlu0 %v786, 127
          %v840 = vpop.permute.xlu0 %839
          %841 = vrot.lane.b32.xlu0 %v787, 127
          %v842 = vpop.permute.xlu0 %841
          %843 = vrot.lane.b32.xlu0 %v788, 127
          %v844 = vpop.permute.xlu0 %843
          %845 = vrot.lane.b32.xlu0 %v789, 127
          %v846 = vpop.permute.xlu0 %845
          %847 = vrot.lane.b32.xlu0 %v790, 127
          %v848 = vpop.permute.xlu0 %847
          %849 = vrot.lane.b32.xlu0 %v791, 127
          %v850 = vpop.permute.xlu0 %849
          %851 = vrot.lane.b32.xlu0 %v792, 127
          %v852 = vpop.permute.xlu0 %851
          %853 = vrot.lane.b32.xlu0 %v793, 127
          %v854 = vpop.permute.xlu0 %853
          %855 = vrot.lane.b32.xlu0 %v794, 127
          %v856 = vpop.permute.xlu0 %855
          %857 = vrot.lane.b32.xlu0 %v795, 127
          %v858 = vpop.permute.xlu0 %857
          %859 = vrot.lane.b32.xlu0 %v796, 127
          %v860 = vpop.permute.xlu0 %859
          %vm861 = vcmp.ne.s32.totalorder %v798, 0
          %vm862 = vcmp.ne.s32.totalorder %v800, 0
          %vm863 = vcmp.ne.s32.totalorder %v802, 0
          %vm864 = vcmp.ne.s32.totalorder %v804, 0
          %vm865 = vcmp.ne.s32.totalorder %v806, 0
          %vm866 = vcmp.ne.s32.totalorder %v808, 0
          %vm867 = vcmp.ne.s32.totalorder %v810, 0
          %vm868 = vcmp.ne.s32.totalorder %v812, 0
          %vm869 = vcmp.ne.s32.totalorder %v814, 0
          %vm870 = vcmp.ne.s32.totalorder %v816, 0
          %vm871 = vcmp.ne.s32.totalorder %v818, 0
          %vm872 = vcmp.ne.s32.totalorder %v820, 0
          %vm873 = vcmp.ne.s32.totalorder %v822, 0
          %vm874 = vcmp.ne.s32.totalorder %v824, 0
          %vm875 = vcmp.ne.s32.totalorder %v826, 0
          %vm876 = vcmp.ne.s32.totalorder %v828, 0
          %vm877 = vcmp.ne.s32.totalorder %v830, 0
          %vm878 = vcmp.ne.s32.totalorder %v832, 0
          %vm879 = vcmp.ne.s32.totalorder %v834, 0
          %vm880 = vcmp.ne.s32.totalorder %v836, 0
          %vm881 = vcmp.ne.s32.totalorder %v838, 0
          %vm882 = vcmp.ne.s32.totalorder %v840, 0
          %vm883 = vcmp.ne.s32.totalorder %v842, 0
          %vm884 = vcmp.ne.s32.totalorder %v844, 0
          %vm885 = vcmp.ne.s32.totalorder %v846, 0
          %vm886 = vcmp.ne.s32.totalorder %v848, 0
          %vm887 = vcmp.ne.s32.totalorder %v850, 0
          %vm888 = vcmp.ne.s32.totalorder %v852, 0
          %vm889 = vcmp.ne.s32.totalorder %v854, 0
          %vm890 = vcmp.ne.s32.totalorder %v856, 0
          %vm891 = vcmp.ne.s32.totalorder %v858, 0
          %vm892 = vcmp.ne.s32.totalorder %v860, 0
          %vm893 = vmand %vm733, %vm861
          %vm894 = vmand %vm734, %vm862
          %vm895 = vmand %vm735, %vm863
          %vm896 = vmand %vm736, %vm864
          %vm897 = vmand %vm737, %vm865
          %vm898 = vmand %vm738, %vm866
          %vm899 = vmand %vm739, %vm867
          %vm900 = vmand %vm740, %vm868
          %vm901 = vmand %vm741, %vm869
          %vm902 = vmand %vm742, %vm870
          %vm903 = vmand %vm743, %vm871
          %vm904 = vmand %vm744, %vm872
          %vm905 = vmand %vm745, %vm873
          %vm906 = vmand %vm746, %vm874
          %vm907 = vmand %vm747, %vm875
          %vm908 = vmand %vm748, %vm876
          %vm909 = vmand %vm749, %vm877
          %vm910 = vmand %vm750, %vm878
          %vm911 = vmand %vm751, %vm879
          %vm912 = vmand %vm752, %vm880
          %vm913 = vmand %vm753, %vm881
          %vm914 = vmand %vm754, %vm882
          %vm915 = vmand %vm755, %vm883
          %vm916 = vmand %vm756, %vm884
          %vm917 = vmand %vm757, %vm885
          %vm918 = vmand %vm758, %vm886
          %vm919 = vmand %vm759, %vm887
          %vm920 = vmand %vm760, %vm888
          %vm921 = vmand %vm761, %vm889
          %vm922 = vmand %vm762, %vm890
          %vm923 = vmand %vm763, %vm891
          %vm924 = vmand %vm764, %vm892
          %v925 = vld [vmem:[#allocation2] sm:$0xff]
          %v926 = vld [vmem:[#allocation2 + $0x8] sm:$0xff]
          %v927 = vld [vmem:[#allocation2 + $0x10] sm:$0xff]
          %v928 = vld [vmem:[#allocation2 + $0x18] sm:$0xff]
          %v929 = vld [vmem:[#allocation2 + $0x20] sm:$0xff]
          %v930 = vld [vmem:[#allocation2 + $0x28] sm:$0xff]
          %v931 = vld [vmem:[#allocation2 + $0x30] sm:$0xff]
          %v932 = vld [vmem:[#allocation2 + $0x38] sm:$0xff]
          %v933 = vld [vmem:[#allocation2 + $0x40] sm:$0xff]
          %v934 = vld [vmem:[#allocation2 + $0x48] sm:$0xff]
          %v935 = vld [vmem:[#allocation2 + $0x50] sm:$0xff]
          %v936 = vld [vmem:[#allocation2 + $0x58] sm:$0xff]
          %v937 = vld [vmem:[#allocation2 + $0x60] sm:$0xff]
          %v938 = vld [vmem:[#allocation2 + $0x68] sm:$0xff]
          %v939 = vld [vmem:[#allocation2 + $0x70] sm:$0xff]
          %v940 = vld [vmem:[#allocation2 + $0x78] sm:$0xff]
          %v941 = vld [vmem:[#allocation2 + $0x80] sm:$0xff]
          %v942 = vld [vmem:[#allocation2 + $0x88] sm:$0xff]
          %v943 = vld [vmem:[#allocation2 + $0x90] sm:$0xff]
          %v944 = vld [vmem:[#allocation2 + $0x98] sm:$0xff]
          %v945 = vld [vmem:[#allocation2 + $0xa0] sm:$0xff]
          %v946 = vld [vmem:[#allocation2 + $0xa8] sm:$0xff]
          %v947 = vld [vmem:[#allocation2 + $0xb0] sm:$0xff]
          %v948 = vld [vmem:[#allocation2 + $0xb8] sm:$0xff]
          %v949 = vld [vmem:[#allocation2 + $0xc0] sm:$0xff]
          %v950 = vld [vmem:[#allocation2 + $0xc8] sm:$0xff]
          %v951 = vld [vmem:[#allocation2 + $0xd0] sm:$0xff]
          %v952 = vld [vmem:[#allocation2 + $0xd8] sm:$0xff]
          %v953 = vld [vmem:[#allocation2 + $0xe0] sm:$0xff]
          %v954 = vld [vmem:[#allocation2 + $0xe8] sm:$0xff]
          %v955 = vld [vmem:[#allocation2 + $0xf0] sm:$0xff]
          %v956 = vld [vmem:[#allocation2 + $0xf8] sm:$0xff]
          %v957 = vld [vmem:[#allocation2 + $0x100] sm:$0xff]
          %v958 = vld [vmem:[#allocation2 + $0x108] sm:$0xff]
          %v959 = vld [vmem:[#allocation2 + $0x110] sm:$0xff]
          %v960 = vld [vmem:[#allocation2 + $0x118] sm:$0xff]
          %v961 = vld [vmem:[#allocation2 + $0x120] sm:$0xff]
          %v962 = vld [vmem:[#allocation2 + $0x128] sm:$0xff]
          %v963 = vld [vmem:[#allocation2 + $0x130] sm:$0xff]
          %v964 = vld [vmem:[#allocation2 + $0x138] sm:$0xff]
          %v965 = vld [vmem:[#allocation2 + $0x140] sm:$0xff]
          %v966 = vld [vmem:[#allocation2 + $0x148] sm:$0xff]
          %v967 = vld [vmem:[#allocation2 + $0x150] sm:$0xff]
          %v968 = vld [vmem:[#allocation2 + $0x158] sm:$0xff]
          %v969 = vld [vmem:[#allocation2 + $0x160] sm:$0xff]
          %v970 = vld [vmem:[#allocation2 + $0x168] sm:$0xff]
          %v971 = vld [vmem:[#allocation2 + $0x170] sm:$0xff]
          %v972 = vld [vmem:[#allocation2 + $0x178] sm:$0xff]
          %v973 = vld [vmem:[#allocation2 + $0x180] sm:$0xff]
          %v974 = vld [vmem:[#allocation2 + $0x188] sm:$0xff]
          %v975 = vld [vmem:[#allocation2 + $0x190] sm:$0xff]
          %v976 = vld [vmem:[#allocation2 + $0x198] sm:$0xff]
          %v977 = vld [vmem:[#allocation2 + $0x1a0] sm:$0xff]
          %v978 = vld [vmem:[#allocation2 + $0x1a8] sm:$0xff]
          %v979 = vld [vmem:[#allocation2 + $0x1b0] sm:$0xff]
          %v980 = vld [vmem:[#allocation2 + $0x1b8] sm:$0xff]
          %v981 = vld [vmem:[#allocation2 + $0x1c0] sm:$0xff]
          %v982 = vld [vmem:[#allocation2 + $0x1c8] sm:$0xff]
          %v983 = vld [vmem:[#allocation2 + $0x1d0] sm:$0xff]
          %v984 = vld [vmem:[#allocation2 + $0x1d8] sm:$0xff]
          %v985 = vld [vmem:[#allocation2 + $0x1e0] sm:$0xff]
          %v986 = vld [vmem:[#allocation2 + $0x1e8] sm:$0xff]
          %v987 = vld [vmem:[#allocation2 + $0x1f0] sm:$0xff]
          %v988 = vld [vmem:[#allocation2 + $0x1f8] sm:$0xff]
          %v989 = vld [vmem:[%s215] sm:$0xff]
          %v990 = vsub.f32 1.0, %v381
          %v991 = vsub.f32 1.0, %v382
          %v992 = vsub.f32 1.0, %v383
          %v993 = vsub.f32 1.0, %v384
          %v994 = vsub.f32 1.0, %v385
          %v995 = vsub.f32 1.0, %v386
          %v996 = vsub.f32 1.0, %v387
          %v997 = vsub.f32 1.0, %v388
          %v998 = vsub.f32 1.0, %v389
          %v999 = vsub.f32 1.0, %v390
          %v1000 = vsub.f32 1.0, %v391
          %v1001 = vsub.f32 1.0, %v392
          %v1002 = vsub.f32 1.0, %v393
          %v1003 = vsub.f32 1.0, %v394
          %v1004 = vsub.f32 1.0, %v395
          %v1005 = vsub.f32 1.0, %v396
          %v1006 = vsub.f32 1.0, %v397
          %v1007 = vsub.f32 1.0, %v398
          %v1008 = vsub.f32 1.0, %v399
          %v1009 = vsub.f32 1.0, %v400
          %v1010 = vsub.f32 1.0, %v401
          %v1011 = vsub.f32 1.0, %v402
          %v1012 = vsub.f32 1.0, %v403
          %v1013 = vsub.f32 1.0, %v404
          %v1014 = vsub.f32 1.0, %v405
          %v1015 = vsub.f32 1.0, %v406
          %v1016 = vsub.f32 1.0, %v407
          %v1017 = vsub.f32 1.0, %v408
          %v1018 = vsub.f32 1.0, %v409
          %v1019 = vsub.f32 1.0, %v410
          %v1020 = vsub.f32 1.0, %v411
          %v1021 = vsub.f32 1.0, %v412
          %vm1022 = vcmp.ge.s32.totalorder %v477, 0
          %vm1023 = vcmp.ge.s32.totalorder %v478, 0
          %vm1024 = vcmp.ge.s32.totalorder %v479, 0
          %vm1025 = vcmp.ge.s32.totalorder %v480, 0
          %vm1026 = vcmp.ge.s32.totalorder %v481, 0
          %vm1027 = vcmp.ge.s32.totalorder %v482, 0
          %vm1028 = vcmp.ge.s32.totalorder %v483, 0
          %vm1029 = vcmp.ge.s32.totalorder %v484, 0
          %vm1030 = vcmp.ge.s32.totalorder %v485, 0
          %vm1031 = vcmp.ge.s32.totalorder %v486, 0
          %vm1032 = vcmp.ge.s32.totalorder %v487, 0
          %vm1033 = vcmp.ge.s32.totalorder %v488, 0
          %vm1034 = vcmp.ge.s32.totalorder %v489, 0
          %vm1035 = vcmp.ge.s32.totalorder %v490, 0
          %vm1036 = vcmp.ge.s32.totalorder %v491, 0
          %vm1037 = vcmp.ge.s32.totalorder %v492, 0
          %vm1038 = vcmp.ge.s32.totalorder %v493, 0
          %vm1039 = vcmp.ge.s32.totalorder %v494, 0
          %vm1040 = vcmp.ge.s32.totalorder %v495, 0
          %vm1041 = vcmp.ge.s32.totalorder %v496, 0
          %vm1042 = vcmp.ge.s32.totalorder %v497, 0
          %vm1043 = vcmp.ge.s32.totalorder %v498, 0
          %vm1044 = vcmp.ge.s32.totalorder %v499, 0
          %vm1045 = vcmp.ge.s32.totalorder %v500, 0
          %vm1046 = vcmp.ge.s32.totalorder %v501, 0
          %vm1047 = vcmp.ge.s32.totalorder %v502, 0
          %vm1048 = vcmp.ge.s32.totalorder %v503, 0
          %vm1049 = vcmp.ge.s32.totalorder %v504, 0
          %vm1050 = vcmp.ge.s32.totalorder %v505, 0
          %vm1051 = vcmp.ge.s32.totalorder %v506, 0
          %vm1052 = vcmp.ge.s32.totalorder %v507, 0
          %vm1053 = vcmp.ge.s32.totalorder %v508, 0
          %vm1054 = vcmp.lt.s32.totalorder %v477, 16
          %vm1055 = vcmp.lt.s32.totalorder %v478, 16
          %vm1056 = vcmp.lt.s32.totalorder %v479, 16
          %vm1057 = vcmp.lt.s32.totalorder %v480, 16
          %vm1058 = vcmp.lt.s32.totalorder %v481, 16
          %vm1059 = vcmp.lt.s32.totalorder %v482, 16
          %vm1060 = vcmp.lt.s32.totalorder %v483, 16
          %vm1061 = vcmp.lt.s32.totalorder %v484, 16
          %vm1062 = vcmp.lt.s32.totalorder %v485, 16
          %vm1063 = vcmp.lt.s32.totalorder %v486, 16
          %vm1064 = vcmp.lt.s32.totalorder %v487, 16
          %vm1065 = vcmp.lt.s32.totalorder %v488, 16
          %vm1066 = vcmp.lt.s32.totalorder %v489, 16
          %vm1067 = vcmp.lt.s32.totalorder %v490, 16
          %vm1068 = vcmp.lt.s32.totalorder %v491, 16
          %vm1069 = vcmp.lt.s32.totalorder %v492, 16
          %vm1070 = vcmp.lt.s32.totalorder %v493, 16
          %vm1071 = vcmp.lt.s32.totalorder %v494, 16
          %vm1072 = vcmp.lt.s32.totalorder %v495, 16
          %vm1073 = vcmp.lt.s32.totalorder %v496, 16
          %vm1074 = vcmp.lt.s32.totalorder %v497, 16
          %vm1075 = vcmp.lt.s32.totalorder %v498, 16
          %vm1076 = vcmp.lt.s32.totalorder %v499, 16
          %vm1077 = vcmp.lt.s32.totalorder %v500, 16
          %vm1078 = vcmp.lt.s32.totalorder %v501, 16
          %vm1079 = vcmp.lt.s32.totalorder %v502, 16
          %vm1080 = vcmp.lt.s32.totalorder %v503, 16
          %vm1081 = vcmp.lt.s32.totalorder %v504, 16
          %vm1082 = vcmp.lt.s32.totalorder %v505, 16
          %vm1083 = vcmp.lt.s32.totalorder %v506, 16
          %vm1084 = vcmp.lt.s32.totalorder %v507, 16
          %vm1085 = vcmp.lt.s32.totalorder %v508, 16
          %vm1086 = vmand %vm1022, %vm1054
          %vm1087 = vmand %vm1023, %vm1055
          %vm1088 = vmand %vm1024, %vm1056
          %vm1089 = vmand %vm1025, %vm1057
          %vm1090 = vmand %vm1026, %vm1058
          %vm1091 = vmand %vm1027, %vm1059
          %vm1092 = vmand %vm1028, %vm1060
          %vm1093 = vmand %vm1029, %vm1061
          %vm1094 = vmand %vm1030, %vm1062
          %vm1095 = vmand %vm1031, %vm1063
          %vm1096 = vmand %vm1032, %vm1064
          %vm1097 = vmand %vm1033, %vm1065
          %vm1098 = vmand %vm1034, %vm1066
          %vm1099 = vmand %vm1035, %vm1067
          %vm1100 = vmand %vm1036, %vm1068
          %vm1101 = vmand %vm1037, %vm1069
          %vm1102 = vmand %vm1038, %vm1070
          %vm1103 = vmand %vm1039, %vm1071
          %vm1104 = vmand %vm1040, %vm1072
          %vm1105 = vmand %vm1041, %vm1073
          %vm1106 = vmand %vm1042, %vm1074
          %vm1107 = vmand %vm1043, %vm1075
          %vm1108 = vmand %vm1044, %vm1076
          %vm1109 = vmand %vm1045, %vm1077
          %vm1110 = vmand %vm1046, %vm1078
          %vm1111 = vmand %vm1047, %vm1079
          %vm1112 = vmand %vm1048, %vm1080
          %vm1113 = vmand %vm1049, %vm1081
          %vm1114 = vmand %vm1050, %vm1082
          %vm1115 = vmand %vm1051, %vm1083
          %vm1116 = vmand %vm1052, %vm1084
          %vm1117 = vmand %vm1053, %vm1085
          %v1118 = vsel %vm1022, 1, 0
          %v1119 = vsel %vm1023, 1, 0
          %v1120 = vsel %vm1024, 1, 0
          %v1121 = vsel %vm1025, 1, 0
          %v1122 = vsel %vm1026, 1, 0
          %v1123 = vsel %vm1027, 1, 0
          %v1124 = vsel %vm1028, 1, 0
          %v1125 = vsel %vm1029, 1, 0
          %v1126 = vsel %vm1030, 1, 0
          %v1127 = vsel %vm1031, 1, 0
          %v1128 = vsel %vm1032, 1, 0
          %v1129 = vsel %vm1033, 1, 0
          %v1130 = vsel %vm1034, 1, 0
          %v1131 = vsel %vm1035, 1, 0
          %v1132 = vsel %vm1036, 1, 0
          %v1133 = vsel %vm1037, 1, 0
          %v1134 = vsel %vm1038, 1, 0
          %v1135 = vsel %vm1039, 1, 0
          %v1136 = vsel %vm1040, 1, 0
          %v1137 = vsel %vm1041, 1, 0
          %v1138 = vsel %vm1042, 1, 0
          %v1139 = vsel %vm1043, 1, 0
          %v1140 = vsel %vm1044, 1, 0
          %v1141 = vsel %vm1045, 1, 0
          %v1142 = vsel %vm1046, 1, 0
          %v1143 = vsel %vm1047, 1, 0
          %v1144 = vsel %vm1048, 1, 0
          %v1145 = vsel %vm1049, 1, 0
          %v1146 = vsel %vm1050, 1, 0
          %v1147 = vsel %vm1051, 1, 0
          %v1148 = vsel %vm1052, 1, 0
          %v1149 = vsel %vm1053, 1, 0
          %1150 = vrot.lane.b32.xlu0 %v1118, 127
          %v1151 = vpop.permute.xlu0 %1150
          %1152 = vrot.lane.b32.xlu0 %v1119, 127
          %v1153 = vpop.permute.xlu0 %1152
          %1154 = vrot.lane.b32.xlu0 %v1120, 127
          %v1155 = vpop.permute.xlu0 %1154
          %1156 = vrot.lane.b32.xlu0 %v1121, 127
          %v1157 = vpop.permute.xlu0 %1156
          %1158 = vrot.lane.b32.xlu0 %v1122, 127
          %v1159 = vpop.permute.xlu0 %1158
          %1160 = vrot.lane.b32.xlu0 %v1123, 127
          %v1161 = vpop.permute.xlu0 %1160
          %1162 = vrot.lane.b32.xlu0 %v1124, 127
          %v1163 = vpop.permute.xlu0 %1162
          %1164 = vrot.lane.b32.xlu0 %v1125, 127
          %v1165 = vpop.permute.xlu0 %1164
          %1166 = vrot.lane.b32.xlu0 %v1126, 127
          %v1167 = vpop.permute.xlu0 %1166
          %1168 = vrot.lane.b32.xlu0 %v1127, 127
          %v1169 = vpop.permute.xlu0 %1168
          %1170 = vrot.lane.b32.xlu0 %v1128, 127
          %v1171 = vpop.permute.xlu0 %1170
          %1172 = vrot.lane.b32.xlu0 %v1129, 127
          %v1173 = vpop.permute.xlu0 %1172
          %1174 = vrot.lane.b32.xlu0 %v1130, 127
          %v1175 = vpop.permute.xlu0 %1174
          %1176 = vrot.lane.b32.xlu0 %v1131, 127
          %v1177 = vpop.permute.xlu0 %1176
          %1178 = vrot.lane.b32.xlu0 %v1132, 127
          %v1179 = vpop.permute.xlu0 %1178
          %1180 = vrot.lane.b32.xlu0 %v1133, 127
          %v1181 = vpop.permute.xlu0 %1180
          %1182 = vrot.lane.b32.xlu0 %v1134, 127
          %v1183 = vpop.permute.xlu0 %1182
          %1184 = vrot.lane.b32.xlu0 %v1135, 127
          %v1185 = vpop.permute.xlu0 %1184
          %1186 = vrot.lane.b32.xlu0 %v1136, 127
          %v1187 = vpop.permute.xlu0 %1186
          %1188 = vrot.lane.b32.xlu0 %v1137, 127
          %v1189 = vpop.permute.xlu0 %1188
          %1190 = vrot.lane.b32.xlu0 %v1138, 127
          %v1191 = vpop.permute.xlu0 %1190
          %1192 = vrot.lane.b32.xlu0 %v1139, 127
          %v1193 = vpop.permute.xlu0 %1192
          %1194 = vrot.lane.b32.xlu0 %v1140, 127
          %v1195 = vpop.permute.xlu0 %1194
          %1196 = vrot.lane.b32.xlu0 %v1141, 127
          %v1197 = vpop.permute.xlu0 %1196
          %1198 = vrot.lane.b32.xlu0 %v1142, 127
          %v1199 = vpop.permute.xlu0 %1198
          %1200 = vrot.lane.b32.xlu0 %v1143, 127
          %v1201 = vpop.permute.xlu0 %1200
          %1202 = vrot.lane.b32.xlu0 %v1144, 127
          %v1203 = vpop.permute.xlu0 %1202
          %1204 = vrot.lane.b32.xlu0 %v1145, 127
          %v1205 = vpop.permute.xlu0 %1204
          %1206 = vrot.lane.b32.xlu0 %v1146, 127
          %v1207 = vpop.permute.xlu0 %1206
          %1208 = vrot.lane.b32.xlu0 %v1147, 127
          %v1209 = vpop.permute.xlu0 %1208
          %1210 = vrot.lane.b32.xlu0 %v1148, 127
          %v1211 = vpop.permute.xlu0 %1210
          %1212 = vrot.lane.b32.xlu0 %v1149, 127
          %v1213 = vpop.permute.xlu0 %1212
          %vm1214 = vcmp.ne.s32.totalorder %v1151, 0
          %vm1215 = vcmp.ne.s32.totalorder %v1153, 0
          %vm1216 = vcmp.ne.s32.totalorder %v1155, 0
          %vm1217 = vcmp.ne.s32.totalorder %v1157, 0
          %vm1218 = vcmp.ne.s32.totalorder %v1159, 0
          %vm1219 = vcmp.ne.s32.totalorder %v1161, 0
          %vm1220 = vcmp.ne.s32.totalorder %v1163, 0
          %vm1221 = vcmp.ne.s32.totalorder %v1165, 0
          %vm1222 = vcmp.ne.s32.totalorder %v1167, 0
          %vm1223 = vcmp.ne.s32.totalorder %v1169, 0
          %vm1224 = vcmp.ne.s32.totalorder %v1171, 0
          %vm1225 = vcmp.ne.s32.totalorder %v1173, 0
          %vm1226 = vcmp.ne.s32.totalorder %v1175, 0
          %vm1227 = vcmp.ne.s32.totalorder %v1177, 0
          %vm1228 = vcmp.ne.s32.totalorder %v1179, 0
          %vm1229 = vcmp.ne.s32.totalorder %v1181, 0
          %vm1230 = vcmp.ne.s32.totalorder %v1183, 0
          %vm1231 = vcmp.ne.s32.totalorder %v1185, 0
          %vm1232 = vcmp.ne.s32.totalorder %v1187, 0
          %vm1233 = vcmp.ne.s32.totalorder %v1189, 0
          %vm1234 = vcmp.ne.s32.totalorder %v1191, 0
          %vm1235 = vcmp.ne.s32.totalorder %v1193, 0
          %vm1236 = vcmp.ne.s32.totalorder %v1195, 0
          %vm1237 = vcmp.ne.s32.totalorder %v1197, 0
          %vm1238 = vcmp.ne.s32.totalorder %v1199, 0
          %vm1239 = vcmp.ne.s32.totalorder %v1201, 0
          %vm1240 = vcmp.ne.s32.totalorder %v1203, 0
          %vm1241 = vcmp.ne.s32.totalorder %v1205, 0
          %vm1242 = vcmp.ne.s32.totalorder %v1207, 0
          %vm1243 = vcmp.ne.s32.totalorder %v1209, 0
          %vm1244 = vcmp.ne.s32.totalorder %v1211, 0
          %vm1245 = vcmp.ne.s32.totalorder %v1213, 0
          %vm1246 = vmand %vm1086, %vm1214
          %vm1247 = vmand %vm1087, %vm1215
          %vm1248 = vmand %vm1088, %vm1216
          %vm1249 = vmand %vm1089, %vm1217
          %vm1250 = vmand %vm1090, %vm1218
          %vm1251 = vmand %vm1091, %vm1219
          %vm1252 = vmand %vm1092, %vm1220
          %vm1253 = vmand %vm1093, %vm1221
          %vm1254 = vmand %vm1094, %vm1222
          %vm1255 = vmand %vm1095, %vm1223
          %vm1256 = vmand %vm1096, %vm1224
          %vm1257 = vmand %vm1097, %vm1225
          %vm1258 = vmand %vm1098, %vm1226
          %vm1259 = vmand %vm1099, %vm1227
          %vm1260 = vmand %vm1100, %vm1228
          %vm1261 = vmand %vm1101, %vm1229
          %vm1262 = vmand %vm1102, %vm1230
          %vm1263 = vmand %vm1103, %vm1231
          %vm1264 = vmand %vm1104, %vm1232
          %vm1265 = vmand %vm1105, %vm1233
          %vm1266 = vmand %vm1106, %vm1234
          %vm1267 = vmand %vm1107, %vm1235
          %vm1268 = vmand %vm1108, %vm1236
          %vm1269 = vmand %vm1109, %vm1237
          %vm1270 = vmand %vm1110, %vm1238
          %vm1271 = vmand %vm1111, %vm1239
          %vm1272 = vmand %vm1112, %vm1240
          %vm1273 = vmand %vm1113, %vm1241
          %vm1274 = vmand %vm1114, %vm1242
          %vm1275 = vmand %vm1115, %vm1243
          %vm1276 = vmand %vm1116, %vm1244
          %vm1277 = vmand %vm1117, %vm1245
          %v1278 = vsel %vm1054, 1, 0
          %v1279 = vsel %vm1055, 1, 0
          %v1280 = vsel %vm1056, 1, 0
          %v1281 = vsel %vm1057, 1, 0
          %v1282 = vsel %vm1058, 1, 0
          %v1283 = vsel %vm1059, 1, 0
          %v1284 = vsel %vm1060, 1, 0
          %v1285 = vsel %vm1061, 1, 0
          %v1286 = vsel %vm1062, 1, 0
          %v1287 = vsel %vm1063, 1, 0
          %v1288 = vsel %vm1064, 1, 0
          %v1289 = vsel %vm1065, 1, 0
          %v1290 = vsel %vm1066, 1, 0
          %v1291 = vsel %vm1067, 1, 0
          %v1292 = vsel %vm1068, 1, 0
          %v1293 = vsel %vm1069, 1, 0
          %v1294 = vsel %vm1070, 1, 0
          %v1295 = vsel %vm1071, 1, 0
          %v1296 = vsel %vm1072, 1, 0
          %v1297 = vsel %vm1073, 1, 0
          %v1298 = vsel %vm1074, 1, 0
          %v1299 = vsel %vm1075, 1, 0
          %v1300 = vsel %vm1076, 1, 0
          %v1301 = vsel %vm1077, 1, 0
          %v1302 = vsel %vm1078, 1, 0
          %v1303 = vsel %vm1079, 1, 0
          %v1304 = vsel %vm1080, 1, 0
          %v1305 = vsel %vm1081, 1, 0
          %v1306 = vsel %vm1082, 1, 0
          %v1307 = vsel %vm1083, 1, 0
          %v1308 = vsel %vm1084, 1, 0
          %v1309 = vsel %vm1085, 1, 0
          %1310 = vrot.lane.b32.xlu0 %v1278, 127
          %v1311 = vpop.permute.xlu0 %1310
          %1312 = vrot.lane.b32.xlu0 %v1279, 127
          %v1313 = vpop.permute.xlu0 %1312
          %1314 = vrot.lane.b32.xlu0 %v1280, 127
          %v1315 = vpop.permute.xlu0 %1314
          %1316 = vrot.lane.b32.xlu0 %v1281, 127
          %v1317 = vpop.permute.xlu0 %1316
          %1318 = vrot.lane.b32.xlu0 %v1282, 127
          %v1319 = vpop.permute.xlu0 %1318
          %1320 = vrot.lane.b32.xlu0 %v1283, 127
          %v1321 = vpop.permute.xlu0 %1320
          %1322 = vrot.lane.b32.xlu0 %v1284, 127
          %v1323 = vpop.permute.xlu0 %1322
          %1324 = vrot.lane.b32.xlu0 %v1285, 127
          %v1325 = vpop.permute.xlu0 %1324
          %1326 = vrot.lane.b32.xlu0 %v1286, 127
          %v1327 = vpop.permute.xlu0 %1326
          %1328 = vrot.lane.b32.xlu0 %v1287, 127
          %v1329 = vpop.permute.xlu0 %1328
          %1330 = vrot.lane.b32.xlu0 %v1288, 127
          %v1331 = vpop.permute.xlu0 %1330
          %1332 = vrot.lane.b32.xlu0 %v1289, 127
          %v1333 = vpop.permute.xlu0 %1332
          %1334 = vrot.lane.b32.xlu0 %v1290, 127
          %v1335 = vpop.permute.xlu0 %1334
          %1336 = vrot.lane.b32.xlu0 %v1291, 127
          %v1337 = vpop.permute.xlu0 %1336
          %1338 = vrot.lane.b32.xlu0 %v1292, 127
          %v1339 = vpop.permute.xlu0 %1338
          %1340 = vrot.lane.b32.xlu0 %v1293, 127
          %v1341 = vpop.permute.xlu0 %1340
          %1342 = vrot.lane.b32.xlu0 %v1294, 127
          %v1343 = vpop.permute.xlu0 %1342
          %1344 = vrot.lane.b32.xlu0 %v1295, 127
          %v1345 = vpop.permute.xlu0 %1344
          %1346 = vrot.lane.b32.xlu0 %v1296, 127
          %v1347 = vpop.permute.xlu0 %1346
          %1348 = vrot.lane.b32.xlu0 %v1297, 127
          %v1349 = vpop.permute.xlu0 %1348
          %1350 = vrot.lane.b32.xlu0 %v1298, 127
          %v1351 = vpop.permute.xlu0 %1350
          %1352 = vrot.lane.b32.xlu0 %v1299, 127
          %v1353 = vpop.permute.xlu0 %1352
          %1354 = vrot.lane.b32.xlu0 %v1300, 127
          %v1355 = vpop.permute.xlu0 %1354
          %1356 = vrot.lane.b32.xlu0 %v1301, 127
          %v1357 = vpop.permute.xlu0 %1356
          %1358 = vrot.lane.b32.xlu0 %v1302, 127
          %v1359 = vpop.permute.xlu0 %1358
          %1360 = vrot.lane.b32.xlu0 %v1303, 127
          %v1361 = vpop.permute.xlu0 %1360
          %1362 = vrot.lane.b32.xlu0 %v1304, 127
          %v1363 = vpop.permute.xlu0 %1362
          %1364 = vrot.lane.b32.xlu0 %v1305, 127
          %v1365 = vpop.permute.xlu0 %1364
          %1366 = vrot.lane.b32.xlu0 %v1306, 127
          %v1367 = vpop.permute.xlu0 %1366
          %1368 = vrot.lane.b32.xlu0 %v1307, 127
          %v1369 = vpop.permute.xlu0 %1368
          %1370 = vrot.lane.b32.xlu0 %v1308, 127
          %v1371 = vpop.permute.xlu0 %1370
          %1372 = vrot.lane.b32.xlu0 %v1309, 127
          %v1373 = vpop.permute.xlu0 %1372
          %vm1374 = vcmp.ne.s32.totalorder %v1311, 0
          %vm1375 = vcmp.ne.s32.totalorder %v1313, 0
          %vm1376 = vcmp.ne.s32.totalorder %v1315, 0
          %vm1377 = vcmp.ne.s32.totalorder %v1317, 0
          %vm1378 = vcmp.ne.s32.totalorder %v1319, 0
          %vm1379 = vcmp.ne.s32.totalorder %v1321, 0
          %vm1380 = vcmp.ne.s32.totalorder %v1323, 0
          %vm1381 = vcmp.ne.s32.totalorder %v1325, 0
          %vm1382 = vcmp.ne.s32.totalorder %v1327, 0
          %vm1383 = vcmp.ne.s32.totalorder %v1329, 0
          %vm1384 = vcmp.ne.s32.totalorder %v1331, 0
          %vm1385 = vcmp.ne.s32.totalorder %v1333, 0
          %vm1386 = vcmp.ne.s32.totalorder %v1335, 0
          %vm1387 = vcmp.ne.s32.totalorder %v1337, 0
          %vm1388 = vcmp.ne.s32.totalorder %v1339, 0
          %vm1389 = vcmp.ne.s32.totalorder %v1341, 0
          %vm1390 = vcmp.ne.s32.totalorder %v1343, 0
          %vm1391 = vcmp.ne.s32.totalorder %v1345, 0
          %vm1392 = vcmp.ne.s32.totalorder %v1347, 0
          %vm1393 = vcmp.ne.s32.totalorder %v1349, 0
          %vm1394 = vcmp.ne.s32.totalorder %v1351, 0
          %vm1395 = vcmp.ne.s32.totalorder %v1353, 0
          %vm1396 = vcmp.ne.s32.totalorder %v1355, 0
          %vm1397 = vcmp.ne.s32.totalorder %v1357, 0
          %vm1398 = vcmp.ne.s32.totalorder %v1359, 0
          %vm1399 = vcmp.ne.s32.totalorder %v1361, 0
          %vm1400 = vcmp.ne.s32.totalorder %v1363, 0
          %vm1401 = vcmp.ne.s32.totalorder %v1365, 0
          %vm1402 = vcmp.ne.s32.totalorder %v1367, 0
          %vm1403 = vcmp.ne.s32.totalorder %v1369, 0
          %vm1404 = vcmp.ne.s32.totalorder %v1371, 0
          %vm1405 = vcmp.ne.s32.totalorder %v1373, 0
          %vm1406 = vmand %vm1246, %vm1374
          %vm1407 = vmand %vm1247, %vm1375
          %vm1408 = vmand %vm1248, %vm1376
          %vm1409 = vmand %vm1249, %vm1377
          %vm1410 = vmand %vm1250, %vm1378
          %vm1411 = vmand %vm1251, %vm1379
          %vm1412 = vmand %vm1252, %vm1380
          %vm1413 = vmand %vm1253, %vm1381
          %vm1414 = vmand %vm1254, %vm1382
          %vm1415 = vmand %vm1255, %vm1383
          %vm1416 = vmand %vm1256, %vm1384
          %vm1417 = vmand %vm1257, %vm1385
          %vm1418 = vmand %vm1258, %vm1386
          %vm1419 = vmand %vm1259, %vm1387
          %vm1420 = vmand %vm1260, %vm1388
          %vm1421 = vmand %vm1261, %vm1389
          %vm1422 = vmand %vm1262, %vm1390
          %vm1423 = vmand %vm1263, %vm1391
          %vm1424 = vmand %vm1264, %vm1392
          %vm1425 = vmand %vm1265, %vm1393
          %vm1426 = vmand %vm1266, %vm1394
          %vm1427 = vmand %vm1267, %vm1395
          %vm1428 = vmand %vm1268, %vm1396
          %vm1429 = vmand %vm1269, %vm1397
          %vm1430 = vmand %vm1270, %vm1398
          %vm1431 = vmand %vm1271, %vm1399
          %vm1432 = vmand %vm1272, %vm1400
          %vm1433 = vmand %vm1273, %vm1401
          %vm1434 = vmand %vm1274, %vm1402
          %vm1435 = vmand %vm1275, %vm1403
          %vm1436 = vmand %vm1276, %vm1404
          %vm1437 = vmand %vm1277, %vm1405
          %vm1438 = vmand %vm1406, %vm893
          %vm1439 = vmand %vm1407, %vm894
          %vm1440 = vmand %vm1408, %vm895
          %vm1441 = vmand %vm1409, %vm896
          %vm1442 = vmand %vm1410, %vm897
          %vm1443 = vmand %vm1411, %vm898
          %vm1444 = vmand %vm1412, %vm899
          %vm1445 = vmand %vm1413, %vm900
          %vm1446 = vmand %vm1414, %vm901
          %vm1447 = vmand %vm1415, %vm902
          %vm1448 = vmand %vm1416, %vm903
          %vm1449 = vmand %vm1417, %vm904
          %vm1450 = vmand %vm1418, %vm905
          %vm1451 = vmand %vm1419, %vm906
          %vm1452 = vmand %vm1420, %vm907
          %vm1453 = vmand %vm1421, %vm908
          %vm1454 = vmand %vm1422, %vm909
          %vm1455 = vmand %vm1423, %vm910
          %vm1456 = vmand %vm1424, %vm911
          %vm1457 = vmand %vm1425, %vm912
          %vm1458 = vmand %vm1426, %vm913
          %vm1459 = vmand %vm1427, %vm914
          %vm1460 = vmand %vm1428, %vm915
          %vm1461 = vmand %vm1429, %vm916
          %vm1462 = vmand %vm1430, %vm917
          %vm1463 = vmand %vm1431, %vm918
          %vm1464 = vmand %vm1432, %vm919
          %vm1465 = vmand %vm1433, %vm920
          %vm1466 = vmand %vm1434, %vm921
          %vm1467 = vmand %vm1435, %vm922
          %vm1468 = vmand %vm1436, %vm923
          %vm1469 = vmand %vm1437, %vm924
          %1502 = vrot.lane.b32.xlu0 %v990, 127
          %v1503 = vpop.permute.xlu0 %1502
          %1504 = vrot.lane.b32.xlu0 %v991, 127
          %v1505 = vpop.permute.xlu0 %1504
          %1506 = vrot.lane.b32.xlu0 %v992, 127
          %v1507 = vpop.permute.xlu0 %1506
          %1508 = vrot.lane.b32.xlu0 %v993, 127
          %v1509 = vpop.permute.xlu0 %1508
          %1510 = vrot.lane.b32.xlu0 %v994, 127
          %v1511 = vpop.permute.xlu0 %1510
          %1512 = vrot.lane.b32.xlu0 %v995, 127
          %v1513 = vpop.permute.xlu0 %1512
          %1514 = vrot.lane.b32.xlu0 %v996, 127
          %v1515 = vpop.permute.xlu0 %1514
          %1516 = vrot.lane.b32.xlu0 %v997, 127
          %v1517 = vpop.permute.xlu0 %1516
          %1518 = vrot.lane.b32.xlu0 %v998, 127
          %v1519 = vpop.permute.xlu0 %1518
          %1520 = vrot.lane.b32.xlu0 %v999, 127
          %v1521 = vpop.permute.xlu0 %1520
          %1522 = vrot.lane.b32.xlu0 %v1000, 127
          %v1523 = vpop.permute.xlu0 %1522
          %1524 = vrot.lane.b32.xlu0 %v1001, 127
          %v1525 = vpop.permute.xlu0 %1524
          %1526 = vrot.lane.b32.xlu0 %v1002, 127
          %v1527 = vpop.permute.xlu0 %1526
          %1528 = vrot.lane.b32.xlu0 %v1003, 127
          %v1529 = vpop.permute.xlu0 %1528
          %1530 = vrot.lane.b32.xlu0 %v1004, 127
          %v1531 = vpop.permute.xlu0 %1530
          %1532 = vrot.lane.b32.xlu0 %v1005, 127
          %v1533 = vpop.permute.xlu0 %1532
          %1534 = vrot.lane.b32.xlu0 %v1006, 127
          %v1535 = vpop.permute.xlu0 %1534
          %1536 = vrot.lane.b32.xlu0 %v1007, 127
          %v1537 = vpop.permute.xlu0 %1536
          %1538 = vrot.lane.b32.xlu0 %v1008, 127
          %v1539 = vpop.permute.xlu0 %1538
          %1540 = vrot.lane.b32.xlu0 %v1009, 127
          %v1541 = vpop.permute.xlu0 %1540
          %1542 = vrot.lane.b32.xlu0 %v1010, 127
          %v1543 = vpop.permute.xlu0 %1542
          %1544 = vrot.lane.b32.xlu0 %v1011, 127
          %v1545 = vpop.permute.xlu0 %1544
          %1546 = vrot.lane.b32.xlu0 %v1012, 127
          %v1547 = vpop.permute.xlu0 %1546
          %1548 = vrot.lane.b32.xlu0 %v1013, 127
          %v1549 = vpop.permute.xlu0 %1548
          %1550 = vrot.lane.b32.xlu0 %v1014, 127
          %v1551 = vpop.permute.xlu0 %1550
          %1552 = vrot.lane.b32.xlu0 %v1015, 127
          %v1553 = vpop.permute.xlu0 %1552
          %1554 = vrot.lane.b32.xlu0 %v1016, 127
          %v1555 = vpop.permute.xlu0 %1554
          %1556 = vrot.lane.b32.xlu0 %v1017, 127
          %v1557 = vpop.permute.xlu0 %1556
          %1558 = vrot.lane.b32.xlu0 %v1018, 127
          %v1559 = vpop.permute.xlu0 %1558
          %1560 = vrot.lane.b32.xlu0 %v1019, 127
          %v1561 = vpop.permute.xlu0 %1560
          %1562 = vrot.lane.b32.xlu0 %v1020, 127
          %v1563 = vpop.permute.xlu0 %1562
          %1564 = vrot.lane.b32.xlu0 %v1021, 127
          %v1565 = vpop.permute.xlu0 %1564
          %v1598 = vmul.f32 %v990, %v1503
          %v1599 = vmul.f32 %v991, %v1505
          %v1600 = vmul.f32 %v992, %v1507
          %v1601 = vmul.f32 %v993, %v1509
          %v1602 = vmul.f32 %v994, %v1511
          %v1603 = vmul.f32 %v995, %v1513
          %v1604 = vmul.f32 %v996, %v1515
          %v1605 = vmul.f32 %v997, %v1517
          %v1606 = vmul.f32 %v998, %v1519
          %v1607 = vmul.f32 %v999, %v1521
          %v1608 = vmul.f32 %v1000, %v1523
          %v1609 = vmul.f32 %v1001, %v1525
          %v1610 = vmul.f32 %v1002, %v1527
          %v1611 = vmul.f32 %v1003, %v1529
          %v1612 = vmul.f32 %v1004, %v1531
          %v1613 = vmul.f32 %v1005, %v1533
          %v1614 = vmul.f32 %v1006, %v1535
          %v1615 = vmul.f32 %v1007, %v1537
          %v1616 = vmul.f32 %v1008, %v1539
          %v1617 = vmul.f32 %v1009, %v1541
          %v1618 = vmul.f32 %v1010, %v1543
          %v1619 = vmul.f32 %v1011, %v1545
          %v1620 = vmul.f32 %v1012, %v1547
          %v1621 = vmul.f32 %v1013, %v1549
          %v1622 = vmul.f32 %v1014, %v1551
          %v1623 = vmul.f32 %v1015, %v1553
          %v1624 = vmul.f32 %v1016, %v1555
          %v1625 = vmul.f32 %v1017, %v1557
          %v1626 = vmul.f32 %v1018, %v1559
          %v1627 = vmul.f32 %v1019, %v1561
          %v1628 = vmul.f32 %v1020, %v1563
          %v1629 = vmul.f32 %v1021, %v1565
          %v1630 = vsel %vm1438, %v1598, 0.0
          %v1631 = vsel %vm1439, %v1599, 0.0
          %v1632 = vsel %vm1440, %v1600, 0.0
          %v1633 = vsel %vm1441, %v1601, 0.0
          %v1634 = vsel %vm1442, %v1602, 0.0
          %v1635 = vsel %vm1443, %v1603, 0.0
          %v1636 = vsel %vm1444, %v1604, 0.0
          %v1637 = vsel %vm1445, %v1605, 0.0
          %v1638 = vsel %vm1446, %v1606, 0.0
          %v1639 = vsel %vm1447, %v1607, 0.0
          %v1640 = vsel %vm1448, %v1608, 0.0
          %v1641 = vsel %vm1449, %v1609, 0.0
          %v1642 = vsel %vm1450, %v1610, 0.0
          %v1643 = vsel %vm1451, %v1611, 0.0
          %v1644 = vsel %vm1452, %v1612, 0.0
          %v1645 = vsel %vm1453, %v1613, 0.0
          %v1646 = vsel %vm1454, %v1614, 0.0
          %v1647 = vsel %vm1455, %v1615, 0.0
          %v1648 = vsel %vm1456, %v1616, 0.0
          %v1649 = vsel %vm1457, %v1617, 0.0
          %v1650 = vsel %vm1458, %v1618, 0.0
          %v1651 = vsel %vm1459, %v1619, 0.0
          %v1652 = vsel %vm1460, %v1620, 0.0
          %v1653 = vsel %vm1461, %v1621, 0.0
          %v1654 = vsel %vm1462, %v1622, 0.0
          %v1655 = vsel %vm1463, %v1623, 0.0
          %v1656 = vsel %vm1464, %v1624, 0.0
          %v1657 = vsel %vm1465, %v1625, 0.0
          %v1658 = vsel %vm1466, %v1626, 0.0
          %v1659 = vsel %vm1467, %v1627, 0.0
          %v1660 = vsel %vm1468, %v1628, 0.0
          %v1661 = vsel %vm1469, %v1629, 0.0
          %v1662 = vmul.u32 %v477, 16
          %v1663 = vmul.u32 %v478, 16
          %v1664 = vmul.u32 %v479, 16
          %v1665 = vmul.u32 %v480, 16
          %v1666 = vmul.u32 %v481, 16
          %v1667 = vmul.u32 %v482, 16
          %v1668 = vmul.u32 %v483, 16
          %v1669 = vmul.u32 %v484, 16
          %v1670 = vmul.u32 %v485, 16
          %v1671 = vmul.u32 %v486, 16
          %v1672 = vmul.u32 %v487, 16
          %v1673 = vmul.u32 %v488, 16
          %v1674 = vmul.u32 %v489, 16
          %v1675 = vmul.u32 %v490, 16
          %v1676 = vmul.u32 %v491, 16
          %v1677 = vmul.u32 %v492, 16
          %v1678 = vmul.u32 %v493, 16
          %v1679 = vmul.u32 %v494, 16
          %v1680 = vmul.u32 %v495, 16
          %v1681 = vmul.u32 %v496, 16
          %v1682 = vmul.u32 %v497, 16
          %v1683 = vmul.u32 %v498, 16
          %v1684 = vmul.u32 %v499, 16
          %v1685 = vmul.u32 %v500, 16
          %v1686 = vmul.u32 %v501, 16
          %v1687 = vmul.u32 %v502, 16
          %v1688 = vmul.u32 %v503, 16
          %v1689 = vmul.u32 %v504, 16
          %v1690 = vmul.u32 %v505, 16
          %v1691 = vmul.u32 %v506, 16
          %v1692 = vmul.u32 %v507, 16
          %v1693 = vmul.u32 %v508, 16
          %1694 = vrot.lane.b32.xlu0 %v477, 127
          %v1695 = vpop.permute.xlu0 %1694
          %1696 = vrot.lane.b32.xlu0 %v478, 127
          %v1697 = vpop.permute.xlu0 %1696
          %1698 = vrot.lane.b32.xlu0 %v479, 127
          %v1699 = vpop.permute.xlu0 %1698
          %1700 = vrot.lane.b32.xlu0 %v480, 127
          %v1701 = vpop.permute.xlu0 %1700
          %1702 = vrot.lane.b32.xlu0 %v481, 127
          %v1703 = vpop.permute.xlu0 %1702
          %1704 = vrot.lane.b32.xlu0 %v482, 127
          %v1705 = vpop.permute.xlu0 %1704
          %1706 = vrot.lane.b32.xlu0 %v483, 127
          %v1707 = vpop.permute.xlu0 %1706
          %1708 = vrot.lane.b32.xlu0 %v484, 127
          %v1709 = vpop.permute.xlu0 %1708
          %1710 = vrot.lane.b32.xlu0 %v485, 127
          %v1711 = vpop.permute.xlu0 %1710
          %1712 = vrot.lane.b32.xlu0 %v486, 127
          %v1713 = vpop.permute.xlu0 %1712
          %1714 = vrot.lane.b32.xlu0 %v487, 127
          %v1715 = vpop.permute.xlu0 %1714
          %1716 = vrot.lane.b32.xlu0 %v488, 127
          %v1717 = vpop.permute.xlu0 %1716
          %1718 = vrot.lane.b32.xlu0 %v489, 127
          %v1719 = vpop.permute.xlu0 %1718
          %1720 = vrot.lane.b32.xlu0 %v490, 127
          %v1721 = vpop.permute.xlu0 %1720
          %1722 = vrot.lane.b32.xlu0 %v491, 127
          %v1723 = vpop.permute.xlu0 %1722
          %1724 = vrot.lane.b32.xlu0 %v492, 127
          %v1725 = vpop.permute.xlu0 %1724
          %1726 = vrot.lane.b32.xlu0 %v493, 127
          %v1727 = vpop.permute.xlu0 %1726
          %1728 = vrot.lane.b32.xlu0 %v494, 127
          %v1729 = vpop.permute.xlu0 %1728
          %1730 = vrot.lane.b32.xlu0 %v495, 127
          %v1731 = vpop.permute.xlu0 %1730
          %1732 = vrot.lane.b32.xlu0 %v496, 127
          %v1733 = vpop.permute.xlu0 %1732
          %1734 = vrot.lane.b32.xlu0 %v497, 127
          %v1735 = vpop.permute.xlu0 %1734
          %1736 = vrot.lane.b32.xlu0 %v498, 127
          %v1737 = vpop.permute.xlu0 %1736
          %1738 = vrot.lane.b32.xlu0 %v499, 127
          %v1739 = vpop.permute.xlu0 %1738
          %1740 = vrot.lane.b32.xlu0 %v500, 127
          %v1741 = vpop.permute.xlu0 %1740
          %1742 = vrot.lane.b32.xlu0 %v501, 127
          %v1743 = vpop.permute.xlu0 %1742
          %1744 = vrot.lane.b32.xlu0 %v502, 127
          %v1745 = vpop.permute.xlu0 %1744
          %1746 = vrot.lane.b32.xlu0 %v503, 127
          %v1747 = vpop.permute.xlu0 %1746
          %1748 = vrot.lane.b32.xlu0 %v504, 127
          %v1749 = vpop.permute.xlu0 %1748
          %1750 = vrot.lane.b32.xlu0 %v505, 127
          %v1751 = vpop.permute.xlu0 %1750
          %1752 = vrot.lane.b32.xlu0 %v506, 127
          %v1753 = vpop.permute.xlu0 %1752
          %1754 = vrot.lane.b32.xlu0 %v507, 127
          %v1755 = vpop.permute.xlu0 %1754
          %1756 = vrot.lane.b32.xlu0 %v508, 127
          %v1757 = vpop.permute.xlu0 %1756
          %v1758 = vadd.s32 %v1662, %v1695
          %v1759 = vadd.s32 %v1663, %v1697
          %v1760 = vadd.s32 %v1664, %v1699
          %v1761 = vadd.s32 %v1665, %v1701
          %v1762 = vadd.s32 %v1666, %v1703
          %v1763 = vadd.s32 %v1667, %v1705
          %v1764 = vadd.s32 %v1668, %v1707
          %v1765 = vadd.s32 %v1669, %v1709
          %v1766 = vadd.s32 %v1670, %v1711
          %v1767 = vadd.s32 %v1671, %v1713
          %v1768 = vadd.s32 %v1672, %v1715
          %v1769 = vadd.s32 %v1673, %v1717
          %v1770 = vadd.s32 %v1674, %v1719
          %v1771 = vadd.s32 %v1675, %v1721
          %v1772 = vadd.s32 %v1676, %v1723
          %v1773 = vadd.s32 %v1677, %v1725
          %v1774 = vadd.s32 %v1678, %v1727
          %v1775 = vadd.s32 %v1679, %v1729
          %v1776 = vadd.s32 %v1680, %v1731
          %v1777 = vadd.s32 %v1681, %v1733
          %v1778 = vadd.s32 %v1682, %v1735
          %v1779 = vadd.s32 %v1683, %v1737
          %v1780 = vadd.s32 %v1684, %v1739
          %v1781 = vadd.s32 %v1685, %v1741
          %v1782 = vadd.s32 %v1686, %v1743
          %v1783 = vadd.s32 %v1687, %v1745
          %v1784 = vadd.s32 %v1688, %v1747
          %v1785 = vadd.s32 %v1689, %v1749
          %v1786 = vadd.s32 %v1690, %v1751
          %v1787 = vadd.s32 %v1691, %v1753
          %v1788 = vadd.s32 %v1692, %v1755
          %v1789 = vadd.s32 %v1693, %v1757
          %v1790 = vstv %s228
          %v1791 = vsub.s32 %v1758, %v1790
          %v1792 = vsub.s32 %v1759, %v1790
          %v1793 = vsub.s32 %v1760, %v1790
          %v1794 = vsub.s32 %v1761, %v1790
          %v1795 = vsub.s32 %v1762, %v1790
          %v1796 = vsub.s32 %v1763, %v1790
          %v1797 = vsub.s32 %v1764, %v1790
          %v1798 = vsub.s32 %v1765, %v1790
          %v1799 = vsub.s32 %v1766, %v1790
          %v1800 = vsub.s32 %v1767, %v1790
          %v1801 = vsub.s32 %v1768, %v1790
          %v1802 = vsub.s32 %v1769, %v1790
          %v1803 = vsub.s32 %v1770, %v1790
          %v1804 = vsub.s32 %v1771, %v1790
          %v1805 = vsub.s32 %v1772, %v1790
          %v1806 = vsub.s32 %v1773, %v1790
          %v1807 = vsub.s32 %v1774, %v1790
          %v1808 = vsub.s32 %v1775, %v1790
          %v1809 = vsub.s32 %v1776, %v1790
          %v1810 = vsub.s32 %v1777, %v1790
          %v1811 = vsub.s32 %v1778, %v1790
          %v1812 = vsub.s32 %v1779, %v1790
          %v1813 = vsub.s32 %v1780, %v1790
          %v1814 = vsub.s32 %v1781, %v1790
          %v1815 = vsub.s32 %v1782, %v1790
          %v1816 = vsub.s32 %v1783, %v1790
          %v1817 = vsub.s32 %v1784, %v1790
          %v1818 = vsub.s32 %v1785, %v1790
          %v1819 = vsub.s32 %v1786, %v1790
          %v1820 = vsub.s32 %v1787, %v1790
          %v1821 = vsub.s32 %v1788, %v1790
          %v1822 = vsub.s32 %v1789, %v1790
          %1823 = vset.pattern.permute.xlu0 0
          %1824 = vperm.xlu0 %1823, %v1791
          %v1825 = vpop.permute.xlu0 %1824
          %1826 = vset.pattern.permute.xlu0 0
          %1827 = vperm.xlu0 %1826, %v1792
          %v1828 = vpop.permute.xlu0 %1827
          %1829 = vset.pattern.permute.xlu0 0
          %1830 = vperm.xlu0 %1829, %v1793
          %v1831 = vpop.permute.xlu0 %1830
          %1832 = vset.pattern.permute.xlu0 0
          %1833 = vperm.xlu0 %1832, %v1794
          %v1834 = vpop.permute.xlu0 %1833
          %1835 = vset.pattern.permute.xlu0 0
          %1836 = vperm.xlu0 %1835, %v1795
          %v1837 = vpop.permute.xlu0 %1836
          %1838 = vset.pattern.permute.xlu0 0
          %1839 = vperm.xlu0 %1838, %v1796
          %v1840 = vpop.permute.xlu0 %1839
          %1841 = vset.pattern.permute.xlu0 0
          %1842 = vperm.xlu0 %1841, %v1797
          %v1843 = vpop.permute.xlu0 %1842
          %1844 = vset.pattern.permute.xlu0 0
          %1845 = vperm.xlu0 %1844, %v1798
          %v1846 = vpop.permute.xlu0 %1845
          %1847 = vset.pattern.permute.xlu0 0
          %1848 = vperm.xlu0 %1847, %v1799
          %v1849 = vpop.permute.xlu0 %1848
          %1850 = vset.pattern.permute.xlu0 0
          %1851 = vperm.xlu0 %1850, %v1800
          %v1852 = vpop.permute.xlu0 %1851
          %1853 = vset.pattern.permute.xlu0 0
          %1854 = vperm.xlu0 %1853, %v1801
          %v1855 = vpop.permute.xlu0 %1854
          %1856 = vset.pattern.permute.xlu0 0
          %1857 = vperm.xlu0 %1856, %v1802
          %v1858 = vpop.permute.xlu0 %1857
          %1859 = vset.pattern.permute.xlu0 0
          %1860 = vperm.xlu0 %1859, %v1803
          %v1861 = vpop.permute.xlu0 %1860
          %1862 = vset.pattern.permute.xlu0 0
          %1863 = vperm.xlu0 %1862, %v1804
          %v1864 = vpop.permute.xlu0 %1863
          %1865 = vset.pattern.permute.xlu0 0
          %1866 = vperm.xlu0 %1865, %v1805
          %v1867 = vpop.permute.xlu0 %1866
          %1868 = vset.pattern.permute.xlu0 0
          %1869 = vperm.xlu0 %1868, %v1806
          %v1870 = vpop.permute.xlu0 %1869
          %1871 = vset.pattern.permute.xlu0 0
          %1872 = vperm.xlu0 %1871, %v1807
          %v1873 = vpop.permute.xlu0 %1872
          %1874 = vset.pattern.permute.xlu0 0
          %1875 = vperm.xlu0 %1874, %v1808
          %v1876 = vpop.permute.xlu0 %1875
          %1877 = vset.pattern.permute.xlu0 0
          %1878 = vperm.xlu0 %1877, %v1809
          %v1879 = vpop.permute.xlu0 %1878
          %1880 = vset.pattern.permute.xlu0 0
          %1881 = vperm.xlu0 %1880, %v1810
          %v1882 = vpop.permute.xlu0 %1881
          %1883 = vset.pattern.permute.xlu0 0
          %1884 = vperm.xlu0 %1883, %v1811
          %v1885 = vpop.permute.xlu0 %1884
          %1886 = vset.pattern.permute.xlu0 0
          %1887 = vperm.xlu0 %1886, %v1812
          %v1888 = vpop.permute.xlu0 %1887
          %1889 = vset.pattern.permute.xlu0 0
          %1890 = vperm.xlu0 %1889, %v1813
          %v1891 = vpop.permute.xlu0 %1890
          %1892 = vset.pattern.permute.xlu0 0
          %1893 = vperm.xlu0 %1892, %v1814
          %v1894 = vpop.permute.xlu0 %1893
          %1895 = vset.pattern.permute.xlu0 0
          %1896 = vperm.xlu0 %1895, %v1815
          %v1897 = vpop.permute.xlu0 %1896
          %1898 = vset.pattern.permute.xlu0 0
          %1899 = vperm.xlu0 %1898, %v1816
          %v1900 = vpop.permute.xlu0 %1899
          %1901 = vset.pattern.permute.xlu0 0
          %1902 = vperm.xlu0 %1901, %v1817
          %v1903 = vpop.permute.xlu0 %1902
          %1904 = vset.pattern.permute.xlu0 0
          %1905 = vperm.xlu0 %1904, %v1818
          %v1906 = vpop.permute.xlu0 %1905
          %1907 = vset.pattern.permute.xlu0 0
          %1908 = vperm.xlu0 %1907, %v1819
          %v1909 = vpop.permute.xlu0 %1908
          %1910 = vset.pattern.permute.xlu0 0
          %1911 = vperm.xlu0 %1910, %v1820
          %v1912 = vpop.permute.xlu0 %1911
          %1913 = vset.pattern.permute.xlu0 0
          %1914 = vperm.xlu0 %1913, %v1821
          %v1915 = vpop.permute.xlu0 %1914
          %1916 = vset.pattern.permute.xlu0 0
          %1917 = vperm.xlu0 %1916, %v1822
          %v1918 = vpop.permute.xlu0 %1917
          %vm1919 = vcmp.eq.s32.totalorder %v925, %v1825
          %vm1920 = vcmp.eq.s32.totalorder %v926, %v1825
          %vm1921 = vcmp.eq.s32.totalorder %v927, %v1828
          %vm1922 = vcmp.eq.s32.totalorder %v928, %v1828
          %vm1923 = vcmp.eq.s32.totalorder %v929, %v1831
          %vm1924 = vcmp.eq.s32.totalorder %v930, %v1831
          %vm1925 = vcmp.eq.s32.totalorder %v931, %v1834
          %vm1926 = vcmp.eq.s32.totalorder %v932, %v1834
          %vm1927 = vcmp.eq.s32.totalorder %v933, %v1837
          %vm1928 = vcmp.eq.s32.totalorder %v934, %v1837
          %vm1929 = vcmp.eq.s32.totalorder %v935, %v1840
          %vm1930 = vcmp.eq.s32.totalorder %v936, %v1840
          %vm1931 = vcmp.eq.s32.totalorder %v937, %v1843
          %vm1932 = vcmp.eq.s32.totalorder %v938, %v1843
          %vm1933 = vcmp.eq.s32.totalorder %v939, %v1846
          %vm1934 = vcmp.eq.s32.totalorder %v940, %v1846
          %vm1935 = vcmp.eq.s32.totalorder %v941, %v1849
          %vm1936 = vcmp.eq.s32.totalorder %v942, %v1849
          %vm1937 = vcmp.eq.s32.totalorder %v943, %v1852
          %vm1938 = vcmp.eq.s32.totalorder %v944, %v1852
          %vm1939 = vcmp.eq.s32.totalorder %v945, %v1855
          %vm1940 = vcmp.eq.s32.totalorder %v946, %v1855
          %vm1941 = vcmp.eq.s32.totalorder %v947, %v1858
          %vm1942 = vcmp.eq.s32.totalorder %v948, %v1858
          %vm1943 = vcmp.eq.s32.totalorder %v949, %v1861
          %vm1944 = vcmp.eq.s32.totalorder %v950, %v1861
          %vm1945 = vcmp.eq.s32.totalorder %v951, %v1864
          %vm1946 = vcmp.eq.s32.totalorder %v952, %v1864
          %vm1947 = vcmp.eq.s32.totalorder %v953, %v1867
          %vm1948 = vcmp.eq.s32.totalorder %v954, %v1867
          %vm1949 = vcmp.eq.s32.totalorder %v955, %v1870
          %vm1950 = vcmp.eq.s32.totalorder %v956, %v1870
          %vm1951 = vcmp.eq.s32.totalorder %v957, %v1873
          %vm1952 = vcmp.eq.s32.totalorder %v958, %v1873
          %vm1953 = vcmp.eq.s32.totalorder %v959, %v1876
          %vm1954 = vcmp.eq.s32.totalorder %v960, %v1876
          %vm1955 = vcmp.eq.s32.totalorder %v961, %v1879
          %vm1956 = vcmp.eq.s32.totalorder %v962, %v1879
          %vm1957 = vcmp.eq.s32.totalorder %v963, %v1882
          %vm1958 = vcmp.eq.s32.totalorder %v964, %v1882
          %vm1959 = vcmp.eq.s32.totalorder %v965, %v1885
          %vm1960 = vcmp.eq.s32.totalorder %v966, %v1885
          %vm1961 = vcmp.eq.s32.totalorder %v967, %v1888
          %vm1962 = vcmp.eq.s32.totalorder %v968, %v1888
          %vm1963 = vcmp.eq.s32.totalorder %v969, %v1891
          %vm1964 = vcmp.eq.s32.totalorder %v970, %v1891
          %vm1965 = vcmp.eq.s32.totalorder %v971, %v1894
          %vm1966 = vcmp.eq.s32.totalorder %v972, %v1894
          %vm1967 = vcmp.eq.s32.totalorder %v973, %v1897
          %vm1968 = vcmp.eq.s32.totalorder %v974, %v1897
          %vm1969 = vcmp.eq.s32.totalorder %v975, %v1900
          %vm1970 = vcmp.eq.s32.totalorder %v976, %v1900
          %vm1971 = vcmp.eq.s32.totalorder %v977, %v1903
          %vm1972 = vcmp.eq.s32.totalorder %v978, %v1903
          %vm1973 = vcmp.eq.s32.totalorder %v979, %v1906
          %vm1974 = vcmp.eq.s32.totalorder %v980, %v1906
          %vm1975 = vcmp.eq.s32.totalorder %v981, %v1909
          %vm1976 = vcmp.eq.s32.totalorder %v982, %v1909
          %vm1977 = vcmp.eq.s32.totalorder %v983, %v1912
          %vm1978 = vcmp.eq.s32.totalorder %v984, %v1912
          %vm1979 = vcmp.eq.s32.totalorder %v985, %v1915
          %vm1980 = vcmp.eq.s32.totalorder %v986, %v1915
          %vm1981 = vcmp.eq.s32.totalorder %v987, %v1918
          %vm1982 = vcmp.eq.s32.totalorder %v988, %v1918
          %1984 = vset.pattern.permute.xlu0 0
          %1985 = vperm.xlu0 %1984, %v1630
          %v1986 = vpop.permute.xlu0 %1985
          %1989 = vset.pattern.permute.xlu0 0
          %1990 = vperm.xlu0 %1989, %v1631
          %v1991 = vpop.permute.xlu0 %1990
          %1994 = vset.pattern.permute.xlu0 0
          %1995 = vperm.xlu0 %1994, %v1632
          %v1996 = vpop.permute.xlu0 %1995
          %1999 = vset.pattern.permute.xlu0 0
          %2000 = vperm.xlu0 %1999, %v1633
          %v2001 = vpop.permute.xlu0 %2000
          %2004 = vset.pattern.permute.xlu0 0
          %2005 = vperm.xlu0 %2004, %v1634
          %v2006 = vpop.permute.xlu0 %2005
          %2009 = vset.pattern.permute.xlu0 0
          %2010 = vperm.xlu0 %2009, %v1635
          %v2011 = vpop.permute.xlu0 %2010
          %2014 = vset.pattern.permute.xlu0 0
          %2015 = vperm.xlu0 %2014, %v1636
          %v2016 = vpop.permute.xlu0 %2015
          %2019 = vset.pattern.permute.xlu0 0
          %2020 = vperm.xlu0 %2019, %v1637
          %v2021 = vpop.permute.xlu0 %2020
          %2024 = vset.pattern.permute.xlu0 0
          %2025 = vperm.xlu0 %2024, %v1638
          %v2026 = vpop.permute.xlu0 %2025
          %2029 = vset.pattern.permute.xlu0 0
          %2030 = vperm.xlu0 %2029, %v1639
          %v2031 = vpop.permute.xlu0 %2030
          %2034 = vset.pattern.permute.xlu0 0
          %2035 = vperm.xlu0 %2034, %v1640
          %v2036 = vpop.permute.xlu0 %2035
          %2039 = vset.pattern.permute.xlu0 0
          %2040 = vperm.xlu0 %2039, %v1641
          %v2041 = vpop.permute.xlu0 %2040
          %2044 = vset.pattern.permute.xlu0 0
          %2045 = vperm.xlu0 %2044, %v1642
          %v2046 = vpop.permute.xlu0 %2045
          %2049 = vset.pattern.permute.xlu0 0
          %2050 = vperm.xlu0 %2049, %v1643
          %v2051 = vpop.permute.xlu0 %2050
          %2054 = vset.pattern.permute.xlu0 0
          %2055 = vperm.xlu0 %2054, %v1644
          %v2056 = vpop.permute.xlu0 %2055
          %2059 = vset.pattern.permute.xlu0 0
          %2060 = vperm.xlu0 %2059, %v1645
          %v2061 = vpop.permute.xlu0 %2060
          %2064 = vset.pattern.permute.xlu0 0
          %2065 = vperm.xlu0 %2064, %v1646
          %v2066 = vpop.permute.xlu0 %2065
          %2069 = vset.pattern.permute.xlu0 0
          %2070 = vperm.xlu0 %2069, %v1647
          %v2071 = vpop.permute.xlu0 %2070
          %2074 = vset.pattern.permute.xlu0 0
          %2075 = vperm.xlu0 %2074, %v1648
          %v2076 = vpop.permute.xlu0 %2075
          %2079 = vset.pattern.permute.xlu0 0
          %2080 = vperm.xlu0 %2079, %v1649
          %v2081 = vpop.permute.xlu0 %2080
          %2084 = vset.pattern.permute.xlu0 0
          %2085 = vperm.xlu0 %2084, %v1650
          %v2086 = vpop.permute.xlu0 %2085
          %2089 = vset.pattern.permute.xlu0 0
          %2090 = vperm.xlu0 %2089, %v1651
          %v2091 = vpop.permute.xlu0 %2090
          %2094 = vset.pattern.permute.xlu0 0
          %2095 = vperm.xlu0 %2094, %v1652
          %v2096 = vpop.permute.xlu0 %2095
          %2099 = vset.pattern.permute.xlu0 0
          %2100 = vperm.xlu0 %2099, %v1653
          %v2101 = vpop.permute.xlu0 %2100
          %2104 = vset.pattern.permute.xlu0 0
          %2105 = vperm.xlu0 %2104, %v1654
          %v2106 = vpop.permute.xlu0 %2105
          %2109 = vset.pattern.permute.xlu0 0
          %2110 = vperm.xlu0 %2109, %v1655
          %v2111 = vpop.permute.xlu0 %2110
          %2114 = vset.pattern.permute.xlu0 0
          %2115 = vperm.xlu0 %2114, %v1656
          %v2116 = vpop.permute.xlu0 %2115
          %2119 = vset.pattern.permute.xlu0 0
          %2120 = vperm.xlu0 %2119, %v1657
          %v2121 = vpop.permute.xlu0 %2120
          %2124 = vset.pattern.permute.xlu0 0
          %2125 = vperm.xlu0 %2124, %v1658
          %v2126 = vpop.permute.xlu0 %2125
          %2129 = vset.pattern.permute.xlu0 0
          %2130 = vperm.xlu0 %2129, %v1659
          %v2131 = vpop.permute.xlu0 %2130
          %2134 = vset.pattern.permute.xlu0 0
          %2135 = vperm.xlu0 %2134, %v1660
          %v2136 = vpop.permute.xlu0 %2135
          %2139 = vset.pattern.permute.xlu0 0
          %2140 = vperm.xlu0 %2139, %v1661
          %v2141 = vpop.permute.xlu0 %2140
          %v2143 = vsel %vm1919, %v1986, 0.0
          %v2144 = vsel %vm1920, %v1986, 0.0
          %v2145 = vsel %vm1921, %v1991, 0.0
          %v2146 = vsel %vm1922, %v1991, 0.0
          %v2147 = vsel %vm1923, %v1996, 0.0
          %v2148 = vsel %vm1924, %v1996, 0.0
          %v2149 = vsel %vm1925, %v2001, 0.0
          %v2150 = vsel %vm1926, %v2001, 0.0
          %v2151 = vsel %vm1927, %v2006, 0.0
          %v2152 = vsel %vm1928, %v2006, 0.0
          %v2153 = vsel %vm1929, %v2011, 0.0
          %v2154 = vsel %vm1930, %v2011, 0.0
          %v2155 = vsel %vm1931, %v2016, 0.0
          %v2156 = vsel %vm1932, %v2016, 0.0
          %v2157 = vsel %vm1933, %v2021, 0.0
          %v2158 = vsel %vm1934, %v2021, 0.0
          %v2159 = vsel %vm1935, %v2026, 0.0
          %v2160 = vsel %vm1936, %v2026, 0.0
          %v2161 = vsel %vm1937, %v2031, 0.0
          %v2162 = vsel %vm1938, %v2031, 0.0
          %v2163 = vsel %vm1939, %v2036, 0.0
          %v2164 = vsel %vm1940, %v2036, 0.0
          %v2165 = vsel %vm1941, %v2041, 0.0
          %v2166 = vsel %vm1942, %v2041, 0.0
          %v2167 = vsel %vm1943, %v2046, 0.0
          %v2168 = vsel %vm1944, %v2046, 0.0
          %v2169 = vsel %vm1945, %v2051, 0.0
          %v2170 = vsel %vm1946, %v2051, 0.0
          %v2171 = vsel %vm1947, %v2056, 0.0
          %v2172 = vsel %vm1948, %v2056, 0.0
          %v2173 = vsel %vm1949, %v2061, 0.0
          %v2174 = vsel %vm1950, %v2061, 0.0
          %v2175 = vsel %vm1951, %v2066, 0.0
          %v2176 = vsel %vm1952, %v2066, 0.0
          %v2177 = vsel %vm1953, %v2071, 0.0
          %v2178 = vsel %vm1954, %v2071, 0.0
          %v2179 = vsel %vm1955, %v2076, 0.0
          %v2180 = vsel %vm1956, %v2076, 0.0
          %v2181 = vsel %vm1957, %v2081, 0.0
          %v2182 = vsel %vm1958, %v2081, 0.0
          %v2183 = vsel %vm1959, %v2086, 0.0
          %v2184 = vsel %vm1960, %v2086, 0.0
          %v2185 = vsel %vm1961, %v2091, 0.0
          %v2186 = vsel %vm1962, %v2091, 0.0
          %v2187 = vsel %vm1963, %v2096, 0.0
          %v2188 = vsel %vm1964, %v2096, 0.0
          %v2189 = vsel %vm1965, %v2101, 0.0
          %v2190 = vsel %vm1966, %v2101, 0.0
          %v2191 = vsel %vm1967, %v2106, 0.0
          %v2192 = vsel %vm1968, %v2106, 0.0
          %v2193 = vsel %vm1969, %v2111, 0.0
          %v2194 = vsel %vm1970, %v2111, 0.0
          %v2195 = vsel %vm1971, %v2116, 0.0
          %v2196 = vsel %vm1972, %v2116, 0.0
          %v2197 = vsel %vm1973, %v2121, 0.0
          %v2198 = vsel %vm1974, %v2121, 0.0
          %v2199 = vsel %vm1975, %v2126, 0.0
          %v2200 = vsel %vm1976, %v2126, 0.0
          %v2201 = vsel %vm1977, %v2131, 0.0
          %v2202 = vsel %vm1978, %v2131, 0.0
          %v2203 = vsel %vm1979, %v2136, 0.0
          %v2204 = vsel %vm1980, %v2136, 0.0
          %v2205 = vsel %vm1981, %v2141, 0.0
          %v2206 = vsel %vm1982, %v2141, 0.0
          %v2207 = vadd.s32 %v477, 1
          %v2208 = vadd.s32 %v478, 1
          %v2209 = vadd.s32 %v479, 1
          %v2210 = vadd.s32 %v480, 1
          %v2211 = vadd.s32 %v481, 1
          %v2212 = vadd.s32 %v482, 1
          %v2213 = vadd.s32 %v483, 1
          %v2214 = vadd.s32 %v484, 1
          %v2215 = vadd.s32 %v485, 1
          %v2216 = vadd.s32 %v486, 1
          %v2217 = vadd.s32 %v487, 1
          %v2218 = vadd.s32 %v488, 1
          %v2219 = vadd.s32 %v489, 1
          %v2220 = vadd.s32 %v490, 1
          %v2221 = vadd.s32 %v491, 1
          %v2222 = vadd.s32 %v492, 1
          %v2223 = vadd.s32 %v493, 1
          %v2224 = vadd.s32 %v494, 1
          %v2225 = vadd.s32 %v495, 1
          %v2226 = vadd.s32 %v496, 1
          %v2227 = vadd.s32 %v497, 1
          %v2228 = vadd.s32 %v498, 1
          %v2229 = vadd.s32 %v499, 1
          %v2230 = vadd.s32 %v500, 1
          %v2231 = vadd.s32 %v501, 1
          %v2232 = vadd.s32 %v502, 1
          %v2233 = vadd.s32 %v503, 1
          %v2234 = vadd.s32 %v504, 1
          %v2235 = vadd.s32 %v505, 1
          %v2236 = vadd.s32 %v506, 1
          %v2237 = vadd.s32 %v507, 1
          %v2238 = vadd.s32 %v508, 1
          %vm2239 = vcmp.ge.s32.totalorder %v2207, 0
          %vm2240 = vcmp.ge.s32.totalorder %v2208, 0
          %vm2241 = vcmp.ge.s32.totalorder %v2209, 0
          %vm2242 = vcmp.ge.s32.totalorder %v2210, 0
          %vm2243 = vcmp.ge.s32.totalorder %v2211, 0
          %vm2244 = vcmp.ge.s32.totalorder %v2212, 0
          %vm2245 = vcmp.ge.s32.totalorder %v2213, 0
          %vm2246 = vcmp.ge.s32.totalorder %v2214, 0
          %vm2247 = vcmp.ge.s32.totalorder %v2215, 0
          %vm2248 = vcmp.ge.s32.totalorder %v2216, 0
          %vm2249 = vcmp.ge.s32.totalorder %v2217, 0
          %vm2250 = vcmp.ge.s32.totalorder %v2218, 0
          %vm2251 = vcmp.ge.s32.totalorder %v2219, 0
          %vm2252 = vcmp.ge.s32.totalorder %v2220, 0
          %vm2253 = vcmp.ge.s32.totalorder %v2221, 0
          %vm2254 = vcmp.ge.s32.totalorder %v2222, 0
          %vm2255 = vcmp.ge.s32.totalorder %v2223, 0
          %vm2256 = vcmp.ge.s32.totalorder %v2224, 0
          %vm2257 = vcmp.ge.s32.totalorder %v2225, 0
          %vm2258 = vcmp.ge.s32.totalorder %v2226, 0
          %vm2259 = vcmp.ge.s32.totalorder %v2227, 0
          %vm2260 = vcmp.ge.s32.totalorder %v2228, 0
          %vm2261 = vcmp.ge.s32.totalorder %v2229, 0
          %vm2262 = vcmp.ge.s32.totalorder %v2230, 0
          %vm2263 = vcmp.ge.s32.totalorder %v2231, 0
          %vm2264 = vcmp.ge.s32.totalorder %v2232, 0
          %vm2265 = vcmp.ge.s32.totalorder %v2233, 0
          %vm2266 = vcmp.ge.s32.totalorder %v2234, 0
          %vm2267 = vcmp.ge.s32.totalorder %v2235, 0
          %vm2268 = vcmp.ge.s32.totalorder %v2236, 0
          %vm2269 = vcmp.ge.s32.totalorder %v2237, 0
          %vm2270 = vcmp.ge.s32.totalorder %v2238, 0
          %v2271 = vsel %vm2239, 1, 0
          %v2272 = vsel %vm2240, 1, 0
          %v2273 = vsel %vm2241, 1, 0
          %v2274 = vsel %vm2242, 1, 0
          %v2275 = vsel %vm2243, 1, 0
          %v2276 = vsel %vm2244, 1, 0
          %v2277 = vsel %vm2245, 1, 0
          %v2278 = vsel %vm2246, 1, 0
          %v2279 = vsel %vm2247, 1, 0
          %v2280 = vsel %vm2248, 1, 0
          %v2281 = vsel %vm2249, 1, 0
          %v2282 = vsel %vm2250, 1, 0
          %v2283 = vsel %vm2251, 1, 0
          %v2284 = vsel %vm2252, 1, 0
          %v2285 = vsel %vm2253, 1, 0
          %v2286 = vsel %vm2254, 1, 0
          %v2287 = vsel %vm2255, 1, 0
          %v2288 = vsel %vm2256, 1, 0
          %v2289 = vsel %vm2257, 1, 0
          %v2290 = vsel %vm2258, 1, 0
          %v2291 = vsel %vm2259, 1, 0
          %v2292 = vsel %vm2260, 1, 0
          %v2293 = vsel %vm2261, 1, 0
          %v2294 = vsel %vm2262, 1, 0
          %v2295 = vsel %vm2263, 1, 0
          %v2296 = vsel %vm2264, 1, 0
          %v2297 = vsel %vm2265, 1, 0
          %v2298 = vsel %vm2266, 1, 0
          %v2299 = vsel %vm2267, 1, 0
          %v2300 = vsel %vm2268, 1, 0
          %v2301 = vsel %vm2269, 1, 0
          %v2302 = vsel %vm2270, 1, 0
          %2303 = vrot.lane.b32.xlu0 %v2271, 127
          %v2304 = vpop.permute.xlu0 %2303
          %2305 = vrot.lane.b32.xlu0 %v2272, 127
          %v2306 = vpop.permute.xlu0 %2305
          %2307 = vrot.lane.b32.xlu0 %v2273, 127
          %v2308 = vpop.permute.xlu0 %2307
          %2309 = vrot.lane.b32.xlu0 %v2274, 127
          %v2310 = vpop.permute.xlu0 %2309
          %2311 = vrot.lane.b32.xlu0 %v2275, 127
          %v2312 = vpop.permute.xlu0 %2311
          %2313 = vrot.lane.b32.xlu0 %v2276, 127
          %v2314 = vpop.permute.xlu0 %2313
          %2315 = vrot.lane.b32.xlu0 %v2277, 127
          %v2316 = vpop.permute.xlu0 %2315
          %2317 = vrot.lane.b32.xlu0 %v2278, 127
          %v2318 = vpop.permute.xlu0 %2317
          %2319 = vrot.lane.b32.xlu0 %v2279, 127
          %v2320 = vpop.permute.xlu0 %2319
          %2321 = vrot.lane.b32.xlu0 %v2280, 127
          %v2322 = vpop.permute.xlu0 %2321
          %2323 = vrot.lane.b32.xlu0 %v2281, 127
          %v2324 = vpop.permute.xlu0 %2323
          %2325 = vrot.lane.b32.xlu0 %v2282, 127
          %v2326 = vpop.permute.xlu0 %2325
          %2327 = vrot.lane.b32.xlu0 %v2283, 127
          %v2328 = vpop.permute.xlu0 %2327
          %2329 = vrot.lane.b32.xlu0 %v2284, 127
          %v2330 = vpop.permute.xlu0 %2329
          %2331 = vrot.lane.b32.xlu0 %v2285, 127
          %v2332 = vpop.permute.xlu0 %2331
          %2333 = vrot.lane.b32.xlu0 %v2286, 127
          %v2334 = vpop.permute.xlu0 %2333
          %2335 = vrot.lane.b32.xlu0 %v2287, 127
          %v2336 = vpop.permute.xlu0 %2335
          %2337 = vrot.lane.b32.xlu0 %v2288, 127
          %v2338 = vpop.permute.xlu0 %2337
          %2339 = vrot.lane.b32.xlu0 %v2289, 127
          %v2340 = vpop.permute.xlu0 %2339
          %2341 = vrot.lane.b32.xlu0 %v2290, 127
          %v2342 = vpop.permute.xlu0 %2341
          %2343 = vrot.lane.b32.xlu0 %v2291, 127
          %v2344 = vpop.permute.xlu0 %2343
          %2345 = vrot.lane.b32.xlu0 %v2292, 127
          %v2346 = vpop.permute.xlu0 %2345
          %2347 = vrot.lane.b32.xlu0 %v2293, 127
          %v2348 = vpop.permute.xlu0 %2347
          %2349 = vrot.lane.b32.xlu0 %v2294, 127
          %v2350 = vpop.permute.xlu0 %2349
          %2351 = vrot.lane.b32.xlu0 %v2295, 127
          %v2352 = vpop.permute.xlu0 %2351
          %2353 = vrot.lane.b32.xlu0 %v2296, 127
          %v2354 = vpop.permute.xlu0 %2353
          %2355 = vrot.lane.b32.xlu0 %v2297, 127
          %v2356 = vpop.permute.xlu0 %2355
          %2357 = vrot.lane.b32.xlu0 %v2298, 127
          %v2358 = vpop.permute.xlu0 %2357
          %2359 = vrot.lane.b32.xlu0 %v2299, 127
          %v2360 = vpop.permute.xlu0 %2359
          %2361 = vrot.lane.b32.xlu0 %v2300, 127
          %v2362 = vpop.permute.xlu0 %2361
          %2363 = vrot.lane.b32.xlu0 %v2301, 127
          %v2364 = vpop.permute.xlu0 %2363
          %2365 = vrot.lane.b32.xlu0 %v2302, 127
          %v2366 = vpop.permute.xlu0 %2365
          %vm2367 = vcmp.ne.s32.totalorder %v2304, 0
          %vm2368 = vcmp.ne.s32.totalorder %v2306, 0
          %vm2369 = vcmp.ne.s32.totalorder %v2308, 0
          %vm2370 = vcmp.ne.s32.totalorder %v2310, 0
          %vm2371 = vcmp.ne.s32.totalorder %v2312, 0
          %vm2372 = vcmp.ne.s32.totalorder %v2314, 0
          %vm2373 = vcmp.ne.s32.totalorder %v2316, 0
          %vm2374 = vcmp.ne.s32.totalorder %v2318, 0
          %vm2375 = vcmp.ne.s32.totalorder %v2320, 0
          %vm2376 = vcmp.ne.s32.totalorder %v2322, 0
          %vm2377 = vcmp.ne.s32.totalorder %v2324, 0
          %vm2378 = vcmp.ne.s32.totalorder %v2326, 0
          %vm2379 = vcmp.ne.s32.totalorder %v2328, 0
          %vm2380 = vcmp.ne.s32.totalorder %v2330, 0
          %vm2381 = vcmp.ne.s32.totalorder %v2332, 0
          %vm2382 = vcmp.ne.s32.totalorder %v2334, 0
          %vm2383 = vcmp.ne.s32.totalorder %v2336, 0
          %vm2384 = vcmp.ne.s32.totalorder %v2338, 0
          %vm2385 = vcmp.ne.s32.totalorder %v2340, 0
          %vm2386 = vcmp.ne.s32.totalorder %v2342, 0
          %vm2387 = vcmp.ne.s32.totalorder %v2344, 0
          %vm2388 = vcmp.ne.s32.totalorder %v2346, 0
          %vm2389 = vcmp.ne.s32.totalorder %v2348, 0
          %vm2390 = vcmp.ne.s32.totalorder %v2350, 0
          %vm2391 = vcmp.ne.s32.totalorder %v2352, 0
          %vm2392 = vcmp.ne.s32.totalorder %v2354, 0
          %vm2393 = vcmp.ne.s32.totalorder %v2356, 0
          %vm2394 = vcmp.ne.s32.totalorder %v2358, 0
          %vm2395 = vcmp.ne.s32.totalorder %v2360, 0
          %vm2396 = vcmp.ne.s32.totalorder %v2362, 0
          %vm2397 = vcmp.ne.s32.totalorder %v2364, 0
          %vm2398 = vcmp.ne.s32.totalorder %v2366, 0
          %vm2399 = vmand %vm1086, %vm2367
          %vm2400 = vmand %vm1087, %vm2368
          %vm2401 = vmand %vm1088, %vm2369
          %vm2402 = vmand %vm1089, %vm2370
          %vm2403 = vmand %vm1090, %vm2371
          %vm2404 = vmand %vm1091, %vm2372
          %vm2405 = vmand %vm1092, %vm2373
          %vm2406 = vmand %vm1093, %vm2374
          %vm2407 = vmand %vm1094, %vm2375
          %vm2408 = vmand %vm1095, %vm2376
          %vm2409 = vmand %vm1096, %vm2377
          %vm2410 = vmand %vm1097, %vm2378
          %vm2411 = vmand %vm1098, %vm2379
          %vm2412 = vmand %vm1099, %vm2380
          %vm2413 = vmand %vm1100, %vm2381
          %vm2414 = vmand %vm1101, %vm2382
          %vm2415 = vmand %vm1102, %vm2383
          %vm2416 = vmand %vm1103, %vm2384
          %vm2417 = vmand %vm1104, %vm2385
          %vm2418 = vmand %vm1105, %vm2386
          %vm2419 = vmand %vm1106, %vm2387
          %vm2420 = vmand %vm1107, %vm2388
          %vm2421 = vmand %vm1108, %vm2389
          %vm2422 = vmand %vm1109, %vm2390
          %vm2423 = vmand %vm1110, %vm2391
          %vm2424 = vmand %vm1111, %vm2392
          %vm2425 = vmand %vm1112, %vm2393
          %vm2426 = vmand %vm1113, %vm2394
          %vm2427 = vmand %vm1114, %vm2395
          %vm2428 = vmand %vm1115, %vm2396
          %vm2429 = vmand %vm1116, %vm2397
          %vm2430 = vmand %vm1117, %vm2398
          %vm2431 = vcmp.lt.s32.totalorder %v2207, 16
          %vm2432 = vcmp.lt.s32.totalorder %v2208, 16
          %vm2433 = vcmp.lt.s32.totalorder %v2209, 16
          %vm2434 = vcmp.lt.s32.totalorder %v2210, 16
          %vm2435 = vcmp.lt.s32.totalorder %v2211, 16
          %vm2436 = vcmp.lt.s32.totalorder %v2212, 16
          %vm2437 = vcmp.lt.s32.totalorder %v2213, 16
          %vm2438 = vcmp.lt.s32.totalorder %v2214, 16
          %vm2439 = vcmp.lt.s32.totalorder %v2215, 16
          %vm2440 = vcmp.lt.s32.totalorder %v2216, 16
          %vm2441 = vcmp.lt.s32.totalorder %v2217, 16
          %vm2442 = vcmp.lt.s32.totalorder %v2218, 16
          %vm2443 = vcmp.lt.s32.totalorder %v2219, 16
          %vm2444 = vcmp.lt.s32.totalorder %v2220, 16
          %vm2445 = vcmp.lt.s32.totalorder %v2221, 16
          %vm2446 = vcmp.lt.s32.totalorder %v2222, 16
          %vm2447 = vcmp.lt.s32.totalorder %v2223, 16
          %vm2448 = vcmp.lt.s32.totalorder %v2224, 16
          %vm2449 = vcmp.lt.s32.totalorder %v2225, 16
          %vm2450 = vcmp.lt.s32.totalorder %v2226, 16
          %vm2451 = vcmp.lt.s32.totalorder %v2227, 16
          %vm2452 = vcmp.lt.s32.totalorder %v2228, 16
          %vm2453 = vcmp.lt.s32.totalorder %v2229, 16
          %vm2454 = vcmp.lt.s32.totalorder %v2230, 16
          %vm2455 = vcmp.lt.s32.totalorder %v2231, 16
          %vm2456 = vcmp.lt.s32.totalorder %v2232, 16
          %vm2457 = vcmp.lt.s32.totalorder %v2233, 16
          %vm2458 = vcmp.lt.s32.totalorder %v2234, 16
          %vm2459 = vcmp.lt.s32.totalorder %v2235, 16
          %vm2460 = vcmp.lt.s32.totalorder %v2236, 16
          %vm2461 = vcmp.lt.s32.totalorder %v2237, 16
          %vm2462 = vcmp.lt.s32.totalorder %v2238, 16
          %v2463 = vsel %vm2431, 1, 0
          %v2464 = vsel %vm2432, 1, 0
          %v2465 = vsel %vm2433, 1, 0
          %v2466 = vsel %vm2434, 1, 0
          %v2467 = vsel %vm2435, 1, 0
          %v2468 = vsel %vm2436, 1, 0
          %v2469 = vsel %vm2437, 1, 0
          %v2470 = vsel %vm2438, 1, 0
          %v2471 = vsel %vm2439, 1, 0
          %v2472 = vsel %vm2440, 1, 0
          %v2473 = vsel %vm2441, 1, 0
          %v2474 = vsel %vm2442, 1, 0
          %v2475 = vsel %vm2443, 1, 0
          %v2476 = vsel %vm2444, 1, 0
          %v2477 = vsel %vm2445, 1, 0
          %v2478 = vsel %vm2446, 1, 0
          %v2479 = vsel %vm2447, 1, 0
          %v2480 = vsel %vm2448, 1, 0
          %v2481 = vsel %vm2449, 1, 0
          %v2482 = vsel %vm2450, 1, 0
          %v2483 = vsel %vm2451, 1, 0
          %v2484 = vsel %vm2452, 1, 0
          %v2485 = vsel %vm2453, 1, 0
          %v2486 = vsel %vm2454, 1, 0
          %v2487 = vsel %vm2455, 1, 0
          %v2488 = vsel %vm2456, 1, 0
          %v2489 = vsel %vm2457, 1, 0
          %v2490 = vsel %vm2458, 1, 0
          %v2491 = vsel %vm2459, 1, 0
          %v2492 = vsel %vm2460, 1, 0
          %v2493 = vsel %vm2461, 1, 0
          %v2494 = vsel %vm2462, 1, 0
          %2495 = vrot.lane.b32.xlu0 %v2463, 127
          %v2496 = vpop.permute.xlu0 %2495
          %2497 = vrot.lane.b32.xlu0 %v2464, 127
          %v2498 = vpop.permute.xlu0 %2497
          %2499 = vrot.lane.b32.xlu0 %v2465, 127
          %v2500 = vpop.permute.xlu0 %2499
          %2501 = vrot.lane.b32.xlu0 %v2466, 127
          %v2502 = vpop.permute.xlu0 %2501
          %2503 = vrot.lane.b32.xlu0 %v2467, 127
          %v2504 = vpop.permute.xlu0 %2503
          %2505 = vrot.lane.b32.xlu0 %v2468, 127
          %v2506 = vpop.permute.xlu0 %2505
          %2507 = vrot.lane.b32.xlu0 %v2469, 127
          %v2508 = vpop.permute.xlu0 %2507
          %2509 = vrot.lane.b32.xlu0 %v2470, 127
          %v2510 = vpop.permute.xlu0 %2509
          %2511 = vrot.lane.b32.xlu0 %v2471, 127
          %v2512 = vpop.permute.xlu0 %2511
          %2513 = vrot.lane.b32.xlu0 %v2472, 127
          %v2514 = vpop.permute.xlu0 %2513
          %2515 = vrot.lane.b32.xlu0 %v2473, 127
          %v2516 = vpop.permute.xlu0 %2515
          %2517 = vrot.lane.b32.xlu0 %v2474, 127
          %v2518 = vpop.permute.xlu0 %2517
          %2519 = vrot.lane.b32.xlu0 %v2475, 127
          %v2520 = vpop.permute.xlu0 %2519
          %2521 = vrot.lane.b32.xlu0 %v2476, 127
          %v2522 = vpop.permute.xlu0 %2521
          %2523 = vrot.lane.b32.xlu0 %v2477, 127
          %v2524 = vpop.permute.xlu0 %2523
          %2525 = vrot.lane.b32.xlu0 %v2478, 127
          %v2526 = vpop.permute.xlu0 %2525
          %2527 = vrot.lane.b32.xlu0 %v2479, 127
          %v2528 = vpop.permute.xlu0 %2527
          %2529 = vrot.lane.b32.xlu0 %v2480, 127
          %v2530 = vpop.permute.xlu0 %2529
          %2531 = vrot.lane.b32.xlu0 %v2481, 127
          %v2532 = vpop.permute.xlu0 %2531
          %2533 = vrot.lane.b32.xlu0 %v2482, 127
          %v2534 = vpop.permute.xlu0 %2533
          %2535 = vrot.lane.b32.xlu0 %v2483, 127
          %v2536 = vpop.permute.xlu0 %2535
          %2537 = vrot.lane.b32.xlu0 %v2484, 127
          %v2538 = vpop.permute.xlu0 %2537
          %2539 = vrot.lane.b32.xlu0 %v2485, 127
          %v2540 = vpop.permute.xlu0 %2539
          %2541 = vrot.lane.b32.xlu0 %v2486, 127
          %v2542 = vpop.permute.xlu0 %2541
          %2543 = vrot.lane.b32.xlu0 %v2487, 127
          %v2544 = vpop.permute.xlu0 %2543
          %2545 = vrot.lane.b32.xlu0 %v2488, 127
          %v2546 = vpop.permute.xlu0 %2545
          %2547 = vrot.lane.b32.xlu0 %v2489, 127
          %v2548 = vpop.permute.xlu0 %2547
          %2549 = vrot.lane.b32.xlu0 %v2490, 127
          %v2550 = vpop.permute.xlu0 %2549
          %2551 = vrot.lane.b32.xlu0 %v2491, 127
          %v2552 = vpop.permute.xlu0 %2551
          %2553 = vrot.lane.b32.xlu0 %v2492, 127
          %v2554 = vpop.permute.xlu0 %2553
          %2555 = vrot.lane.b32.xlu0 %v2493, 127
          %v2556 = vpop.permute.xlu0 %2555
          %2557 = vrot.lane.b32.xlu0 %v2494, 127
          %v2558 = vpop.permute.xlu0 %2557
          %vm2559 = vcmp.ne.s32.totalorder %v2496, 0
          %vm2560 = vcmp.ne.s32.totalorder %v2498, 0
          %vm2561 = vcmp.ne.s32.totalorder %v2500, 0
          %vm2562 = vcmp.ne.s32.totalorder %v2502, 0
          %vm2563 = vcmp.ne.s32.totalorder %v2504, 0
          %vm2564 = vcmp.ne.s32.totalorder %v2506, 0
          %vm2565 = vcmp.ne.s32.totalorder %v2508, 0
          %vm2566 = vcmp.ne.s32.totalorder %v2510, 0
          %vm2567 = vcmp.ne.s32.totalorder %v2512, 0
          %vm2568 = vcmp.ne.s32.totalorder %v2514, 0
          %vm2569 = vcmp.ne.s32.totalorder %v2516, 0
          %vm2570 = vcmp.ne.s32.totalorder %v2518, 0
          %vm2571 = vcmp.ne.s32.totalorder %v2520, 0
          %vm2572 = vcmp.ne.s32.totalorder %v2522, 0
          %vm2573 = vcmp.ne.s32.totalorder %v2524, 0
          %vm2574 = vcmp.ne.s32.totalorder %v2526, 0
          %vm2575 = vcmp.ne.s32.totalorder %v2528, 0
          %vm2576 = vcmp.ne.s32.totalorder %v2530, 0
          %vm2577 = vcmp.ne.s32.totalorder %v2532, 0
          %vm2578 = vcmp.ne.s32.totalorder %v2534, 0
          %vm2579 = vcmp.ne.s32.totalorder %v2536, 0
          %vm2580 = vcmp.ne.s32.totalorder %v2538, 0
          %vm2581 = vcmp.ne.s32.totalorder %v2540, 0
          %vm2582 = vcmp.ne.s32.totalorder %v2542, 0
          %vm2583 = vcmp.ne.s32.totalorder %v2544, 0
          %vm2584 = vcmp.ne.s32.totalorder %v2546, 0
          %vm2585 = vcmp.ne.s32.totalorder %v2548, 0
          %vm2586 = vcmp.ne.s32.totalorder %v2550, 0
          %vm2587 = vcmp.ne.s32.totalorder %v2552, 0
          %vm2588 = vcmp.ne.s32.totalorder %v2554, 0
          %vm2589 = vcmp.ne.s32.totalorder %v2556, 0
          %vm2590 = vcmp.ne.s32.totalorder %v2558, 0
          %vm2591 = vmand %vm2399, %vm2559
          %vm2592 = vmand %vm2400, %vm2560
          %vm2593 = vmand %vm2401, %vm2561
          %vm2594 = vmand %vm2402, %vm2562
          %vm2595 = vmand %vm2403, %vm2563
          %vm2596 = vmand %vm2404, %vm2564
          %vm2597 = vmand %vm2405, %vm2565
          %vm2598 = vmand %vm2406, %vm2566
          %vm2599 = vmand %vm2407, %vm2567
          %vm2600 = vmand %vm2408, %vm2568
          %vm2601 = vmand %vm2409, %vm2569
          %vm2602 = vmand %vm2410, %vm2570
          %vm2603 = vmand %vm2411, %vm2571
          %vm2604 = vmand %vm2412, %vm2572
          %vm2605 = vmand %vm2413, %vm2573
          %vm2606 = vmand %vm2414, %vm2574
          %vm2607 = vmand %vm2415, %vm2575
          %vm2608 = vmand %vm2416, %vm2576
          %vm2609 = vmand %vm2417, %vm2577
          %vm2610 = vmand %vm2418, %vm2578
          %vm2611 = vmand %vm2419, %vm2579
          %vm2612 = vmand %vm2420, %vm2580
          %vm2613 = vmand %vm2421, %vm2581
          %vm2614 = vmand %vm2422, %vm2582
          %vm2615 = vmand %vm2423, %vm2583
          %vm2616 = vmand %vm2424, %vm2584
          %vm2617 = vmand %vm2425, %vm2585
          %vm2618 = vmand %vm2426, %vm2586
          %vm2619 = vmand %vm2427, %vm2587
          %vm2620 = vmand %vm2428, %vm2588
          %vm2621 = vmand %vm2429, %vm2589
          %vm2622 = vmand %vm2430, %vm2590
          %vm2623 = vmand %vm2591, %vm893
          %vm2624 = vmand %vm2592, %vm894
          %vm2625 = vmand %vm2593, %vm895
          %vm2626 = vmand %vm2594, %vm896
          %vm2627 = vmand %vm2595, %vm897
          %vm2628 = vmand %vm2596, %vm898
          %vm2629 = vmand %vm2597, %vm899
          %vm2630 = vmand %vm2598, %vm900
          %vm2631 = vmand %vm2599, %vm901
          %vm2632 = vmand %vm2600, %vm902
          %vm2633 = vmand %vm2601, %vm903
          %vm2634 = vmand %vm2602, %vm904
          %vm2635 = vmand %vm2603, %vm905
          %vm2636 = vmand %vm2604, %vm906
          %vm2637 = vmand %vm2605, %vm907
          %vm2638 = vmand %vm2606, %vm908
          %vm2639 = vmand %vm2607, %vm909
          %vm2640 = vmand %vm2608, %vm910
          %vm2641 = vmand %vm2609, %vm911
          %vm2642 = vmand %vm2610, %vm912
          %vm2643 = vmand %vm2611, %vm913
          %vm2644 = vmand %vm2612, %vm914
          %vm2645 = vmand %vm2613, %vm915
          %vm2646 = vmand %vm2614, %vm916
          %vm2647 = vmand %vm2615, %vm917
          %vm2648 = vmand %vm2616, %vm918
          %vm2649 = vmand %vm2617, %vm919
          %vm2650 = vmand %vm2618, %vm920
          %vm2651 = vmand %vm2619, %vm921
          %vm2652 = vmand %vm2620, %vm922
          %vm2653 = vmand %vm2621, %vm923
          %vm2654 = vmand %vm2622, %vm924
          %2687 = vrot.lane.b32.xlu0 %v381, 127
          %v2688 = vpop.permute.xlu0 %2687
          %2689 = vrot.lane.b32.xlu0 %v382, 127
          %v2690 = vpop.permute.xlu0 %2689
          %2691 = vrot.lane.b32.xlu0 %v383, 127
          %v2692 = vpop.permute.xlu0 %2691
          %2693 = vrot.lane.b32.xlu0 %v384, 127
          %v2694 = vpop.permute.xlu0 %2693
          %2695 = vrot.lane.b32.xlu0 %v385, 127
          %v2696 = vpop.permute.xlu0 %2695
          %2697 = vrot.lane.b32.xlu0 %v386, 127
          %v2698 = vpop.permute.xlu0 %2697
          %2699 = vrot.lane.b32.xlu0 %v387, 127
          %v2700 = vpop.permute.xlu0 %2699
          %2701 = vrot.lane.b32.xlu0 %v388, 127
          %v2702 = vpop.permute.xlu0 %2701
          %2703 = vrot.lane.b32.xlu0 %v389, 127
          %v2704 = vpop.permute.xlu0 %2703
          %2705 = vrot.lane.b32.xlu0 %v390, 127
          %v2706 = vpop.permute.xlu0 %2705
          %2707 = vrot.lane.b32.xlu0 %v391, 127
          %v2708 = vpop.permute.xlu0 %2707
          %2709 = vrot.lane.b32.xlu0 %v392, 127
          %v2710 = vpop.permute.xlu0 %2709
          %2711 = vrot.lane.b32.xlu0 %v393, 127
          %v2712 = vpop.permute.xlu0 %2711
          %2713 = vrot.lane.b32.xlu0 %v394, 127
          %v2714 = vpop.permute.xlu0 %2713
          %2715 = vrot.lane.b32.xlu0 %v395, 127
          %v2716 = vpop.permute.xlu0 %2715
          %2717 = vrot.lane.b32.xlu0 %v396, 127
          %v2718 = vpop.permute.xlu0 %2717
          %2719 = vrot.lane.b32.xlu0 %v397, 127
          %v2720 = vpop.permute.xlu0 %2719
          %2721 = vrot.lane.b32.xlu0 %v398, 127
          %v2722 = vpop.permute.xlu0 %2721
          %2723 = vrot.lane.b32.xlu0 %v399, 127
          %v2724 = vpop.permute.xlu0 %2723
          %2725 = vrot.lane.b32.xlu0 %v400, 127
          %v2726 = vpop.permute.xlu0 %2725
          %2727 = vrot.lane.b32.xlu0 %v401, 127
          %v2728 = vpop.permute.xlu0 %2727
          %2729 = vrot.lane.b32.xlu0 %v402, 127
          %v2730 = vpop.permute.xlu0 %2729
          %2731 = vrot.lane.b32.xlu0 %v403, 127
          %v2732 = vpop.permute.xlu0 %2731
          %2733 = vrot.lane.b32.xlu0 %v404, 127
          %v2734 = vpop.permute.xlu0 %2733
          %2735 = vrot.lane.b32.xlu0 %v405, 127
          %v2736 = vpop.permute.xlu0 %2735
          %2737 = vrot.lane.b32.xlu0 %v406, 127
          %v2738 = vpop.permute.xlu0 %2737
          %2739 = vrot.lane.b32.xlu0 %v407, 127
          %v2740 = vpop.permute.xlu0 %2739
          %2741 = vrot.lane.b32.xlu0 %v408, 127
          %v2742 = vpop.permute.xlu0 %2741
          %2743 = vrot.lane.b32.xlu0 %v409, 127
          %v2744 = vpop.permute.xlu0 %2743
          %2745 = vrot.lane.b32.xlu0 %v410, 127
          %v2746 = vpop.permute.xlu0 %2745
          %2747 = vrot.lane.b32.xlu0 %v411, 127
          %v2748 = vpop.permute.xlu0 %2747
          %2749 = vrot.lane.b32.xlu0 %v412, 127
          %v2750 = vpop.permute.xlu0 %2749
          %v2783 = vmul.f32 %v990, %v2688
          %v2784 = vmul.f32 %v991, %v2690
          %v2785 = vmul.f32 %v992, %v2692
          %v2786 = vmul.f32 %v993, %v2694
          %v2787 = vmul.f32 %v994, %v2696
          %v2788 = vmul.f32 %v995, %v2698
          %v2789 = vmul.f32 %v996, %v2700
          %v2790 = vmul.f32 %v997, %v2702
          %v2791 = vmul.f32 %v998, %v2704
          %v2792 = vmul.f32 %v999, %v2706
          %v2793 = vmul.f32 %v1000, %v2708
          %v2794 = vmul.f32 %v1001, %v2710
          %v2795 = vmul.f32 %v1002, %v2712
          %v2796 = vmul.f32 %v1003, %v2714
          %v2797 = vmul.f32 %v1004, %v2716
          %v2798 = vmul.f32 %v1005, %v2718
          %v2799 = vmul.f32 %v1006, %v2720
          %v2800 = vmul.f32 %v1007, %v2722
          %v2801 = vmul.f32 %v1008, %v2724
          %v2802 = vmul.f32 %v1009, %v2726
          %v2803 = vmul.f32 %v1010, %v2728
          %v2804 = vmul.f32 %v1011, %v2730
          %v2805 = vmul.f32 %v1012, %v2732
          %v2806 = vmul.f32 %v1013, %v2734
          %v2807 = vmul.f32 %v1014, %v2736
          %v2808 = vmul.f32 %v1015, %v2738
          %v2809 = vmul.f32 %v1016, %v2740
          %v2810 = vmul.f32 %v1017, %v2742
          %v2811 = vmul.f32 %v1018, %v2744
          %v2812 = vmul.f32 %v1019, %v2746
          %v2813 = vmul.f32 %v1020, %v2748
          %v2814 = vmul.f32 %v1021, %v2750
          %v2815 = vsel %vm2623, %v2783, 0.0
          %v2816 = vsel %vm2624, %v2784, 0.0
          %v2817 = vsel %vm2625, %v2785, 0.0
          %v2818 = vsel %vm2626, %v2786, 0.0
          %v2819 = vsel %vm2627, %v2787, 0.0
          %v2820 = vsel %vm2628, %v2788, 0.0
          %v2821 = vsel %vm2629, %v2789, 0.0
          %v2822 = vsel %vm2630, %v2790, 0.0
          %v2823 = vsel %vm2631, %v2791, 0.0
          %v2824 = vsel %vm2632, %v2792, 0.0
          %v2825 = vsel %vm2633, %v2793, 0.0
          %v2826 = vsel %vm2634, %v2794, 0.0
          %v2827 = vsel %vm2635, %v2795, 0.0
          %v2828 = vsel %vm2636, %v2796, 0.0
          %v2829 = vsel %vm2637, %v2797, 0.0
          %v2830 = vsel %vm2638, %v2798, 0.0
          %v2831 = vsel %vm2639, %v2799, 0.0
          %v2832 = vsel %vm2640, %v2800, 0.0
          %v2833 = vsel %vm2641, %v2801, 0.0
          %v2834 = vsel %vm2642, %v2802, 0.0
          %v2835 = vsel %vm2643, %v2803, 0.0
          %v2836 = vsel %vm2644, %v2804, 0.0
          %v2837 = vsel %vm2645, %v2805, 0.0
          %v2838 = vsel %vm2646, %v2806, 0.0
          %v2839 = vsel %vm2647, %v2807, 0.0
          %v2840 = vsel %vm2648, %v2808, 0.0
          %v2841 = vsel %vm2649, %v2809, 0.0
          %v2842 = vsel %vm2650, %v2810, 0.0
          %v2843 = vsel %vm2651, %v2811, 0.0
          %v2844 = vsel %vm2652, %v2812, 0.0
          %v2845 = vsel %vm2653, %v2813, 0.0
          %v2846 = vsel %vm2654, %v2814, 0.0
          %2847 = vrot.lane.b32.xlu0 %v2207, 127
          %v2848 = vpop.permute.xlu0 %2847
          %2849 = vrot.lane.b32.xlu0 %v2208, 127
          %v2850 = vpop.permute.xlu0 %2849
          %2851 = vrot.lane.b32.xlu0 %v2209, 127
          %v2852 = vpop.permute.xlu0 %2851
          %2853 = vrot.lane.b32.xlu0 %v2210, 127
          %v2854 = vpop.permute.xlu0 %2853
          %2855 = vrot.lane.b32.xlu0 %v2211, 127
          %v2856 = vpop.permute.xlu0 %2855
          %2857 = vrot.lane.b32.xlu0 %v2212, 127
          %v2858 = vpop.permute.xlu0 %2857
          %2859 = vrot.lane.b32.xlu0 %v2213, 127
          %v2860 = vpop.permute.xlu0 %2859
          %2861 = vrot.lane.b32.xlu0 %v2214, 127
          %v2862 = vpop.permute.xlu0 %2861
          %2863 = vrot.lane.b32.xlu0 %v2215, 127
          %v2864 = vpop.permute.xlu0 %2863
          %2865 = vrot.lane.b32.xlu0 %v2216, 127
          %v2866 = vpop.permute.xlu0 %2865
          %2867 = vrot.lane.b32.xlu0 %v2217, 127
          %v2868 = vpop.permute.xlu0 %2867
          %2869 = vrot.lane.b32.xlu0 %v2218, 127
          %v2870 = vpop.permute.xlu0 %2869
          %2871 = vrot.lane.b32.xlu0 %v2219, 127
          %v2872 = vpop.permute.xlu0 %2871
          %2873 = vrot.lane.b32.xlu0 %v2220, 127
          %v2874 = vpop.permute.xlu0 %2873
          %2875 = vrot.lane.b32.xlu0 %v2221, 127
          %v2876 = vpop.permute.xlu0 %2875
          %2877 = vrot.lane.b32.xlu0 %v2222, 127
          %v2878 = vpop.permute.xlu0 %2877
          %2879 = vrot.lane.b32.xlu0 %v2223, 127
          %v2880 = vpop.permute.xlu0 %2879
          %2881 = vrot.lane.b32.xlu0 %v2224, 127
          %v2882 = vpop.permute.xlu0 %2881
          %2883 = vrot.lane.b32.xlu0 %v2225, 127
          %v2884 = vpop.permute.xlu0 %2883
          %2885 = vrot.lane.b32.xlu0 %v2226, 127
          %v2886 = vpop.permute.xlu0 %2885
          %2887 = vrot.lane.b32.xlu0 %v2227, 127
          %v2888 = vpop.permute.xlu0 %2887
          %2889 = vrot.lane.b32.xlu0 %v2228, 127
          %v2890 = vpop.permute.xlu0 %2889
          %2891 = vrot.lane.b32.xlu0 %v2229, 127
          %v2892 = vpop.permute.xlu0 %2891
          %2893 = vrot.lane.b32.xlu0 %v2230, 127
          %v2894 = vpop.permute.xlu0 %2893
          %2895 = vrot.lane.b32.xlu0 %v2231, 127
          %v2896 = vpop.permute.xlu0 %2895
          %2897 = vrot.lane.b32.xlu0 %v2232, 127
          %v2898 = vpop.permute.xlu0 %2897
          %2899 = vrot.lane.b32.xlu0 %v2233, 127
          %v2900 = vpop.permute.xlu0 %2899
          %2901 = vrot.lane.b32.xlu0 %v2234, 127
          %v2902 = vpop.permute.xlu0 %2901
          %2903 = vrot.lane.b32.xlu0 %v2235, 127
          %v2904 = vpop.permute.xlu0 %2903
          %2905 = vrot.lane.b32.xlu0 %v2236, 127
          %v2906 = vpop.permute.xlu0 %2905
          %2907 = vrot.lane.b32.xlu0 %v2237, 127
          %v2908 = vpop.permute.xlu0 %2907
          %2909 = vrot.lane.b32.xlu0 %v2238, 127
          %v2910 = vpop.permute.xlu0 %2909
          %v2911 = vadd.s32 %v1662, %v2848
          %v2912 = vadd.s32 %v1663, %v2850
          %v2913 = vadd.s32 %v1664, %v2852
          %v2914 = vadd.s32 %v1665, %v2854
          %v2915 = vadd.s32 %v1666, %v2856
          %v2916 = vadd.s32 %v1667, %v2858
          %v2917 = vadd.s32 %v1668, %v2860
          %v2918 = vadd.s32 %v1669, %v2862
          %v2919 = vadd.s32 %v1670, %v2864
          %v2920 = vadd.s32 %v1671, %v2866
          %v2921 = vadd.s32 %v1672, %v2868
          %v2922 = vadd.s32 %v1673, %v2870
          %v2923 = vadd.s32 %v1674, %v2872
          %v2924 = vadd.s32 %v1675, %v2874
          %v2925 = vadd.s32 %v1676, %v2876
          %v2926 = vadd.s32 %v1677, %v2878
          %v2927 = vadd.s32 %v1678, %v2880
          %v2928 = vadd.s32 %v1679, %v2882
          %v2929 = vadd.s32 %v1680, %v2884
          %v2930 = vadd.s32 %v1681, %v2886
          %v2931 = vadd.s32 %v1682, %v2888
          %v2932 = vadd.s32 %v1683, %v2890
          %v2933 = vadd.s32 %v1684, %v2892
          %v2934 = vadd.s32 %v1685, %v2894
          %v2935 = vadd.s32 %v1686, %v2896
          %v2936 = vadd.s32 %v1687, %v2898
          %v2937 = vadd.s32 %v1688, %v2900
          %v2938 = vadd.s32 %v1689, %v2902
          %v2939 = vadd.s32 %v1690, %v2904
          %v2940 = vadd.s32 %v1691, %v2906
          %v2941 = vadd.s32 %v1692, %v2908
          %v2942 = vadd.s32 %v1693, %v2910
          %v2943 = vsub.s32 %v2911, %v1790
          %v2944 = vsub.s32 %v2912, %v1790
          %v2945 = vsub.s32 %v2913, %v1790
          %v2946 = vsub.s32 %v2914, %v1790
          %v2947 = vsub.s32 %v2915, %v1790
          %v2948 = vsub.s32 %v2916, %v1790
          %v2949 = vsub.s32 %v2917, %v1790
          %v2950 = vsub.s32 %v2918, %v1790
          %v2951 = vsub.s32 %v2919, %v1790
          %v2952 = vsub.s32 %v2920, %v1790
          %v2953 = vsub.s32 %v2921, %v1790
          %v2954 = vsub.s32 %v2922, %v1790
          %v2955 = vsub.s32 %v2923, %v1790
          %v2956 = vsub.s32 %v2924, %v1790
          %v2957 = vsub.s32 %v2925, %v1790
          %v2958 = vsub.s32 %v2926, %v1790
          %v2959 = vsub.s32 %v2927, %v1790
          %v2960 = vsub.s32 %v2928, %v1790
          %v2961 = vsub.s32 %v2929, %v1790
          %v2962 = vsub.s32 %v2930, %v1790
          %v2963 = vsub.s32 %v2931, %v1790
          %v2964 = vsub.s32 %v2932, %v1790
          %v2965 = vsub.s32 %v2933, %v1790
          %v2966 = vsub.s32 %v2934, %v1790
          %v2967 = vsub.s32 %v2935, %v1790
          %v2968 = vsub.s32 %v2936, %v1790
          %v2969 = vsub.s32 %v2937, %v1790
          %v2970 = vsub.s32 %v2938, %v1790
          %v2971 = vsub.s32 %v2939, %v1790
          %v2972 = vsub.s32 %v2940, %v1790
          %v2973 = vsub.s32 %v2941, %v1790
          %v2974 = vsub.s32 %v2942, %v1790
          %2975 = vset.pattern.permute.xlu0 0
          %2976 = vperm.xlu0 %2975, %v2943
          %v2977 = vpop.permute.xlu0 %2976
          %2978 = vset.pattern.permute.xlu0 0
          %2979 = vperm.xlu0 %2978, %v2944
          %v2980 = vpop.permute.xlu0 %2979
          %2981 = vset.pattern.permute.xlu0 0
          %2982 = vperm.xlu0 %2981, %v2945
          %v2983 = vpop.permute.xlu0 %2982
          %2984 = vset.pattern.permute.xlu0 0
          %2985 = vperm.xlu0 %2984, %v2946
          %v2986 = vpop.permute.xlu0 %2985
          %2987 = vset.pattern.permute.xlu0 0
          %2988 = vperm.xlu0 %2987, %v2947
          %v2989 = vpop.permute.xlu0 %2988
          %2990 = vset.pattern.permute.xlu0 0
          %2991 = vperm.xlu0 %2990, %v2948
          %v2992 = vpop.permute.xlu0 %2991
          %2993 = vset.pattern.permute.xlu0 0
          %2994 = vperm.xlu0 %2993, %v2949
          %v2995 = vpop.permute.xlu0 %2994
          %2996 = vset.pattern.permute.xlu0 0
          %2997 = vperm.xlu0 %2996, %v2950
          %v2998 = vpop.permute.xlu0 %2997
          %2999 = vset.pattern.permute.xlu0 0
          %3000 = vperm.xlu0 %2999, %v2951
          %v3001 = vpop.permute.xlu0 %3000
          %3002 = vset.pattern.permute.xlu0 0
          %3003 = vperm.xlu0 %3002, %v2952
          %v3004 = vpop.permute.xlu0 %3003
          %3005 = vset.pattern.permute.xlu0 0
          %3006 = vperm.xlu0 %3005, %v2953
          %v3007 = vpop.permute.xlu0 %3006
          %3008 = vset.pattern.permute.xlu0 0
          %3009 = vperm.xlu0 %3008, %v2954
          %v3010 = vpop.permute.xlu0 %3009
          %3011 = vset.pattern.permute.xlu0 0
          %3012 = vperm.xlu0 %3011, %v2955
          %v3013 = vpop.permute.xlu0 %3012
          %3014 = vset.pattern.permute.xlu0 0
          %3015 = vperm.xlu0 %3014, %v2956
          %v3016 = vpop.permute.xlu0 %3015
          %3017 = vset.pattern.permute.xlu0 0
          %3018 = vperm.xlu0 %3017, %v2957
          %v3019 = vpop.permute.xlu0 %3018
          %3020 = vset.pattern.permute.xlu0 0
          %3021 = vperm.xlu0 %3020, %v2958
          %v3022 = vpop.permute.xlu0 %3021
          %3023 = vset.pattern.permute.xlu0 0
          %3024 = vperm.xlu0 %3023, %v2959
          %v3025 = vpop.permute.xlu0 %3024
          %3026 = vset.pattern.permute.xlu0 0
          %3027 = vperm.xlu0 %3026, %v2960
          %v3028 = vpop.permute.xlu0 %3027
          %3029 = vset.pattern.permute.xlu0 0
          %3030 = vperm.xlu0 %3029, %v2961
          %v3031 = vpop.permute.xlu0 %3030
          %3032 = vset.pattern.permute.xlu0 0
          %3033 = vperm.xlu0 %3032, %v2962
          %v3034 = vpop.permute.xlu0 %3033
          %3035 = vset.pattern.permute.xlu0 0
          %3036 = vperm.xlu0 %3035, %v2963
          %v3037 = vpop.permute.xlu0 %3036
          %3038 = vset.pattern.permute.xlu0 0
          %3039 = vperm.xlu0 %3038, %v2964
          %v3040 = vpop.permute.xlu0 %3039
          %3041 = vset.pattern.permute.xlu0 0
          %3042 = vperm.xlu0 %3041, %v2965
          %v3043 = vpop.permute.xlu0 %3042
          %3044 = vset.pattern.permute.xlu0 0
          %3045 = vperm.xlu0 %3044, %v2966
          %v3046 = vpop.permute.xlu0 %3045
          %3047 = vset.pattern.permute.xlu0 0
          %3048 = vperm.xlu0 %3047, %v2967
          %v3049 = vpop.permute.xlu0 %3048
          %3050 = vset.pattern.permute.xlu0 0
          %3051 = vperm.xlu0 %3050, %v2968
          %v3052 = vpop.permute.xlu0 %3051
          %3053 = vset.pattern.permute.xlu0 0
          %3054 = vperm.xlu0 %3053, %v2969
          %v3055 = vpop.permute.xlu0 %3054
          %3056 = vset.pattern.permute.xlu0 0
          %3057 = vperm.xlu0 %3056, %v2970
          %v3058 = vpop.permute.xlu0 %3057
          %3059 = vset.pattern.permute.xlu0 0
          %3060 = vperm.xlu0 %3059, %v2971
          %v3061 = vpop.permute.xlu0 %3060
          %3062 = vset.pattern.permute.xlu0 0
          %3063 = vperm.xlu0 %3062, %v2972
          %v3064 = vpop.permute.xlu0 %3063
          %3065 = vset.pattern.permute.xlu0 0
          %3066 = vperm.xlu0 %3065, %v2973
          %v3067 = vpop.permute.xlu0 %3066
          %3068 = vset.pattern.permute.xlu0 0
          %3069 = vperm.xlu0 %3068, %v2974
          %v3070 = vpop.permute.xlu0 %3069
          %vm3071 = vcmp.eq.s32.totalorder %v925, %v2977
          %vm3072 = vcmp.eq.s32.totalorder %v926, %v2977
          %vm3073 = vcmp.eq.s32.totalorder %v927, %v2980
          %vm3074 = vcmp.eq.s32.totalorder %v928, %v2980
          %vm3075 = vcmp.eq.s32.totalorder %v929, %v2983
          %vm3076 = vcmp.eq.s32.totalorder %v930, %v2983
          %vm3077 = vcmp.eq.s32.totalorder %v931, %v2986
          %vm3078 = vcmp.eq.s32.totalorder %v932, %v2986
          %vm3079 = vcmp.eq.s32.totalorder %v933, %v2989
          %vm3080 = vcmp.eq.s32.totalorder %v934, %v2989
          %vm3081 = vcmp.eq.s32.totalorder %v935, %v2992
          %vm3082 = vcmp.eq.s32.totalorder %v936, %v2992
          %vm3083 = vcmp.eq.s32.totalorder %v937, %v2995
          %vm3084 = vcmp.eq.s32.totalorder %v938, %v2995
          %vm3085 = vcmp.eq.s32.totalorder %v939, %v2998
          %vm3086 = vcmp.eq.s32.totalorder %v940, %v2998
          %vm3087 = vcmp.eq.s32.totalorder %v941, %v3001
          %vm3088 = vcmp.eq.s32.totalorder %v942, %v3001
          %vm3089 = vcmp.eq.s32.totalorder %v943, %v3004
          %vm3090 = vcmp.eq.s32.totalorder %v944, %v3004
          %vm3091 = vcmp.eq.s32.totalorder %v945, %v3007
          %vm3092 = vcmp.eq.s32.totalorder %v946, %v3007
          %vm3093 = vcmp.eq.s32.totalorder %v947, %v3010
          %vm3094 = vcmp.eq.s32.totalorder %v948, %v3010
          %vm3095 = vcmp.eq.s32.totalorder %v949, %v3013
          %vm3096 = vcmp.eq.s32.totalorder %v950, %v3013
          %vm3097 = vcmp.eq.s32.totalorder %v951, %v3016
          %vm3098 = vcmp.eq.s32.totalorder %v952, %v3016
          %vm3099 = vcmp.eq.s32.totalorder %v953, %v3019
          %vm3100 = vcmp.eq.s32.totalorder %v954, %v3019
          %vm3101 = vcmp.eq.s32.totalorder %v955, %v3022
          %vm3102 = vcmp.eq.s32.totalorder %v956, %v3022
          %vm3103 = vcmp.eq.s32.totalorder %v957, %v3025
          %vm3104 = vcmp.eq.s32.totalorder %v958, %v3025
          %vm3105 = vcmp.eq.s32.totalorder %v959, %v3028
          %vm3106 = vcmp.eq.s32.totalorder %v960, %v3028
          %vm3107 = vcmp.eq.s32.totalorder %v961, %v3031
          %vm3108 = vcmp.eq.s32.totalorder %v962, %v3031
          %vm3109 = vcmp.eq.s32.totalorder %v963, %v3034
          %vm3110 = vcmp.eq.s32.totalorder %v964, %v3034
          %vm3111 = vcmp.eq.s32.totalorder %v965, %v3037
          %vm3112 = vcmp.eq.s32.totalorder %v966, %v3037
          %vm3113 = vcmp.eq.s32.totalorder %v967, %v3040
          %vm3114 = vcmp.eq.s32.totalorder %v968, %v3040
          %vm3115 = vcmp.eq.s32.totalorder %v969, %v3043
          %vm3116 = vcmp.eq.s32.totalorder %v970, %v3043
          %vm3117 = vcmp.eq.s32.totalorder %v971, %v3046
          %vm3118 = vcmp.eq.s32.totalorder %v972, %v3046
          %vm3119 = vcmp.eq.s32.totalorder %v973, %v3049
          %vm3120 = vcmp.eq.s32.totalorder %v974, %v3049
          %vm3121 = vcmp.eq.s32.totalorder %v975, %v3052
          %vm3122 = vcmp.eq.s32.totalorder %v976, %v3052
          %vm3123 = vcmp.eq.s32.totalorder %v977, %v3055
          %vm3124 = vcmp.eq.s32.totalorder %v978, %v3055
          %vm3125 = vcmp.eq.s32.totalorder %v979, %v3058
          %vm3126 = vcmp.eq.s32.totalorder %v980, %v3058
          %vm3127 = vcmp.eq.s32.totalorder %v981, %v3061
          %vm3128 = vcmp.eq.s32.totalorder %v982, %v3061
          %vm3129 = vcmp.eq.s32.totalorder %v983, %v3064
          %vm3130 = vcmp.eq.s32.totalorder %v984, %v3064
          %vm3131 = vcmp.eq.s32.totalorder %v985, %v3067
          %vm3132 = vcmp.eq.s32.totalorder %v986, %v3067
          %vm3133 = vcmp.eq.s32.totalorder %v987, %v3070
          %vm3134 = vcmp.eq.s32.totalorder %v988, %v3070
          %3136 = vset.pattern.permute.xlu0 0
          %3137 = vperm.xlu0 %3136, %v2815
          %v3138 = vpop.permute.xlu0 %3137
          %3141 = vset.pattern.permute.xlu0 0
          %3142 = vperm.xlu0 %3141, %v2816
          %v3143 = vpop.permute.xlu0 %3142
          %3146 = vset.pattern.permute.xlu0 0
          %3147 = vperm.xlu0 %3146, %v2817
          %v3148 = vpop.permute.xlu0 %3147
          %3151 = vset.pattern.permute.xlu0 0
          %3152 = vperm.xlu0 %3151, %v2818
          %v3153 = vpop.permute.xlu0 %3152
          %3156 = vset.pattern.permute.xlu0 0
          %3157 = vperm.xlu0 %3156, %v2819
          %v3158 = vpop.permute.xlu0 %3157
          %3161 = vset.pattern.permute.xlu0 0
          %3162 = vperm.xlu0 %3161, %v2820
          %v3163 = vpop.permute.xlu0 %3162
          %3166 = vset.pattern.permute.xlu0 0
          %3167 = vperm.xlu0 %3166, %v2821
          %v3168 = vpop.permute.xlu0 %3167
          %3171 = vset.pattern.permute.xlu0 0
          %3172 = vperm.xlu0 %3171, %v2822
          %v3173 = vpop.permute.xlu0 %3172
          %3176 = vset.pattern.permute.xlu0 0
          %3177 = vperm.xlu0 %3176, %v2823
          %v3178 = vpop.permute.xlu0 %3177
          %3181 = vset.pattern.permute.xlu0 0
          %3182 = vperm.xlu0 %3181, %v2824
          %v3183 = vpop.permute.xlu0 %3182
          %3186 = vset.pattern.permute.xlu0 0
          %3187 = vperm.xlu0 %3186, %v2825
          %v3188 = vpop.permute.xlu0 %3187
          %3191 = vset.pattern.permute.xlu0 0
          %3192 = vperm.xlu0 %3191, %v2826
          %v3193 = vpop.permute.xlu0 %3192
          %3196 = vset.pattern.permute.xlu0 0
          %3197 = vperm.xlu0 %3196, %v2827
          %v3198 = vpop.permute.xlu0 %3197
          %3201 = vset.pattern.permute.xlu0 0
          %3202 = vperm.xlu0 %3201, %v2828
          %v3203 = vpop.permute.xlu0 %3202
          %3206 = vset.pattern.permute.xlu0 0
          %3207 = vperm.xlu0 %3206, %v2829
          %v3208 = vpop.permute.xlu0 %3207
          %3211 = vset.pattern.permute.xlu0 0
          %3212 = vperm.xlu0 %3211, %v2830
          %v3213 = vpop.permute.xlu0 %3212
          %3216 = vset.pattern.permute.xlu0 0
          %3217 = vperm.xlu0 %3216, %v2831
          %v3218 = vpop.permute.xlu0 %3217
          %3221 = vset.pattern.permute.xlu0 0
          %3222 = vperm.xlu0 %3221, %v2832
          %v3223 = vpop.permute.xlu0 %3222
          %3226 = vset.pattern.permute.xlu0 0
          %3227 = vperm.xlu0 %3226, %v2833
          %v3228 = vpop.permute.xlu0 %3227
          %3231 = vset.pattern.permute.xlu0 0
          %3232 = vperm.xlu0 %3231, %v2834
          %v3233 = vpop.permute.xlu0 %3232
          %3236 = vset.pattern.permute.xlu0 0
          %3237 = vperm.xlu0 %3236, %v2835
          %v3238 = vpop.permute.xlu0 %3237
          %3241 = vset.pattern.permute.xlu0 0
          %3242 = vperm.xlu0 %3241, %v2836
          %v3243 = vpop.permute.xlu0 %3242
          %3246 = vset.pattern.permute.xlu0 0
          %3247 = vperm.xlu0 %3246, %v2837
          %v3248 = vpop.permute.xlu0 %3247
          %3251 = vset.pattern.permute.xlu0 0
          %3252 = vperm.xlu0 %3251, %v2838
          %v3253 = vpop.permute.xlu0 %3252
          %3256 = vset.pattern.permute.xlu0 0
          %3257 = vperm.xlu0 %3256, %v2839
          %v3258 = vpop.permute.xlu0 %3257
          %3261 = vset.pattern.permute.xlu0 0
          %3262 = vperm.xlu0 %3261, %v2840
          %v3263 = vpop.permute.xlu0 %3262
          %3266 = vset.pattern.permute.xlu0 0
          %3267 = vperm.xlu0 %3266, %v2841
          %v3268 = vpop.permute.xlu0 %3267
          %3271 = vset.pattern.permute.xlu0 0
          %3272 = vperm.xlu0 %3271, %v2842
          %v3273 = vpop.permute.xlu0 %3272
          %3276 = vset.pattern.permute.xlu0 0
          %3277 = vperm.xlu0 %3276, %v2843
          %v3278 = vpop.permute.xlu0 %3277
          %3281 = vset.pattern.permute.xlu0 0
          %3282 = vperm.xlu0 %3281, %v2844
          %v3283 = vpop.permute.xlu0 %3282
          %3286 = vset.pattern.permute.xlu0 0
          %3287 = vperm.xlu0 %3286, %v2845
          %v3288 = vpop.permute.xlu0 %3287
          %3291 = vset.pattern.permute.xlu0 0
          %3292 = vperm.xlu0 %3291, %v2846
          %v3293 = vpop.permute.xlu0 %3292
          %v3295 = vsel %vm3071, %v3138, 0.0
          %v3296 = vsel %vm3072, %v3138, 0.0
          %v3297 = vsel %vm3073, %v3143, 0.0
          %v3298 = vsel %vm3074, %v3143, 0.0
          %v3299 = vsel %vm3075, %v3148, 0.0
          %v3300 = vsel %vm3076, %v3148, 0.0
          %v3301 = vsel %vm3077, %v3153, 0.0
          %v3302 = vsel %vm3078, %v3153, 0.0
          %v3303 = vsel %vm3079, %v3158, 0.0
          %v3304 = vsel %vm3080, %v3158, 0.0
          %v3305 = vsel %vm3081, %v3163, 0.0
          %v3306 = vsel %vm3082, %v3163, 0.0
          %v3307 = vsel %vm3083, %v3168, 0.0
          %v3308 = vsel %vm3084, %v3168, 0.0
          %v3309 = vsel %vm3085, %v3173, 0.0
          %v3310 = vsel %vm3086, %v3173, 0.0
          %v3311 = vsel %vm3087, %v3178, 0.0
          %v3312 = vsel %vm3088, %v3178, 0.0
          %v3313 = vsel %vm3089, %v3183, 0.0
          %v3314 = vsel %vm3090, %v3183, 0.0
          %v3315 = vsel %vm3091, %v3188, 0.0
          %v3316 = vsel %vm3092, %v3188, 0.0
          %v3317 = vsel %vm3093, %v3193, 0.0
          %v3318 = vsel %vm3094, %v3193, 0.0
          %v3319 = vsel %vm3095, %v3198, 0.0
          %v3320 = vsel %vm3096, %v3198, 0.0
          %v3321 = vsel %vm3097, %v3203, 0.0
          %v3322 = vsel %vm3098, %v3203, 0.0
          %v3323 = vsel %vm3099, %v3208, 0.0
          %v3324 = vsel %vm3100, %v3208, 0.0
          %v3325 = vsel %vm3101, %v3213, 0.0
          %v3326 = vsel %vm3102, %v3213, 0.0
          %v3327 = vsel %vm3103, %v3218, 0.0
          %v3328 = vsel %vm3104, %v3218, 0.0
          %v3329 = vsel %vm3105, %v3223, 0.0
          %v3330 = vsel %vm3106, %v3223, 0.0
          %v3331 = vsel %vm3107, %v3228, 0.0
          %v3332 = vsel %vm3108, %v3228, 0.0
          %v3333 = vsel %vm3109, %v3233, 0.0
          %v3334 = vsel %vm3110, %v3233, 0.0
          %v3335 = vsel %vm3111, %v3238, 0.0
          %v3336 = vsel %vm3112, %v3238, 0.0
          %v3337 = vsel %vm3113, %v3243, 0.0
          %v3338 = vsel %vm3114, %v3243, 0.0
          %v3339 = vsel %vm3115, %v3248, 0.0
          %v3340 = vsel %vm3116, %v3248, 0.0
          %v3341 = vsel %vm3117, %v3253, 0.0
          %v3342 = vsel %vm3118, %v3253, 0.0
          %v3343 = vsel %vm3119, %v3258, 0.0
          %v3344 = vsel %vm3120, %v3258, 0.0
          %v3345 = vsel %vm3121, %v3263, 0.0
          %v3346 = vsel %vm3122, %v3263, 0.0
          %v3347 = vsel %vm3123, %v3268, 0.0
          %v3348 = vsel %vm3124, %v3268, 0.0
          %v3349 = vsel %vm3125, %v3273, 0.0
          %v3350 = vsel %vm3126, %v3273, 0.0
          %v3351 = vsel %vm3127, %v3278, 0.0
          %v3352 = vsel %vm3128, %v3278, 0.0
          %v3353 = vsel %vm3129, %v3283, 0.0
          %v3354 = vsel %vm3130, %v3283, 0.0
          %v3355 = vsel %vm3131, %v3288, 0.0
          %v3356 = vsel %vm3132, %v3288, 0.0
          %v3357 = vsel %vm3133, %v3293, 0.0
          %v3358 = vsel %vm3134, %v3293, 0.0
          %v3360 = vcombine.high %v989, %v989
          %3362 = vmatprep.subr.mxu0 %v3326
          %3363 = vmatpush1.msra.mxu0 %v3325
          %3364 = vmatprep.subr.mxu0 %v3324
          %3365 = vmatpush1.msra.mxu0 %v3323
          %3366 = vmatprep.subr.mxu0 %v3322
          %3367 = vmatpush1.msra.mxu0 %v3321
          %3368 = vmatprep.subr.mxu0 %v3320
          %3369 = vmatpush1.msra.mxu0 %v3319
          %3370 = vmatprep.subr.mxu0 %v3318
          %3371 = vmatpush1.msra.mxu0 %v3317
          %3372 = vmatprep.subr.mxu0 %v3316
          %3373 = vmatpush1.msra.mxu0 %v3315
          %3374 = vmatprep.subr.mxu0 %v3314
          %3375 = vmatpush1.msra.mxu0 %v3313
          %3376 = vmatprep.subr.mxu0 %v3312
          %3377 = vmatpush1.msra.mxu0 %v3311
          %3378 = vmatprep.subr.mxu0 %v3310
          %3379 = vmatpush1.msra.mxu0 %v3309
          %3380 = vmatprep.subr.mxu0 %v3308
          %3381 = vmatpush1.msra.mxu0 %v3307
          %3382 = vmatprep.subr.mxu0 %v3306
          %3383 = vmatpush1.msra.mxu0 %v3305
          %3384 = vmatprep.subr.mxu0 %v3304
          %3385 = vmatpush1.msra.mxu0 %v3303
          %3386 = vmatprep.subr.mxu0 %v3302
          %3387 = vmatpush1.msra.mxu0 %v3301
          %3388 = vmatprep.subr.mxu0 %v3300
          %3389 = vmatpush1.msra.mxu0 %v3299
          %3390 = vmatprep.subr.mxu0 %v3298
          %3391 = vmatpush1.msra.mxu0 %v3297
          %3392 = vmatprep.subr.mxu0 %v3296
          %3393 = vmatpush1.msra.mxu0 %v3295
          %3394 = vmatprep.subr.mxu0 %v3358
          %3395 = vmatpush2.msra.mxu0 %v3357
          %3396 = vmatprep.subr.mxu0 %v3356
          %3397 = vmatpush2.msra.mxu0 %v3355
          %3398 = vmatprep.subr.mxu0 %v3354
          %3399 = vmatpush2.msra.mxu0 %v3353
          %3400 = vmatprep.subr.mxu0 %v3352
          %3401 = vmatpush2.msra.mxu0 %v3351
          %3402 = vmatprep.subr.mxu0 %v3350
          %3403 = vmatpush2.msra.mxu0 %v3349
          %3404 = vmatprep.subr.mxu0 %v3348
          %3405 = vmatpush2.msra.mxu0 %v3347
          %3406 = vmatprep.subr.mxu0 %v3346
          %3407 = vmatpush2.msra.mxu0 %v3345
          %3408 = vmatprep.subr.mxu0 %v3344
          %3409 = vmatpush2.msra.mxu0 %v3343
          %3410 = vmatprep.subr.mxu0 %v3342
          %3411 = vmatpush2.msra.mxu0 %v3341
          %3412 = vmatprep.subr.mxu0 %v3340
          %3413 = vmatpush2.msra.mxu0 %v3339
          %3414 = vmatprep.subr.mxu0 %v3338
          %3415 = vmatpush2.msra.mxu0 %v3337
          %3416 = vmatprep.subr.mxu0 %v3336
          %3417 = vmatpush2.msra.mxu0 %v3335
          %3418 = vmatprep.subr.mxu0 %v3334
          %3419 = vmatpush2.msra.mxu0 %v3333
          %3420 = vmatprep.subr.mxu0 %v3332
          %3421 = vmatpush2.msra.mxu0 %v3331
          %3422 = vmatprep.subr.mxu0 %v3330
          %3423 = vmatpush2.msra.mxu0 %v3329
          %3424 = vmatprep.subr.mxu0 %v3328
          %3425 = vmatpush2.msra.mxu0 %v3327
          %3426 = vmatprep.mubr.f32.mxu0 %v3360
          %3427 = vmatmul.mubr.f32.gmra.mxu0 %v989
          %v3428 = vpop.f32.mrf.mxu0
          %v3429 = vadd.f32 0.0, %v3428
          %v3430 = vpop.f32.mrf.mxu0
          %v3431 = vadd.f32 0.0, %v3430
          %3432 = vdwg.mxu0
          %3433 = vmatprep.subr.mxu0 %v2174
          %3434 = vmatpush1.msra.mxu0 %v2173
          %3435 = vmatprep.subr.mxu0 %v2172
          %3436 = vmatpush1.msra.mxu0 %v2171
          %3437 = vmatprep.subr.mxu0 %v2170
          %3438 = vmatpush1.msra.mxu0 %v2169
          %3439 = vmatprep.subr.mxu0 %v2168
          %3440 = vmatpush1.msra.mxu0 %v2167
          %3441 = vmatprep.subr.mxu0 %v2166
          %3442 = vmatpush1.msra.mxu0 %v2165
          %3443 = vmatprep.subr.mxu0 %v2164
          %3444 = vmatpush1.msra.mxu0 %v2163
          %3445 = vmatprep.subr.mxu0 %v2162
          %3446 = vmatpush1.msra.mxu0 %v2161
          %3447 = vmatprep.subr.mxu0 %v2160
          %3448 = vmatpush1.msra.mxu0 %v2159
          %3449 = vmatprep.subr.mxu0 %v2158
          %3450 = vmatpush1.msra.mxu0 %v2157
          %3451 = vmatprep.subr.mxu0 %v2156
          %3452 = vmatpush1.msra.mxu0 %v2155
          %3453 = vmatprep.subr.mxu0 %v2154
          %3454 = vmatpush1.msra.mxu0 %v2153
          %3455 = vmatprep.subr.mxu0 %v2152
          %3456 = vmatpush1.msra.mxu0 %v2151
          %3457 = vmatprep.subr.mxu0 %v2150
          %3458 = vmatpush1.msra.mxu0 %v2149
          %3459 = vmatprep.subr.mxu0 %v2148
          %3460 = vmatpush1.msra.mxu0 %v2147
          %3461 = vmatprep.subr.mxu0 %v2146
          %3462 = vmatpush1.msra.mxu0 %v2145
          %3463 = vmatprep.subr.mxu0 %v2144
          %3464 = vmatpush1.msra.mxu0 %v2143
          %3465 = vmatprep.subr.mxu0 %v2206
          %3466 = vmatpush2.msra.mxu0 %v2205
          %3467 = vmatprep.subr.mxu0 %v2204
          %3468 = vmatpush2.msra.mxu0 %v2203
          %3469 = vmatprep.subr.mxu0 %v2202
          %3470 = vmatpush2.msra.mxu0 %v2201
          %3471 = vmatprep.subr.mxu0 %v2200
          %3472 = vmatpush2.msra.mxu0 %v2199
          %3473 = vmatprep.subr.mxu0 %v2198
          %3474 = vmatpush2.msra.mxu0 %v2197
          %3475 = vmatprep.subr.mxu0 %v2196
          %3476 = vmatpush2.msra.mxu0 %v2195
          %3477 = vmatprep.subr.mxu0 %v2194
          %3478 = vmatpush2.msra.mxu0 %v2193
          %3479 = vmatprep.subr.mxu0 %v2192
          %3480 = vmatpush2.msra.mxu0 %v2191
          %3481 = vmatprep.subr.mxu0 %v2190
          %3482 = vmatpush2.msra.mxu0 %v2189
          %3483 = vmatprep.subr.mxu0 %v2188
          %3484 = vmatpush2.msra.mxu0 %v2187
          %3485 = vmatprep.subr.mxu0 %v2186
          %3486 = vmatpush2.msra.mxu0 %v2185
          %3487 = vmatprep.subr.mxu0 %v2184
          %3488 = vmatpush2.msra.mxu0 %v2183
          %3489 = vmatprep.subr.mxu0 %v2182
          %3490 = vmatpush2.msra.mxu0 %v2181
          %3491 = vmatprep.subr.mxu0 %v2180
          %3492 = vmatpush2.msra.mxu0 %v2179
          %3493 = vmatprep.subr.mxu0 %v2178
          %3494 = vmatpush2.msra.mxu0 %v2177
          %3495 = vmatprep.subr.mxu0 %v2176
          %3496 = vmatpush2.msra.mxu0 %v2175
          %3497 = vmatprep.mubr.f32.mxu0 %v3360
          %3498 = vmatmul.mubr.f32.gmra.mxu0 %v989
          %v3499 = vpop.f32.mrf.mxu0
          %v3500 = vadd.f32 %v3429, %v3499
          %v3501 = vpop.f32.mrf.mxu0
          %v3502 = vadd.f32 %v3431, %v3501
          %3503 = vdwg.mxu0
          %vm3504 = vmand %vm2239, %vm2431
          %vm3505 = vmand %vm2240, %vm2432
          %vm3506 = vmand %vm2241, %vm2433
          %vm3507 = vmand %vm2242, %vm2434
          %vm3508 = vmand %vm2243, %vm2435
          %vm3509 = vmand %vm2244, %vm2436
          %vm3510 = vmand %vm2245, %vm2437
          %vm3511 = vmand %vm2246, %vm2438
          %vm3512 = vmand %vm2247, %vm2439
          %vm3513 = vmand %vm2248, %vm2440
          %vm3514 = vmand %vm2249, %vm2441
          %vm3515 = vmand %vm2250, %vm2442
          %vm3516 = vmand %vm2251, %vm2443
          %vm3517 = vmand %vm2252, %vm2444
          %vm3518 = vmand %vm2253, %vm2445
          %vm3519 = vmand %vm2254, %vm2446
          %vm3520 = vmand %vm2255, %vm2447
          %vm3521 = vmand %vm2256, %vm2448
          %vm3522 = vmand %vm2257, %vm2449
          %vm3523 = vmand %vm2258, %vm2450
          %vm3524 = vmand %vm2259, %vm2451
          %vm3525 = vmand %vm2260, %vm2452
          %vm3526 = vmand %vm2261, %vm2453
          %vm3527 = vmand %vm2262, %vm2454
          %vm3528 = vmand %vm2263, %vm2455
          %vm3529 = vmand %vm2264, %vm2456
          %vm3530 = vmand %vm2265, %vm2457
          %vm3531 = vmand %vm2266, %vm2458
          %vm3532 = vmand %vm2267, %vm2459
          %vm3533 = vmand %vm2268, %vm2460
          %vm3534 = vmand %vm2269, %vm2461
          %vm3535 = vmand %vm2270, %vm2462
          %vm3536 = vmand %vm3504, %vm1214
          %vm3537 = vmand %vm3505, %vm1215
          %vm3538 = vmand %vm3506, %vm1216
          %vm3539 = vmand %vm3507, %vm1217
          %vm3540 = vmand %vm3508, %vm1218
          %vm3541 = vmand %vm3509, %vm1219
          %vm3542 = vmand %vm3510, %vm1220
          %vm3543 = vmand %vm3511, %vm1221
          %vm3544 = vmand %vm3512, %vm1222
          %vm3545 = vmand %vm3513, %vm1223
          %vm3546 = vmand %vm3514, %vm1224
          %vm3547 = vmand %vm3515, %vm1225
          %vm3548 = vmand %vm3516, %vm1226
          %vm3549 = vmand %vm3517, %vm1227
          %vm3550 = vmand %vm3518, %vm1228
          %vm3551 = vmand %vm3519, %vm1229
          %vm3552 = vmand %vm3520, %vm1230
          %vm3553 = vmand %vm3521, %vm1231
          %vm3554 = vmand %vm3522, %vm1232
          %vm3555 = vmand %vm3523, %vm1233
          %vm3556 = vmand %vm3524, %vm1234
          %vm3557 = vmand %vm3525, %vm1235
          %vm3558 = vmand %vm3526, %vm1236
          %vm3559 = vmand %vm3527, %vm1237
          %vm3560 = vmand %vm3528, %vm1238
          %vm3561 = vmand %vm3529, %vm1239
          %vm3562 = vmand %vm3530, %vm1240
          %vm3563 = vmand %vm3531, %vm1241
          %vm3564 = vmand %vm3532, %vm1242
          %vm3565 = vmand %vm3533, %vm1243
          %vm3566 = vmand %vm3534, %vm1244
          %vm3567 = vmand %vm3535, %vm1245
          %vm3568 = vmand %vm3536, %vm1374
          %vm3569 = vmand %vm3537, %vm1375
          %vm3570 = vmand %vm3538, %vm1376
          %vm3571 = vmand %vm3539, %vm1377
          %vm3572 = vmand %vm3540, %vm1378
          %vm3573 = vmand %vm3541, %vm1379
          %vm3574 = vmand %vm3542, %vm1380
          %vm3575 = vmand %vm3543, %vm1381
          %vm3576 = vmand %vm3544, %vm1382
          %vm3577 = vmand %vm3545, %vm1383
          %vm3578 = vmand %vm3546, %vm1384
          %vm3579 = vmand %vm3547, %vm1385
          %vm3580 = vmand %vm3548, %vm1386
          %vm3581 = vmand %vm3549, %vm1387
          %vm3582 = vmand %vm3550, %vm1388
          %vm3583 = vmand %vm3551, %vm1389
          %vm3584 = vmand %vm3552, %vm1390
          %vm3585 = vmand %vm3553, %vm1391
          %vm3586 = vmand %vm3554, %vm1392
          %vm3587 = vmand %vm3555, %vm1393
          %vm3588 = vmand %vm3556, %vm1394
          %vm3589 = vmand %vm3557, %vm1395
          %vm3590 = vmand %vm3558, %vm1396
          %vm3591 = vmand %vm3559, %vm1397
          %vm3592 = vmand %vm3560, %vm1398
          %vm3593 = vmand %vm3561, %vm1399
          %vm3594 = vmand %vm3562, %vm1400
          %vm3595 = vmand %vm3563, %vm1401
          %vm3596 = vmand %vm3564, %vm1402
          %vm3597 = vmand %vm3565, %vm1403
          %vm3598 = vmand %vm3566, %vm1404
          %vm3599 = vmand %vm3567, %vm1405
          %vm3600 = vmand %vm3568, %vm893
          %vm3601 = vmand %vm3569, %vm894
          %vm3602 = vmand %vm3570, %vm895
          %vm3603 = vmand %vm3571, %vm896
          %vm3604 = vmand %vm3572, %vm897
          %vm3605 = vmand %vm3573, %vm898
          %vm3606 = vmand %vm3574, %vm899
          %vm3607 = vmand %vm3575, %vm900
          %vm3608 = vmand %vm3576, %vm901
          %vm3609 = vmand %vm3577, %vm902
          %vm3610 = vmand %vm3578, %vm903
          %vm3611 = vmand %vm3579, %vm904
          %vm3612 = vmand %vm3580, %vm905
          %vm3613 = vmand %vm3581, %vm906
          %vm3614 = vmand %vm3582, %vm907
          %vm3615 = vmand %vm3583, %vm908
          %vm3616 = vmand %vm3584, %vm909
          %vm3617 = vmand %vm3585, %vm910
          %vm3618 = vmand %vm3586, %vm911
          %vm3619 = vmand %vm3587, %vm912
          %vm3620 = vmand %vm3588, %vm913
          %vm3621 = vmand %vm3589, %vm914
          %vm3622 = vmand %vm3590, %vm915
          %vm3623 = vmand %vm3591, %vm916
          %vm3624 = vmand %vm3592, %vm917
          %vm3625 = vmand %vm3593, %vm918
          %vm3626 = vmand %vm3594, %vm919
          %vm3627 = vmand %vm3595, %vm920
          %vm3628 = vmand %vm3596, %vm921
          %vm3629 = vmand %vm3597, %vm922
          %vm3630 = vmand %vm3598, %vm923
          %vm3631 = vmand %vm3599, %vm924
          %v3632 = vmul.f32 %v381, %v1503
          %v3633 = vmul.f32 %v382, %v1505
          %v3634 = vmul.f32 %v383, %v1507
          %v3635 = vmul.f32 %v384, %v1509
          %v3636 = vmul.f32 %v385, %v1511
          %v3637 = vmul.f32 %v386, %v1513
          %v3638 = vmul.f32 %v387, %v1515
          %v3639 = vmul.f32 %v388, %v1517
          %v3640 = vmul.f32 %v389, %v1519
          %v3641 = vmul.f32 %v390, %v1521
          %v3642 = vmul.f32 %v391, %v1523
          %v3643 = vmul.f32 %v392, %v1525
          %v3644 = vmul.f32 %v393, %v1527
          %v3645 = vmul.f32 %v394, %v1529
          %v3646 = vmul.f32 %v395, %v1531
          %v3647 = vmul.f32 %v396, %v1533
          %v3648 = vmul.f32 %v397, %v1535
          %v3649 = vmul.f32 %v398, %v1537
          %v3650 = vmul.f32 %v399, %v1539
          %v3651 = vmul.f32 %v400, %v1541
          %v3652 = vmul.f32 %v401, %v1543
          %v3653 = vmul.f32 %v402, %v1545
          %v3654 = vmul.f32 %v403, %v1547
          %v3655 = vmul.f32 %v404, %v1549
          %v3656 = vmul.f32 %v405, %v1551
          %v3657 = vmul.f32 %v406, %v1553
          %v3658 = vmul.f32 %v407, %v1555
          %v3659 = vmul.f32 %v408, %v1557
          %v3660 = vmul.f32 %v409, %v1559
          %v3661 = vmul.f32 %v410, %v1561
          %v3662 = vmul.f32 %v411, %v1563
          %v3663 = vmul.f32 %v412, %v1565
          %v3664 = vsel %vm3600, %v3632, 0.0
          %v3665 = vsel %vm3601, %v3633, 0.0
          %v3666 = vsel %vm3602, %v3634, 0.0
          %v3667 = vsel %vm3603, %v3635, 0.0
          %v3668 = vsel %vm3604, %v3636, 0.0
          %v3669 = vsel %vm3605, %v3637, 0.0
          %v3670 = vsel %vm3606, %v3638, 0.0
          %v3671 = vsel %vm3607, %v3639, 0.0
          %v3672 = vsel %vm3608, %v3640, 0.0
          %v3673 = vsel %vm3609, %v3641, 0.0
          %v3674 = vsel %vm3610, %v3642, 0.0
          %v3675 = vsel %vm3611, %v3643, 0.0
          %v3676 = vsel %vm3612, %v3644, 0.0
          %v3677 = vsel %vm3613, %v3645, 0.0
          %v3678 = vsel %vm3614, %v3646, 0.0
          %v3679 = vsel %vm3615, %v3647, 0.0
          %v3680 = vsel %vm3616, %v3648, 0.0
          %v3681 = vsel %vm3617, %v3649, 0.0
          %v3682 = vsel %vm3618, %v3650, 0.0
          %v3683 = vsel %vm3619, %v3651, 0.0
          %v3684 = vsel %vm3620, %v3652, 0.0
          %v3685 = vsel %vm3621, %v3653, 0.0
          %v3686 = vsel %vm3622, %v3654, 0.0
          %v3687 = vsel %vm3623, %v3655, 0.0
          %v3688 = vsel %vm3624, %v3656, 0.0
          %v3689 = vsel %vm3625, %v3657, 0.0
          %v3690 = vsel %vm3626, %v3658, 0.0
          %v3691 = vsel %vm3627, %v3659, 0.0
          %v3692 = vsel %vm3628, %v3660, 0.0
          %v3693 = vsel %vm3629, %v3661, 0.0
          %v3694 = vsel %vm3630, %v3662, 0.0
          %v3695 = vsel %vm3631, %v3663, 0.0
          %v3696 = vmul.u32 %v2207, 16
          %v3697 = vmul.u32 %v2208, 16
          %v3698 = vmul.u32 %v2209, 16
          %v3699 = vmul.u32 %v2210, 16
          %v3700 = vmul.u32 %v2211, 16
          %v3701 = vmul.u32 %v2212, 16
          %v3702 = vmul.u32 %v2213, 16
          %v3703 = vmul.u32 %v2214, 16
          %v3704 = vmul.u32 %v2215, 16
          %v3705 = vmul.u32 %v2216, 16
          %v3706 = vmul.u32 %v2217, 16
          %v3707 = vmul.u32 %v2218, 16
          %v3708 = vmul.u32 %v2219, 16
          %v3709 = vmul.u32 %v2220, 16
          %v3710 = vmul.u32 %v2221, 16
          %v3711 = vmul.u32 %v2222, 16
          %v3712 = vmul.u32 %v2223, 16
          %v3713 = vmul.u32 %v2224, 16
          %v3714 = vmul.u32 %v2225, 16
          %v3715 = vmul.u32 %v2226, 16
          %v3716 = vmul.u32 %v2227, 16
          %v3717 = vmul.u32 %v2228, 16
          %v3718 = vmul.u32 %v2229, 16
          %v3719 = vmul.u32 %v2230, 16
          %v3720 = vmul.u32 %v2231, 16
          %v3721 = vmul.u32 %v2232, 16
          %v3722 = vmul.u32 %v2233, 16
          %v3723 = vmul.u32 %v2234, 16
          %v3724 = vmul.u32 %v2235, 16
          %v3725 = vmul.u32 %v2236, 16
          %v3726 = vmul.u32 %v2237, 16
          %v3727 = vmul.u32 %v2238, 16
          %v3728 = vadd.s32 %v3696, %v1695
          %v3729 = vadd.s32 %v3697, %v1697
          %v3730 = vadd.s32 %v3698, %v1699
          %v3731 = vadd.s32 %v3699, %v1701
          %v3732 = vadd.s32 %v3700, %v1703
          %v3733 = vadd.s32 %v3701, %v1705
          %v3734 = vadd.s32 %v3702, %v1707
          %v3735 = vadd.s32 %v3703, %v1709
          %v3736 = vadd.s32 %v3704, %v1711
          %v3737 = vadd.s32 %v3705, %v1713
          %v3738 = vadd.s32 %v3706, %v1715
          %v3739 = vadd.s32 %v3707, %v1717
          %v3740 = vadd.s32 %v3708, %v1719
          %v3741 = vadd.s32 %v3709, %v1721
          %v3742 = vadd.s32 %v3710, %v1723
          %v3743 = vadd.s32 %v3711, %v1725
          %v3744 = vadd.s32 %v3712, %v1727
          %v3745 = vadd.s32 %v3713, %v1729
          %v3746 = vadd.s32 %v3714, %v1731
          %v3747 = vadd.s32 %v3715, %v1733
          %v3748 = vadd.s32 %v3716, %v1735
          %v3749 = vadd.s32 %v3717, %v1737
          %v3750 = vadd.s32 %v3718, %v1739
          %v3751 = vadd.s32 %v3719, %v1741
          %v3752 = vadd.s32 %v3720, %v1743
          %v3753 = vadd.s32 %v3721, %v1745
          %v3754 = vadd.s32 %v3722, %v1747
          %v3755 = vadd.s32 %v3723, %v1749
          %v3756 = vadd.s32 %v3724, %v1751
          %v3757 = vadd.s32 %v3725, %v1753
          %v3758 = vadd.s32 %v3726, %v1755
          %v3759 = vadd.s32 %v3727, %v1757
          %v3760 = vsub.s32 %v3728, %v1790
          %v3761 = vsub.s32 %v3729, %v1790
          %v3762 = vsub.s32 %v3730, %v1790
          %v3763 = vsub.s32 %v3731, %v1790
          %v3764 = vsub.s32 %v3732, %v1790
          %v3765 = vsub.s32 %v3733, %v1790
          %v3766 = vsub.s32 %v3734, %v1790
          %v3767 = vsub.s32 %v3735, %v1790
          %v3768 = vsub.s32 %v3736, %v1790
          %v3769 = vsub.s32 %v3737, %v1790
          %v3770 = vsub.s32 %v3738, %v1790
          %v3771 = vsub.s32 %v3739, %v1790
          %v3772 = vsub.s32 %v3740, %v1790
          %v3773 = vsub.s32 %v3741, %v1790
          %v3774 = vsub.s32 %v3742, %v1790
          %v3775 = vsub.s32 %v3743, %v1790
          %v3776 = vsub.s32 %v3744, %v1790
          %v3777 = vsub.s32 %v3745, %v1790
          %v3778 = vsub.s32 %v3746, %v1790
          %v3779 = vsub.s32 %v3747, %v1790
          %v3780 = vsub.s32 %v3748, %v1790
          %v3781 = vsub.s32 %v3749, %v1790
          %v3782 = vsub.s32 %v3750, %v1790
          %v3783 = vsub.s32 %v3751, %v1790
          %v3784 = vsub.s32 %v3752, %v1790
          %v3785 = vsub.s32 %v3753, %v1790
          %v3786 = vsub.s32 %v3754, %v1790
          %v3787 = vsub.s32 %v3755, %v1790
          %v3788 = vsub.s32 %v3756, %v1790
          %v3789 = vsub.s32 %v3757, %v1790
          %v3790 = vsub.s32 %v3758, %v1790
          %v3791 = vsub.s32 %v3759, %v1790
          %3792 = vset.pattern.permute.xlu0 0
          %3793 = vperm.xlu0 %3792, %v3760
          %v3794 = vpop.permute.xlu0 %3793
          %3795 = vset.pattern.permute.xlu0 0
          %3796 = vperm.xlu0 %3795, %v3761
          %v3797 = vpop.permute.xlu0 %3796
          %3798 = vset.pattern.permute.xlu0 0
          %3799 = vperm.xlu0 %3798, %v3762
          %v3800 = vpop.permute.xlu0 %3799
          %3801 = vset.pattern.permute.xlu0 0
          %3802 = vperm.xlu0 %3801, %v3763
          %v3803 = vpop.permute.xlu0 %3802
          %3804 = vset.pattern.permute.xlu0 0
          %3805 = vperm.xlu0 %3804, %v3764
          %v3806 = vpop.permute.xlu0 %3805
          %3807 = vset.pattern.permute.xlu0 0
          %3808 = vperm.xlu0 %3807, %v3765
          %v3809 = vpop.permute.xlu0 %3808
          %3810 = vset.pattern.permute.xlu0 0
          %3811 = vperm.xlu0 %3810, %v3766
          %v3812 = vpop.permute.xlu0 %3811
          %3813 = vset.pattern.permute.xlu0 0
          %3814 = vperm.xlu0 %3813, %v3767
          %v3815 = vpop.permute.xlu0 %3814
          %3816 = vset.pattern.permute.xlu0 0
          %3817 = vperm.xlu0 %3816, %v3768
          %v3818 = vpop.permute.xlu0 %3817
          %3819 = vset.pattern.permute.xlu0 0
          %3820 = vperm.xlu0 %3819, %v3769
          %v3821 = vpop.permute.xlu0 %3820
          %3822 = vset.pattern.permute.xlu0 0
          %3823 = vperm.xlu0 %3822, %v3770
          %v3824 = vpop.permute.xlu0 %3823
          %3825 = vset.pattern.permute.xlu0 0
          %3826 = vperm.xlu0 %3825, %v3771
          %v3827 = vpop.permute.xlu0 %3826
          %3828 = vset.pattern.permute.xlu0 0
          %3829 = vperm.xlu0 %3828, %v3772
          %v3830 = vpop.permute.xlu0 %3829
          %3831 = vset.pattern.permute.xlu0 0
          %3832 = vperm.xlu0 %3831, %v3773
          %v3833 = vpop.permute.xlu0 %3832
          %3834 = vset.pattern.permute.xlu0 0
          %3835 = vperm.xlu0 %3834, %v3774
          %v3836 = vpop.permute.xlu0 %3835
          %3837 = vset.pattern.permute.xlu0 0
          %3838 = vperm.xlu0 %3837, %v3775
          %v3839 = vpop.permute.xlu0 %3838
          %3840 = vset.pattern.permute.xlu0 0
          %3841 = vperm.xlu0 %3840, %v3776
          %v3842 = vpop.permute.xlu0 %3841
          %3843 = vset.pattern.permute.xlu0 0
          %3844 = vperm.xlu0 %3843, %v3777
          %v3845 = vpop.permute.xlu0 %3844
          %3846 = vset.pattern.permute.xlu0 0
          %3847 = vperm.xlu0 %3846, %v3778
          %v3848 = vpop.permute.xlu0 %3847
          %3849 = vset.pattern.permute.xlu0 0
          %3850 = vperm.xlu0 %3849, %v3779
          %v3851 = vpop.permute.xlu0 %3850
          %3852 = vset.pattern.permute.xlu0 0
          %3853 = vperm.xlu0 %3852, %v3780
          %v3854 = vpop.permute.xlu0 %3853
          %3855 = vset.pattern.permute.xlu0 0
          %3856 = vperm.xlu0 %3855, %v3781
          %v3857 = vpop.permute.xlu0 %3856
          %3858 = vset.pattern.permute.xlu0 0
          %3859 = vperm.xlu0 %3858, %v3782
          %v3860 = vpop.permute.xlu0 %3859
          %3861 = vset.pattern.permute.xlu0 0
          %3862 = vperm.xlu0 %3861, %v3783
          %v3863 = vpop.permute.xlu0 %3862
          %3864 = vset.pattern.permute.xlu0 0
          %3865 = vperm.xlu0 %3864, %v3784
          %v3866 = vpop.permute.xlu0 %3865
          %3867 = vset.pattern.permute.xlu0 0
          %3868 = vperm.xlu0 %3867, %v3785
          %v3869 = vpop.permute.xlu0 %3868
          %3870 = vset.pattern.permute.xlu0 0
          %3871 = vperm.xlu0 %3870, %v3786
          %v3872 = vpop.permute.xlu0 %3871
          %3873 = vset.pattern.permute.xlu0 0
          %3874 = vperm.xlu0 %3873, %v3787
          %v3875 = vpop.permute.xlu0 %3874
          %3876 = vset.pattern.permute.xlu0 0
          %3877 = vperm.xlu0 %3876, %v3788
          %v3878 = vpop.permute.xlu0 %3877
          %3879 = vset.pattern.permute.xlu0 0
          %3880 = vperm.xlu0 %3879, %v3789
          %v3881 = vpop.permute.xlu0 %3880
          %3882 = vset.pattern.permute.xlu0 0
          %3883 = vperm.xlu0 %3882, %v3790
          %v3884 = vpop.permute.xlu0 %3883
          %3885 = vset.pattern.permute.xlu0 0
          %3886 = vperm.xlu0 %3885, %v3791
          %v3887 = vpop.permute.xlu0 %3886
          %vm3888 = vcmp.eq.s32.totalorder %v925, %v3794
          %vm3889 = vcmp.eq.s32.totalorder %v926, %v3794
          %vm3890 = vcmp.eq.s32.totalorder %v927, %v3797
          %vm3891 = vcmp.eq.s32.totalorder %v928, %v3797
          %vm3892 = vcmp.eq.s32.totalorder %v929, %v3800
          %vm3893 = vcmp.eq.s32.totalorder %v930, %v3800
          %vm3894 = vcmp.eq.s32.totalorder %v931, %v3803
          %vm3895 = vcmp.eq.s32.totalorder %v932, %v3803
          %vm3896 = vcmp.eq.s32.totalorder %v933, %v3806
          %vm3897 = vcmp.eq.s32.totalorder %v934, %v3806
          %vm3898 = vcmp.eq.s32.totalorder %v935, %v3809
          %vm3899 = vcmp.eq.s32.totalorder %v936, %v3809
          %vm3900 = vcmp.eq.s32.totalorder %v937, %v3812
          %vm3901 = vcmp.eq.s32.totalorder %v938, %v3812
          %vm3902 = vcmp.eq.s32.totalorder %v939, %v3815
          %vm3903 = vcmp.eq.s32.totalorder %v940, %v3815
          %vm3904 = vcmp.eq.s32.totalorder %v941, %v3818
          %vm3905 = vcmp.eq.s32.totalorder %v942, %v3818
          %vm3906 = vcmp.eq.s32.totalorder %v943, %v3821
          %vm3907 = vcmp.eq.s32.totalorder %v944, %v3821
          %vm3908 = vcmp.eq.s32.totalorder %v945, %v3824
          %vm3909 = vcmp.eq.s32.totalorder %v946, %v3824
          %vm3910 = vcmp.eq.s32.totalorder %v947, %v3827
          %vm3911 = vcmp.eq.s32.totalorder %v948, %v3827
          %vm3912 = vcmp.eq.s32.totalorder %v949, %v3830
          %vm3913 = vcmp.eq.s32.totalorder %v950, %v3830
          %vm3914 = vcmp.eq.s32.totalorder %v951, %v3833
          %vm3915 = vcmp.eq.s32.totalorder %v952, %v3833
          %vm3916 = vcmp.eq.s32.totalorder %v953, %v3836
          %vm3917 = vcmp.eq.s32.totalorder %v954, %v3836
          %vm3918 = vcmp.eq.s32.totalorder %v955, %v3839
          %vm3919 = vcmp.eq.s32.totalorder %v956, %v3839
          %vm3920 = vcmp.eq.s32.totalorder %v957, %v3842
          %vm3921 = vcmp.eq.s32.totalorder %v958, %v3842
          %vm3922 = vcmp.eq.s32.totalorder %v959, %v3845
          %vm3923 = vcmp.eq.s32.totalorder %v960, %v3845
          %vm3924 = vcmp.eq.s32.totalorder %v961, %v3848
          %vm3925 = vcmp.eq.s32.totalorder %v962, %v3848
          %vm3926 = vcmp.eq.s32.totalorder %v963, %v3851
          %vm3927 = vcmp.eq.s32.totalorder %v964, %v3851
          %vm3928 = vcmp.eq.s32.totalorder %v965, %v3854
          %vm3929 = vcmp.eq.s32.totalorder %v966, %v3854
          %vm3930 = vcmp.eq.s32.totalorder %v967, %v3857
          %vm3931 = vcmp.eq.s32.totalorder %v968, %v3857
          %vm3932 = vcmp.eq.s32.totalorder %v969, %v3860
          %vm3933 = vcmp.eq.s32.totalorder %v970, %v3860
          %vm3934 = vcmp.eq.s32.totalorder %v971, %v3863
          %vm3935 = vcmp.eq.s32.totalorder %v972, %v3863
          %vm3936 = vcmp.eq.s32.totalorder %v973, %v3866
          %vm3937 = vcmp.eq.s32.totalorder %v974, %v3866
          %vm3938 = vcmp.eq.s32.totalorder %v975, %v3869
          %vm3939 = vcmp.eq.s32.totalorder %v976, %v3869
          %vm3940 = vcmp.eq.s32.totalorder %v977, %v3872
          %vm3941 = vcmp.eq.s32.totalorder %v978, %v3872
          %vm3942 = vcmp.eq.s32.totalorder %v979, %v3875
          %vm3943 = vcmp.eq.s32.totalorder %v980, %v3875
          %vm3944 = vcmp.eq.s32.totalorder %v981, %v3878
          %vm3945 = vcmp.eq.s32.totalorder %v982, %v3878
          %vm3946 = vcmp.eq.s32.totalorder %v983, %v3881
          %vm3947 = vcmp.eq.s32.totalorder %v984, %v3881
          %vm3948 = vcmp.eq.s32.totalorder %v985, %v3884
          %vm3949 = vcmp.eq.s32.totalorder %v986, %v3884
          %vm3950 = vcmp.eq.s32.totalorder %v987, %v3887
          %vm3951 = vcmp.eq.s32.totalorder %v988, %v3887
          %3953 = vset.pattern.permute.xlu0 0
          %3954 = vperm.xlu0 %3953, %v3664
          %v3955 = vpop.permute.xlu0 %3954
          %3958 = vset.pattern.permute.xlu0 0
          %3959 = vperm.xlu0 %3958, %v3665
          %v3960 = vpop.permute.xlu0 %3959
          %3963 = vset.pattern.permute.xlu0 0
          %3964 = vperm.xlu0 %3963, %v3666
          %v3965 = vpop.permute.xlu0 %3964
          %3968 = vset.pattern.permute.xlu0 0
          %3969 = vperm.xlu0 %3968, %v3667
          %v3970 = vpop.permute.xlu0 %3969
          %3973 = vset.pattern.permute.xlu0 0
          %3974 = vperm.xlu0 %3973, %v3668
          %v3975 = vpop.permute.xlu0 %3974
          %3978 = vset.pattern.permute.xlu0 0
          %3979 = vperm.xlu0 %3978, %v3669
          %v3980 = vpop.permute.xlu0 %3979
          %3983 = vset.pattern.permute.xlu0 0
          %3984 = vperm.xlu0 %3983, %v3670
          %v3985 = vpop.permute.xlu0 %3984
          %3988 = vset.pattern.permute.xlu0 0
          %3989 = vperm.xlu0 %3988, %v3671
          %v3990 = vpop.permute.xlu0 %3989
          %3993 = vset.pattern.permute.xlu0 0
          %3994 = vperm.xlu0 %3993, %v3672
          %v3995 = vpop.permute.xlu0 %3994
          %3998 = vset.pattern.permute.xlu0 0
          %3999 = vperm.xlu0 %3998, %v3673
          %v4000 = vpop.permute.xlu0 %3999
          %4003 = vset.pattern.permute.xlu0 0
          %4004 = vperm.xlu0 %4003, %v3674
          %v4005 = vpop.permute.xlu0 %4004
          %4008 = vset.pattern.permute.xlu0 0
          %4009 = vperm.xlu0 %4008, %v3675
          %v4010 = vpop.permute.xlu0 %4009
          %4013 = vset.pattern.permute.xlu0 0
          %4014 = vperm.xlu0 %4013, %v3676
          %v4015 = vpop.permute.xlu0 %4014
          %4018 = vset.pattern.permute.xlu0 0
          %4019 = vperm.xlu0 %4018, %v3677
          %v4020 = vpop.permute.xlu0 %4019
          %4023 = vset.pattern.permute.xlu0 0
          %4024 = vperm.xlu0 %4023, %v3678
          %v4025 = vpop.permute.xlu0 %4024
          %4028 = vset.pattern.permute.xlu0 0
          %4029 = vperm.xlu0 %4028, %v3679
          %v4030 = vpop.permute.xlu0 %4029
          %4033 = vset.pattern.permute.xlu0 0
          %4034 = vperm.xlu0 %4033, %v3680
          %v4035 = vpop.permute.xlu0 %4034
          %4038 = vset.pattern.permute.xlu0 0
          %4039 = vperm.xlu0 %4038, %v3681
          %v4040 = vpop.permute.xlu0 %4039
          %4043 = vset.pattern.permute.xlu0 0
          %4044 = vperm.xlu0 %4043, %v3682
          %v4045 = vpop.permute.xlu0 %4044
          %4048 = vset.pattern.permute.xlu0 0
          %4049 = vperm.xlu0 %4048, %v3683
          %v4050 = vpop.permute.xlu0 %4049
          %4053 = vset.pattern.permute.xlu0 0
          %4054 = vperm.xlu0 %4053, %v3684
          %v4055 = vpop.permute.xlu0 %4054
          %4058 = vset.pattern.permute.xlu0 0
          %4059 = vperm.xlu0 %4058, %v3685
          %v4060 = vpop.permute.xlu0 %4059
          %4063 = vset.pattern.permute.xlu0 0
          %4064 = vperm.xlu0 %4063, %v3686
          %v4065 = vpop.permute.xlu0 %4064
          %4068 = vset.pattern.permute.xlu0 0
          %4069 = vperm.xlu0 %4068, %v3687
          %v4070 = vpop.permute.xlu0 %4069
          %4073 = vset.pattern.permute.xlu0 0
          %4074 = vperm.xlu0 %4073, %v3688
          %v4075 = vpop.permute.xlu0 %4074
          %4078 = vset.pattern.permute.xlu0 0
          %4079 = vperm.xlu0 %4078, %v3689
          %v4080 = vpop.permute.xlu0 %4079
          %4083 = vset.pattern.permute.xlu0 0
          %4084 = vperm.xlu0 %4083, %v3690
          %v4085 = vpop.permute.xlu0 %4084
          %4088 = vset.pattern.permute.xlu0 0
          %4089 = vperm.xlu0 %4088, %v3691
          %v4090 = vpop.permute.xlu0 %4089
          %4093 = vset.pattern.permute.xlu0 0
          %4094 = vperm.xlu0 %4093, %v3692
          %v4095 = vpop.permute.xlu0 %4094
          %4098 = vset.pattern.permute.xlu0 0
          %4099 = vperm.xlu0 %4098, %v3693
          %v4100 = vpop.permute.xlu0 %4099
          %4103 = vset.pattern.permute.xlu0 0
          %4104 = vperm.xlu0 %4103, %v3694
          %v4105 = vpop.permute.xlu0 %4104
          %4108 = vset.pattern.permute.xlu0 0
          %4109 = vperm.xlu0 %4108, %v3695
          %v4110 = vpop.permute.xlu0 %4109
          %v4112 = vsel %vm3888, %v3955, 0.0
          %v4113 = vsel %vm3889, %v3955, 0.0
          %v4114 = vsel %vm3890, %v3960, 0.0
          %v4115 = vsel %vm3891, %v3960, 0.0
          %v4116 = vsel %vm3892, %v3965, 0.0
          %v4117 = vsel %vm3893, %v3965, 0.0
          %v4118 = vsel %vm3894, %v3970, 0.0
          %v4119 = vsel %vm3895, %v3970, 0.0
          %v4120 = vsel %vm3896, %v3975, 0.0
          %v4121 = vsel %vm3897, %v3975, 0.0
          %v4122 = vsel %vm3898, %v3980, 0.0
          %v4123 = vsel %vm3899, %v3980, 0.0
          %v4124 = vsel %vm3900, %v3985, 0.0
          %v4125 = vsel %vm3901, %v3985, 0.0
          %v4126 = vsel %vm3902, %v3990, 0.0
          %v4127 = vsel %vm3903, %v3990, 0.0
          %v4128 = vsel %vm3904, %v3995, 0.0
          %v4129 = vsel %vm3905, %v3995, 0.0
          %v4130 = vsel %vm3906, %v4000, 0.0
          %v4131 = vsel %vm3907, %v4000, 0.0
          %v4132 = vsel %vm3908, %v4005, 0.0
          %v4133 = vsel %vm3909, %v4005, 0.0
          %v4134 = vsel %vm3910, %v4010, 0.0
          %v4135 = vsel %vm3911, %v4010, 0.0
          %v4136 = vsel %vm3912, %v4015, 0.0
          %v4137 = vsel %vm3913, %v4015, 0.0
          %v4138 = vsel %vm3914, %v4020, 0.0
          %v4139 = vsel %vm3915, %v4020, 0.0
          %v4140 = vsel %vm3916, %v4025, 0.0
          %v4141 = vsel %vm3917, %v4025, 0.0
          %v4142 = vsel %vm3918, %v4030, 0.0
          %v4143 = vsel %vm3919, %v4030, 0.0
          %v4144 = vsel %vm3920, %v4035, 0.0
          %v4145 = vsel %vm3921, %v4035, 0.0
          %v4146 = vsel %vm3922, %v4040, 0.0
          %v4147 = vsel %vm3923, %v4040, 0.0
          %v4148 = vsel %vm3924, %v4045, 0.0
          %v4149 = vsel %vm3925, %v4045, 0.0
          %v4150 = vsel %vm3926, %v4050, 0.0
          %v4151 = vsel %vm3927, %v4050, 0.0
          %v4152 = vsel %vm3928, %v4055, 0.0
          %v4153 = vsel %vm3929, %v4055, 0.0
          %v4154 = vsel %vm3930, %v4060, 0.0
          %v4155 = vsel %vm3931, %v4060, 0.0
          %v4156 = vsel %vm3932, %v4065, 0.0
          %v4157 = vsel %vm3933, %v4065, 0.0
          %v4158 = vsel %vm3934, %v4070, 0.0
          %v4159 = vsel %vm3935, %v4070, 0.0
          %v4160 = vsel %vm3936, %v4075, 0.0
          %v4161 = vsel %vm3937, %v4075, 0.0
          %v4162 = vsel %vm3938, %v4080, 0.0
          %v4163 = vsel %vm3939, %v4080, 0.0
          %v4164 = vsel %vm3940, %v4085, 0.0
          %v4165 = vsel %vm3941, %v4085, 0.0
          %v4166 = vsel %vm3942, %v4090, 0.0
          %v4167 = vsel %vm3943, %v4090, 0.0
          %v4168 = vsel %vm3944, %v4095, 0.0
          %v4169 = vsel %vm3945, %v4095, 0.0
          %v4170 = vsel %vm3946, %v4100, 0.0
          %v4171 = vsel %vm3947, %v4100, 0.0
          %v4172 = vsel %vm3948, %v4105, 0.0
          %v4173 = vsel %vm3949, %v4105, 0.0
          %v4174 = vsel %vm3950, %v4110, 0.0
          %v4175 = vsel %vm3951, %v4110, 0.0
          %4176 = vmatprep.subr.mxu0 %v4143
          %4177 = vmatpush1.msra.mxu0 %v4142
          %4178 = vmatprep.subr.mxu0 %v4141
          %4179 = vmatpush1.msra.mxu0 %v4140
          %4180 = vmatprep.subr.mxu0 %v4139
          %4181 = vmatpush1.msra.mxu0 %v4138
          %4182 = vmatprep.subr.mxu0 %v4137
          %4183 = vmatpush1.msra.mxu0 %v4136
          %4184 = vmatprep.subr.mxu0 %v4135
          %4185 = vmatpush1.msra.mxu0 %v4134
          %4186 = vmatprep.subr.mxu0 %v4133
          %4187 = vmatpush1.msra.mxu0 %v4132
          %4188 = vmatprep.subr.mxu0 %v4131
          %4189 = vmatpush1.msra.mxu0 %v4130
          %4190 = vmatprep.subr.mxu0 %v4129
          %4191 = vmatpush1.msra.mxu0 %v4128
          %4192 = vmatprep.subr.mxu0 %v4127
          %4193 = vmatpush1.msra.mxu0 %v4126
          %4194 = vmatprep.subr.mxu0 %v4125
          %4195 = vmatpush1.msra.mxu0 %v4124
          %4196 = vmatprep.subr.mxu0 %v4123
          %4197 = vmatpush1.msra.mxu0 %v4122
          %4198 = vmatprep.subr.mxu0 %v4121
          %4199 = vmatpush1.msra.mxu0 %v4120
          %4200 = vmatprep.subr.mxu0 %v4119
          %4201 = vmatpush1.msra.mxu0 %v4118
          %4202 = vmatprep.subr.mxu0 %v4117
          %4203 = vmatpush1.msra.mxu0 %v4116
          %4204 = vmatprep.subr.mxu0 %v4115
          %4205 = vmatpush1.msra.mxu0 %v4114
          %4206 = vmatprep.subr.mxu0 %v4113
          %4207 = vmatpush1.msra.mxu0 %v4112
          %4208 = vmatprep.subr.mxu0 %v4175
          %4209 = vmatpush2.msra.mxu0 %v4174
          %4210 = vmatprep.subr.mxu0 %v4173
          %4211 = vmatpush2.msra.mxu0 %v4172
          %4212 = vmatprep.subr.mxu0 %v4171
          %4213 = vmatpush2.msra.mxu0 %v4170
          %4214 = vmatprep.subr.mxu0 %v4169
          %4215 = vmatpush2.msra.mxu0 %v4168
          %4216 = vmatprep.subr.mxu0 %v4167
          %4217 = vmatpush2.msra.mxu0 %v4166
          %4218 = vmatprep.subr.mxu0 %v4165
          %4219 = vmatpush2.msra.mxu0 %v4164
          %4220 = vmatprep.subr.mxu0 %v4163
          %4221 = vmatpush2.msra.mxu0 %v4162
          %4222 = vmatprep.subr.mxu0 %v4161
          %4223 = vmatpush2.msra.mxu0 %v4160
          %4224 = vmatprep.subr.mxu0 %v4159
          %4225 = vmatpush2.msra.mxu0 %v4158
          %4226 = vmatprep.subr.mxu0 %v4157
          %4227 = vmatpush2.msra.mxu0 %v4156
          %4228 = vmatprep.subr.mxu0 %v4155
          %4229 = vmatpush2.msra.mxu0 %v4154
          %4230 = vmatprep.subr.mxu0 %v4153
          %4231 = vmatpush2.msra.mxu0 %v4152
          %4232 = vmatprep.subr.mxu0 %v4151
          %4233 = vmatpush2.msra.mxu0 %v4150
          %4234 = vmatprep.subr.mxu0 %v4149
          %4235 = vmatpush2.msra.mxu0 %v4148
          %4236 = vmatprep.subr.mxu0 %v4147
          %4237 = vmatpush2.msra.mxu0 %v4146
          %4238 = vmatprep.subr.mxu0 %v4145
          %4239 = vmatpush2.msra.mxu0 %v4144
          %4240 = vmatprep.mubr.f32.mxu0 %v3360
          %4241 = vmatmul.mubr.f32.gmra.mxu0 %v989
          %v4242 = vpop.f32.mrf.mxu0
          %v4243 = vadd.f32 0.0, %v4242
          %v4244 = vpop.f32.mrf.mxu0
          %v4245 = vadd.f32 0.0, %v4244
          %4246 = vdwg.mxu0
          %v4247 = vadd.f32 %v3500, %v4243
          %v4248 = vadd.f32 %v3502, %v4245
          %vm4249 = vmand %vm3504, %vm2367
          %vm4250 = vmand %vm3505, %vm2368
          %vm4251 = vmand %vm3506, %vm2369
          %vm4252 = vmand %vm3507, %vm2370
          %vm4253 = vmand %vm3508, %vm2371
          %vm4254 = vmand %vm3509, %vm2372
          %vm4255 = vmand %vm3510, %vm2373
          %vm4256 = vmand %vm3511, %vm2374
          %vm4257 = vmand %vm3512, %vm2375
          %vm4258 = vmand %vm3513, %vm2376
          %vm4259 = vmand %vm3514, %vm2377
          %vm4260 = vmand %vm3515, %vm2378
          %vm4261 = vmand %vm3516, %vm2379
          %vm4262 = vmand %vm3517, %vm2380
          %vm4263 = vmand %vm3518, %vm2381
          %vm4264 = vmand %vm3519, %vm2382
          %vm4265 = vmand %vm3520, %vm2383
          %vm4266 = vmand %vm3521, %vm2384
          %vm4267 = vmand %vm3522, %vm2385
          %vm4268 = vmand %vm3523, %vm2386
          %vm4269 = vmand %vm3524, %vm2387
          %vm4270 = vmand %vm3525, %vm2388
          %vm4271 = vmand %vm3526, %vm2389
          %vm4272 = vmand %vm3527, %vm2390
          %vm4273 = vmand %vm3528, %vm2391
          %vm4274 = vmand %vm3529, %vm2392
          %vm4275 = vmand %vm3530, %vm2393
          %vm4276 = vmand %vm3531, %vm2394
          %vm4277 = vmand %vm3532, %vm2395
          %vm4278 = vmand %vm3533, %vm2396
          %vm4279 = vmand %vm3534, %vm2397
          %vm4280 = vmand %vm3535, %vm2398
          %vm4281 = vmand %vm4249, %vm2559
          %vm4282 = vmand %vm4250, %vm2560
          %vm4283 = vmand %vm4251, %vm2561
          %vm4284 = vmand %vm4252, %vm2562
          %vm4285 = vmand %vm4253, %vm2563
          %vm4286 = vmand %vm4254, %vm2564
          %vm4287 = vmand %vm4255, %vm2565
          %vm4288 = vmand %vm4256, %vm2566
          %vm4289 = vmand %vm4257, %vm2567
          %vm4290 = vmand %vm4258, %vm2568
          %vm4291 = vmand %vm4259, %vm2569
          %vm4292 = vmand %vm4260, %vm2570
          %vm4293 = vmand %vm4261, %vm2571
          %vm4294 = vmand %vm4262, %vm2572
          %vm4295 = vmand %vm4263, %vm2573
          %vm4296 = vmand %vm4264, %vm2574
          %vm4297 = vmand %vm4265, %vm2575
          %vm4298 = vmand %vm4266, %vm2576
          %vm4299 = vmand %vm4267, %vm2577
          %vm4300 = vmand %vm4268, %vm2578
          %vm4301 = vmand %vm4269, %vm2579
          %vm4302 = vmand %vm4270, %vm2580
          %vm4303 = vmand %vm4271, %vm2581
          %vm4304 = vmand %vm4272, %vm2582
          %vm4305 = vmand %vm4273, %vm2583
          %vm4306 = vmand %vm4274, %vm2584
          %vm4307 = vmand %vm4275, %vm2585
          %vm4308 = vmand %vm4276, %vm2586
          %vm4309 = vmand %vm4277, %vm2587
          %vm4310 = vmand %vm4278, %vm2588
          %vm4311 = vmand %vm4279, %vm2589
          %vm4312 = vmand %vm4280, %vm2590
          %vm4313 = vmand %vm4281, %vm893
          %vm4314 = vmand %vm4282, %vm894
          %vm4315 = vmand %vm4283, %vm895
          %vm4316 = vmand %vm4284, %vm896
          %vm4317 = vmand %vm4285, %vm897
          %vm4318 = vmand %vm4286, %vm898
          %vm4319 = vmand %vm4287, %vm899
          %vm4320 = vmand %vm4288, %vm900
          %vm4321 = vmand %vm4289, %vm901
          %vm4322 = vmand %vm4290, %vm902
          %vm4323 = vmand %vm4291, %vm903
          %vm4324 = vmand %vm4292, %vm904
          %vm4325 = vmand %vm4293, %vm905
          %vm4326 = vmand %vm4294, %vm906
          %vm4327 = vmand %vm4295, %vm907
          %vm4328 = vmand %vm4296, %vm908
          %vm4329 = vmand %vm4297, %vm909
          %vm4330 = vmand %vm4298, %vm910
          %vm4331 = vmand %vm4299, %vm911
          %vm4332 = vmand %vm4300, %vm912
          %vm4333 = vmand %vm4301, %vm913
          %vm4334 = vmand %vm4302, %vm914
          %vm4335 = vmand %vm4303, %vm915
          %vm4336 = vmand %vm4304, %vm916
          %vm4337 = vmand %vm4305, %vm917
          %vm4338 = vmand %vm4306, %vm918
          %vm4339 = vmand %vm4307, %vm919
          %vm4340 = vmand %vm4308, %vm920
          %vm4341 = vmand %vm4309, %vm921
          %vm4342 = vmand %vm4310, %vm922
          %vm4343 = vmand %vm4311, %vm923
          %vm4344 = vmand %vm4312, %vm924
          %v4345 = vmul.f32 %v381, %v2688
          %v4346 = vmul.f32 %v382, %v2690
          %v4347 = vmul.f32 %v383, %v2692
          %v4348 = vmul.f32 %v384, %v2694
          %v4349 = vmul.f32 %v385, %v2696
          %v4350 = vmul.f32 %v386, %v2698
          %v4351 = vmul.f32 %v387, %v2700
          %v4352 = vmul.f32 %v388, %v2702
          %v4353 = vmul.f32 %v389, %v2704
          %v4354 = vmul.f32 %v390, %v2706
          %v4355 = vmul.f32 %v391, %v2708
          %v4356 = vmul.f32 %v392, %v2710
          %v4357 = vmul.f32 %v393, %v2712
          %v4358 = vmul.f32 %v394, %v2714
          %v4359 = vmul.f32 %v395, %v2716
          %v4360 = vmul.f32 %v396, %v2718
          %v4361 = vmul.f32 %v397, %v2720
          %v4362 = vmul.f32 %v398, %v2722
          %v4363 = vmul.f32 %v399, %v2724
          %v4364 = vmul.f32 %v400, %v2726
          %v4365 = vmul.f32 %v401, %v2728
          %v4366 = vmul.f32 %v402, %v2730
          %v4367 = vmul.f32 %v403, %v2732
          %v4368 = vmul.f32 %v404, %v2734
          %v4369 = vmul.f32 %v405, %v2736
          %v4370 = vmul.f32 %v406, %v2738
          %v4371 = vmul.f32 %v407, %v2740
          %v4372 = vmul.f32 %v408, %v2742
          %v4373 = vmul.f32 %v409, %v2744
          %v4374 = vmul.f32 %v410, %v2746
          %v4375 = vmul.f32 %v411, %v2748
          %v4376 = vmul.f32 %v412, %v2750
          %v4377 = vsel %vm4313, %v4345, 0.0
          %v4378 = vsel %vm4314, %v4346, 0.0
          %v4379 = vsel %vm4315, %v4347, 0.0
          %v4380 = vsel %vm4316, %v4348, 0.0
          %v4381 = vsel %vm4317, %v4349, 0.0
          %v4382 = vsel %vm4318, %v4350, 0.0
          %v4383 = vsel %vm4319, %v4351, 0.0
          %v4384 = vsel %vm4320, %v4352, 0.0
          %v4385 = vsel %vm4321, %v4353, 0.0
          %v4386 = vsel %vm4322, %v4354, 0.0
          %v4387 = vsel %vm4323, %v4355, 0.0
          %v4388 = vsel %vm4324, %v4356, 0.0
          %v4389 = vsel %vm4325, %v4357, 0.0
          %v4390 = vsel %vm4326, %v4358, 0.0
          %v4391 = vsel %vm4327, %v4359, 0.0
          %v4392 = vsel %vm4328, %v4360, 0.0
          %v4393 = vsel %vm4329, %v4361, 0.0
          %v4394 = vsel %vm4330, %v4362, 0.0
          %v4395 = vsel %vm4331, %v4363, 0.0
          %v4396 = vsel %vm4332, %v4364, 0.0
          %v4397 = vsel %vm4333, %v4365, 0.0
          %v4398 = vsel %vm4334, %v4366, 0.0
          %v4399 = vsel %vm4335, %v4367, 0.0
          %v4400 = vsel %vm4336, %v4368, 0.0
          %v4401 = vsel %vm4337, %v4369, 0.0
          %v4402 = vsel %vm4338, %v4370, 0.0
          %v4403 = vsel %vm4339, %v4371, 0.0
          %v4404 = vsel %vm4340, %v4372, 0.0
          %v4405 = vsel %vm4341, %v4373, 0.0
          %v4406 = vsel %vm4342, %v4374, 0.0
          %v4407 = vsel %vm4343, %v4375, 0.0
          %v4408 = vsel %vm4344, %v4376, 0.0
          %v4409 = vadd.s32 %v3696, %v2848
          %v4410 = vadd.s32 %v3697, %v2850
          %v4411 = vadd.s32 %v3698, %v2852
          %v4412 = vadd.s32 %v3699, %v2854
          %v4413 = vadd.s32 %v3700, %v2856
          %v4414 = vadd.s32 %v3701, %v2858
          %v4415 = vadd.s32 %v3702, %v2860
          %v4416 = vadd.s32 %v3703, %v2862
          %v4417 = vadd.s32 %v3704, %v2864
          %v4418 = vadd.s32 %v3705, %v2866
          %v4419 = vadd.s32 %v3706, %v2868
          %v4420 = vadd.s32 %v3707, %v2870
          %v4421 = vadd.s32 %v3708, %v2872
          %v4422 = vadd.s32 %v3709, %v2874
          %v4423 = vadd.s32 %v3710, %v2876
          %v4424 = vadd.s32 %v3711, %v2878
          %v4425 = vadd.s32 %v3712, %v2880
          %v4426 = vadd.s32 %v3713, %v2882
          %v4427 = vadd.s32 %v3714, %v2884
          %v4428 = vadd.s32 %v3715, %v2886
          %v4429 = vadd.s32 %v3716, %v2888
          %v4430 = vadd.s32 %v3717, %v2890
          %v4431 = vadd.s32 %v3718, %v2892
          %v4432 = vadd.s32 %v3719, %v2894
          %v4433 = vadd.s32 %v3720, %v2896
          %v4434 = vadd.s32 %v3721, %v2898
          %v4435 = vadd.s32 %v3722, %v2900
          %v4436 = vadd.s32 %v3723, %v2902
          %v4437 = vadd.s32 %v3724, %v2904
          %v4438 = vadd.s32 %v3725, %v2906
          %v4439 = vadd.s32 %v3726, %v2908
          %v4440 = vadd.s32 %v3727, %v2910
          %v4441 = vsub.s32 %v4409, %v1790
          %v4442 = vsub.s32 %v4410, %v1790
          %v4443 = vsub.s32 %v4411, %v1790
          %v4444 = vsub.s32 %v4412, %v1790
          %v4445 = vsub.s32 %v4413, %v1790
          %v4446 = vsub.s32 %v4414, %v1790
          %v4447 = vsub.s32 %v4415, %v1790
          %v4448 = vsub.s32 %v4416, %v1790
          %v4449 = vsub.s32 %v4417, %v1790
          %v4450 = vsub.s32 %v4418, %v1790
          %v4451 = vsub.s32 %v4419, %v1790
          %v4452 = vsub.s32 %v4420, %v1790
          %v4453 = vsub.s32 %v4421, %v1790
          %v4454 = vsub.s32 %v4422, %v1790
          %v4455 = vsub.s32 %v4423, %v1790
          %v4456 = vsub.s32 %v4424, %v1790
          %v4457 = vsub.s32 %v4425, %v1790
          %v4458 = vsub.s32 %v4426, %v1790
          %v4459 = vsub.s32 %v4427, %v1790
          %v4460 = vsub.s32 %v4428, %v1790
          %v4461 = vsub.s32 %v4429, %v1790
          %v4462 = vsub.s32 %v4430, %v1790
          %v4463 = vsub.s32 %v4431, %v1790
          %v4464 = vsub.s32 %v4432, %v1790
          %v4465 = vsub.s32 %v4433, %v1790
          %v4466 = vsub.s32 %v4434, %v1790
          %v4467 = vsub.s32 %v4435, %v1790
          %v4468 = vsub.s32 %v4436, %v1790
          %v4469 = vsub.s32 %v4437, %v1790
          %v4470 = vsub.s32 %v4438, %v1790
          %v4471 = vsub.s32 %v4439, %v1790
          %v4472 = vsub.s32 %v4440, %v1790
          %4473 = vset.pattern.permute.xlu0 0
          %4474 = vperm.xlu0 %4473, %v4441
          %v4475 = vpop.permute.xlu0 %4474
          %4476 = vset.pattern.permute.xlu0 0
          %4477 = vperm.xlu0 %4476, %v4442
          %v4478 = vpop.permute.xlu0 %4477
          %4479 = vset.pattern.permute.xlu0 0
          %4480 = vperm.xlu0 %4479, %v4443
          %v4481 = vpop.permute.xlu0 %4480
          %4482 = vset.pattern.permute.xlu0 0
          %4483 = vperm.xlu0 %4482, %v4444
          %v4484 = vpop.permute.xlu0 %4483
          %4485 = vset.pattern.permute.xlu0 0
          %4486 = vperm.xlu0 %4485, %v4445
          %v4487 = vpop.permute.xlu0 %4486
          %4488 = vset.pattern.permute.xlu0 0
          %4489 = vperm.xlu0 %4488, %v4446
          %v4490 = vpop.permute.xlu0 %4489
          %4491 = vset.pattern.permute.xlu0 0
          %4492 = vperm.xlu0 %4491, %v4447
          %v4493 = vpop.permute.xlu0 %4492
          %4494 = vset.pattern.permute.xlu0 0
          %4495 = vperm.xlu0 %4494, %v4448
          %v4496 = vpop.permute.xlu0 %4495
          %4497 = vset.pattern.permute.xlu0 0
          %4498 = vperm.xlu0 %4497, %v4449
          %v4499 = vpop.permute.xlu0 %4498
          %4500 = vset.pattern.permute.xlu0 0
          %4501 = vperm.xlu0 %4500, %v4450
          %v4502 = vpop.permute.xlu0 %4501
          %4503 = vset.pattern.permute.xlu0 0
          %4504 = vperm.xlu0 %4503, %v4451
          %v4505 = vpop.permute.xlu0 %4504
          %4506 = vset.pattern.permute.xlu0 0
          %4507 = vperm.xlu0 %4506, %v4452
          %v4508 = vpop.permute.xlu0 %4507
          %4509 = vset.pattern.permute.xlu0 0
          %4510 = vperm.xlu0 %4509, %v4453
          %v4511 = vpop.permute.xlu0 %4510
          %4512 = vset.pattern.permute.xlu0 0
          %4513 = vperm.xlu0 %4512, %v4454
          %v4514 = vpop.permute.xlu0 %4513
          %4515 = vset.pattern.permute.xlu0 0
          %4516 = vperm.xlu0 %4515, %v4455
          %v4517 = vpop.permute.xlu0 %4516
          %4518 = vset.pattern.permute.xlu0 0
          %4519 = vperm.xlu0 %4518, %v4456
          %v4520 = vpop.permute.xlu0 %4519
          %4521 = vset.pattern.permute.xlu0 0
          %4522 = vperm.xlu0 %4521, %v4457
          %v4523 = vpop.permute.xlu0 %4522
          %4524 = vset.pattern.permute.xlu0 0
          %4525 = vperm.xlu0 %4524, %v4458
          %v4526 = vpop.permute.xlu0 %4525
          %4527 = vset.pattern.permute.xlu0 0
          %4528 = vperm.xlu0 %4527, %v4459
          %v4529 = vpop.permute.xlu0 %4528
          %4530 = vset.pattern.permute.xlu0 0
          %4531 = vperm.xlu0 %4530, %v4460
          %v4532 = vpop.permute.xlu0 %4531
          %4533 = vset.pattern.permute.xlu0 0
          %4534 = vperm.xlu0 %4533, %v4461
          %v4535 = vpop.permute.xlu0 %4534
          %4536 = vset.pattern.permute.xlu0 0
          %4537 = vperm.xlu0 %4536, %v4462
          %v4538 = vpop.permute.xlu0 %4537
          %4539 = vset.pattern.permute.xlu0 0
          %4540 = vperm.xlu0 %4539, %v4463
          %v4541 = vpop.permute.xlu0 %4540
          %4542 = vset.pattern.permute.xlu0 0
          %4543 = vperm.xlu0 %4542, %v4464
          %v4544 = vpop.permute.xlu0 %4543
          %4545 = vset.pattern.permute.xlu0 0
          %4546 = vperm.xlu0 %4545, %v4465
          %v4547 = vpop.permute.xlu0 %4546
          %4548 = vset.pattern.permute.xlu0 0
          %4549 = vperm.xlu0 %4548, %v4466
          %v4550 = vpop.permute.xlu0 %4549
          %4551 = vset.pattern.permute.xlu0 0
          %4552 = vperm.xlu0 %4551, %v4467
          %v4553 = vpop.permute.xlu0 %4552
          %4554 = vset.pattern.permute.xlu0 0
          %4555 = vperm.xlu0 %4554, %v4468
          %v4556 = vpop.permute.xlu0 %4555
          %4557 = vset.pattern.permute.xlu0 0
          %4558 = vperm.xlu0 %4557, %v4469
          %v4559 = vpop.permute.xlu0 %4558
          %4560 = vset.pattern.permute.xlu0 0
          %4561 = vperm.xlu0 %4560, %v4470
          %v4562 = vpop.permute.xlu0 %4561
          %4563 = vset.pattern.permute.xlu0 0
          %4564 = vperm.xlu0 %4563, %v4471
          %v4565 = vpop.permute.xlu0 %4564
          %4566 = vset.pattern.permute.xlu0 0
          %4567 = vperm.xlu0 %4566, %v4472
          %v4568 = vpop.permute.xlu0 %4567
          %vm4569 = vcmp.eq.s32.totalorder %v925, %v4475
          %vm4570 = vcmp.eq.s32.totalorder %v926, %v4475
          %vm4571 = vcmp.eq.s32.totalorder %v927, %v4478
          %vm4572 = vcmp.eq.s32.totalorder %v928, %v4478
          %vm4573 = vcmp.eq.s32.totalorder %v929, %v4481
          %vm4574 = vcmp.eq.s32.totalorder %v930, %v4481
          %vm4575 = vcmp.eq.s32.totalorder %v931, %v4484
          %vm4576 = vcmp.eq.s32.totalorder %v932, %v4484
          %vm4577 = vcmp.eq.s32.totalorder %v933, %v4487
          %vm4578 = vcmp.eq.s32.totalorder %v934, %v4487
          %vm4579 = vcmp.eq.s32.totalorder %v935, %v4490
          %vm4580 = vcmp.eq.s32.totalorder %v936, %v4490
          %vm4581 = vcmp.eq.s32.totalorder %v937, %v4493
          %vm4582 = vcmp.eq.s32.totalorder %v938, %v4493
          %vm4583 = vcmp.eq.s32.totalorder %v939, %v4496
          %vm4584 = vcmp.eq.s32.totalorder %v940, %v4496
          %vm4585 = vcmp.eq.s32.totalorder %v941, %v4499
          %vm4586 = vcmp.eq.s32.totalorder %v942, %v4499
          %vm4587 = vcmp.eq.s32.totalorder %v943, %v4502
          %vm4588 = vcmp.eq.s32.totalorder %v944, %v4502
          %vm4589 = vcmp.eq.s32.totalorder %v945, %v4505
          %vm4590 = vcmp.eq.s32.totalorder %v946, %v4505
          %vm4591 = vcmp.eq.s32.totalorder %v947, %v4508
          %vm4592 = vcmp.eq.s32.totalorder %v948, %v4508
          %vm4593 = vcmp.eq.s32.totalorder %v949, %v4511
          %vm4594 = vcmp.eq.s32.totalorder %v950, %v4511
          %vm4595 = vcmp.eq.s32.totalorder %v951, %v4514
          %vm4596 = vcmp.eq.s32.totalorder %v952, %v4514
          %vm4597 = vcmp.eq.s32.totalorder %v953, %v4517
          %vm4598 = vcmp.eq.s32.totalorder %v954, %v4517
          %vm4599 = vcmp.eq.s32.totalorder %v955, %v4520
          %vm4600 = vcmp.eq.s32.totalorder %v956, %v4520
          %vm4601 = vcmp.eq.s32.totalorder %v957, %v4523
          %vm4602 = vcmp.eq.s32.totalorder %v958, %v4523
          %vm4603 = vcmp.eq.s32.totalorder %v959, %v4526
          %vm4604 = vcmp.eq.s32.totalorder %v960, %v4526
          %vm4605 = vcmp.eq.s32.totalorder %v961, %v4529
          %vm4606 = vcmp.eq.s32.totalorder %v962, %v4529
          %vm4607 = vcmp.eq.s32.totalorder %v963, %v4532
          %vm4608 = vcmp.eq.s32.totalorder %v964, %v4532
          %vm4609 = vcmp.eq.s32.totalorder %v965, %v4535
          %vm4610 = vcmp.eq.s32.totalorder %v966, %v4535
          %vm4611 = vcmp.eq.s32.totalorder %v967, %v4538
          %vm4612 = vcmp.eq.s32.totalorder %v968, %v4538
          %vm4613 = vcmp.eq.s32.totalorder %v969, %v4541
          %vm4614 = vcmp.eq.s32.totalorder %v970, %v4541
          %vm4615 = vcmp.eq.s32.totalorder %v971, %v4544
          %vm4616 = vcmp.eq.s32.totalorder %v972, %v4544
          %vm4617 = vcmp.eq.s32.totalorder %v973, %v4547
          %vm4618 = vcmp.eq.s32.totalorder %v974, %v4547
          %vm4619 = vcmp.eq.s32.totalorder %v975, %v4550
          %vm4620 = vcmp.eq.s32.totalorder %v976, %v4550
          %vm4621 = vcmp.eq.s32.totalorder %v977, %v4553
          %vm4622 = vcmp.eq.s32.totalorder %v978, %v4553
          %vm4623 = vcmp.eq.s32.totalorder %v979, %v4556
          %vm4624 = vcmp.eq.s32.totalorder %v980, %v4556
          %vm4625 = vcmp.eq.s32.totalorder %v981, %v4559
          %vm4626 = vcmp.eq.s32.totalorder %v982, %v4559
          %vm4627 = vcmp.eq.s32.totalorder %v983, %v4562
          %vm4628 = vcmp.eq.s32.totalorder %v984, %v4562
          %vm4629 = vcmp.eq.s32.totalorder %v985, %v4565
          %vm4630 = vcmp.eq.s32.totalorder %v986, %v4565
          %vm4631 = vcmp.eq.s32.totalorder %v987, %v4568
          %vm4632 = vcmp.eq.s32.totalorder %v988, %v4568
          %4634 = vset.pattern.permute.xlu0 0
          %4635 = vperm.xlu0 %4634, %v4377
          %v4636 = vpop.permute.xlu0 %4635
          %4639 = vset.pattern.permute.xlu0 0
          %4640 = vperm.xlu0 %4639, %v4378
          %v4641 = vpop.permute.xlu0 %4640
          %4644 = vset.pattern.permute.xlu0 0
          %4645 = vperm.xlu0 %4644, %v4379
          %v4646 = vpop.permute.xlu0 %4645
          %4649 = vset.pattern.permute.xlu0 0
          %4650 = vperm.xlu0 %4649, %v4380
          %v4651 = vpop.permute.xlu0 %4650
          %4654 = vset.pattern.permute.xlu0 0
          %4655 = vperm.xlu0 %4654, %v4381
          %v4656 = vpop.permute.xlu0 %4655
          %4659 = vset.pattern.permute.xlu0 0
          %4660 = vperm.xlu0 %4659, %v4382
          %v4661 = vpop.permute.xlu0 %4660
          %4664 = vset.pattern.permute.xlu0 0
          %4665 = vperm.xlu0 %4664, %v4383
          %v4666 = vpop.permute.xlu0 %4665
          %4669 = vset.pattern.permute.xlu0 0
          %4670 = vperm.xlu0 %4669, %v4384
          %v4671 = vpop.permute.xlu0 %4670
          %4674 = vset.pattern.permute.xlu0 0
          %4675 = vperm.xlu0 %4674, %v4385
          %v4676 = vpop.permute.xlu0 %4675
          %4679 = vset.pattern.permute.xlu0 0
          %4680 = vperm.xlu0 %4679, %v4386
          %v4681 = vpop.permute.xlu0 %4680
          %4684 = vset.pattern.permute.xlu0 0
          %4685 = vperm.xlu0 %4684, %v4387
          %v4686 = vpop.permute.xlu0 %4685
          %4689 = vset.pattern.permute.xlu0 0
          %4690 = vperm.xlu0 %4689, %v4388
          %v4691 = vpop.permute.xlu0 %4690
          %4694 = vset.pattern.permute.xlu0 0
          %4695 = vperm.xlu0 %4694, %v4389
          %v4696 = vpop.permute.xlu0 %4695
          %4699 = vset.pattern.permute.xlu0 0
          %4700 = vperm.xlu0 %4699, %v4390
          %v4701 = vpop.permute.xlu0 %4700
          %4704 = vset.pattern.permute.xlu0 0
          %4705 = vperm.xlu0 %4704, %v4391
          %v4706 = vpop.permute.xlu0 %4705
          %4709 = vset.pattern.permute.xlu0 0
          %4710 = vperm.xlu0 %4709, %v4392
          %v4711 = vpop.permute.xlu0 %4710
          %4714 = vset.pattern.permute.xlu0 0
          %4715 = vperm.xlu0 %4714, %v4393
          %v4716 = vpop.permute.xlu0 %4715
          %4719 = vset.pattern.permute.xlu0 0
          %4720 = vperm.xlu0 %4719, %v4394
          %v4721 = vpop.permute.xlu0 %4720
          %4724 = vset.pattern.permute.xlu0 0
          %4725 = vperm.xlu0 %4724, %v4395
          %v4726 = vpop.permute.xlu0 %4725
          %4729 = vset.pattern.permute.xlu0 0
          %4730 = vperm.xlu0 %4729, %v4396
          %v4731 = vpop.permute.xlu0 %4730
          %4734 = vset.pattern.permute.xlu0 0
          %4735 = vperm.xlu0 %4734, %v4397
          %v4736 = vpop.permute.xlu0 %4735
          %4739 = vset.pattern.permute.xlu0 0
          %4740 = vperm.xlu0 %4739, %v4398
          %v4741 = vpop.permute.xlu0 %4740
          %4744 = vset.pattern.permute.xlu0 0
          %4745 = vperm.xlu0 %4744, %v4399
          %v4746 = vpop.permute.xlu0 %4745
          %4749 = vset.pattern.permute.xlu0 0
          %4750 = vperm.xlu0 %4749, %v4400
          %v4751 = vpop.permute.xlu0 %4750
          %4754 = vset.pattern.permute.xlu0 0
          %4755 = vperm.xlu0 %4754, %v4401
          %v4756 = vpop.permute.xlu0 %4755
          %4759 = vset.pattern.permute.xlu0 0
          %4760 = vperm.xlu0 %4759, %v4402
          %v4761 = vpop.permute.xlu0 %4760
          %4764 = vset.pattern.permute.xlu0 0
          %4765 = vperm.xlu0 %4764, %v4403
          %v4766 = vpop.permute.xlu0 %4765
          %4769 = vset.pattern.permute.xlu0 0
          %4770 = vperm.xlu0 %4769, %v4404
          %v4771 = vpop.permute.xlu0 %4770
          %4774 = vset.pattern.permute.xlu0 0
          %4775 = vperm.xlu0 %4774, %v4405
          %v4776 = vpop.permute.xlu0 %4775
          %4779 = vset.pattern.permute.xlu0 0
          %4780 = vperm.xlu0 %4779, %v4406
          %v4781 = vpop.permute.xlu0 %4780
          %4784 = vset.pattern.permute.xlu0 0
          %4785 = vperm.xlu0 %4784, %v4407
          %v4786 = vpop.permute.xlu0 %4785
          %4789 = vset.pattern.permute.xlu0 0
          %4790 = vperm.xlu0 %4789, %v4408
          %v4791 = vpop.permute.xlu0 %4790
          %v4793 = vsel %vm4569, %v4636, 0.0
          %v4794 = vsel %vm4570, %v4636, 0.0
          %v4795 = vsel %vm4571, %v4641, 0.0
          %v4796 = vsel %vm4572, %v4641, 0.0
          %v4797 = vsel %vm4573, %v4646, 0.0
          %v4798 = vsel %vm4574, %v4646, 0.0
          %v4799 = vsel %vm4575, %v4651, 0.0
          %v4800 = vsel %vm4576, %v4651, 0.0
          %v4801 = vsel %vm4577, %v4656, 0.0
          %v4802 = vsel %vm4578, %v4656, 0.0
          %v4803 = vsel %vm4579, %v4661, 0.0
          %v4804 = vsel %vm4580, %v4661, 0.0
          %v4805 = vsel %vm4581, %v4666, 0.0
          %v4806 = vsel %vm4582, %v4666, 0.0
          %v4807 = vsel %vm4583, %v4671, 0.0
          %v4808 = vsel %vm4584, %v4671, 0.0
          %v4809 = vsel %vm4585, %v4676, 0.0
          %v4810 = vsel %vm4586, %v4676, 0.0
          %v4811 = vsel %vm4587, %v4681, 0.0
          %v4812 = vsel %vm4588, %v4681, 0.0
          %v4813 = vsel %vm4589, %v4686, 0.0
          %v4814 = vsel %vm4590, %v4686, 0.0
          %v4815 = vsel %vm4591, %v4691, 0.0
          %v4816 = vsel %vm4592, %v4691, 0.0
          %v4817 = vsel %vm4593, %v4696, 0.0
          %v4818 = vsel %vm4594, %v4696, 0.0
          %v4819 = vsel %vm4595, %v4701, 0.0
          %v4820 = vsel %vm4596, %v4701, 0.0
          %v4821 = vsel %vm4597, %v4706, 0.0
          %v4822 = vsel %vm4598, %v4706, 0.0
          %v4823 = vsel %vm4599, %v4711, 0.0
          %v4824 = vsel %vm4600, %v4711, 0.0
          %v4825 = vsel %vm4601, %v4716, 0.0
          %v4826 = vsel %vm4602, %v4716, 0.0
          %v4827 = vsel %vm4603, %v4721, 0.0
          %v4828 = vsel %vm4604, %v4721, 0.0
          %v4829 = vsel %vm4605, %v4726, 0.0
          %v4830 = vsel %vm4606, %v4726, 0.0
          %v4831 = vsel %vm4607, %v4731, 0.0
          %v4832 = vsel %vm4608, %v4731, 0.0
          %v4833 = vsel %vm4609, %v4736, 0.0
          %v4834 = vsel %vm4610, %v4736, 0.0
          %v4835 = vsel %vm4611, %v4741, 0.0
          %v4836 = vsel %vm4612, %v4741, 0.0
          %v4837 = vsel %vm4613, %v4746, 0.0
          %v4838 = vsel %vm4614, %v4746, 0.0
          %v4839 = vsel %vm4615, %v4751, 0.0
          %v4840 = vsel %vm4616, %v4751, 0.0
          %v4841 = vsel %vm4617, %v4756, 0.0
          %v4842 = vsel %vm4618, %v4756, 0.0
          %v4843 = vsel %vm4619, %v4761, 0.0
          %v4844 = vsel %vm4620, %v4761, 0.0
          %v4845 = vsel %vm4621, %v4766, 0.0
          %v4846 = vsel %vm4622, %v4766, 0.0
          %v4847 = vsel %vm4623, %v4771, 0.0
          %v4848 = vsel %vm4624, %v4771, 0.0
          %v4849 = vsel %vm4625, %v4776, 0.0
          %v4850 = vsel %vm4626, %v4776, 0.0
          %v4851 = vsel %vm4627, %v4781, 0.0
          %v4852 = vsel %vm4628, %v4781, 0.0
          %v4853 = vsel %vm4629, %v4786, 0.0
          %v4854 = vsel %vm4630, %v4786, 0.0
          %v4855 = vsel %vm4631, %v4791, 0.0
          %v4856 = vsel %vm4632, %v4791, 0.0
          %4857 = vmatprep.subr.mxu0 %v4824
          %4858 = vmatpush1.msra.mxu0 %v4823
          %4859 = vmatprep.subr.mxu0 %v4822
          %4860 = vmatpush1.msra.mxu0 %v4821
          %4861 = vmatprep.subr.mxu0 %v4820
          %4862 = vmatpush1.msra.mxu0 %v4819
          %4863 = vmatprep.subr.mxu0 %v4818
          %4864 = vmatpush1.msra.mxu0 %v4817
          %4865 = vmatprep.subr.mxu0 %v4816
          %4866 = vmatpush1.msra.mxu0 %v4815
          %4867 = vmatprep.subr.mxu0 %v4814
          %4868 = vmatpush1.msra.mxu0 %v4813
          %4869 = vmatprep.subr.mxu0 %v4812
          %4870 = vmatpush1.msra.mxu0 %v4811
          %4871 = vmatprep.subr.mxu0 %v4810
          %4872 = vmatpush1.msra.mxu0 %v4809
          %4873 = vmatprep.subr.mxu0 %v4808
          %4874 = vmatpush1.msra.mxu0 %v4807
          %4875 = vmatprep.subr.mxu0 %v4806
          %4876 = vmatpush1.msra.mxu0 %v4805
          %4877 = vmatprep.subr.mxu0 %v4804
          %4878 = vmatpush1.msra.mxu0 %v4803
          %4879 = vmatprep.subr.mxu0 %v4802
          %4880 = vmatpush1.msra.mxu0 %v4801
          %4881 = vmatprep.subr.mxu0 %v4800
          %4882 = vmatpush1.msra.mxu0 %v4799
          %4883 = vmatprep.subr.mxu0 %v4798
          %4884 = vmatpush1.msra.mxu0 %v4797
          %4885 = vmatprep.subr.mxu0 %v4796
          %4886 = vmatpush1.msra.mxu0 %v4795
          %4887 = vmatprep.subr.mxu0 %v4794
          %4888 = vmatpush1.msra.mxu0 %v4793
          %4889 = vmatprep.subr.mxu0 %v4856
          %4890 = vmatpush2.msra.mxu0 %v4855
          %4891 = vmatprep.subr.mxu0 %v4854
          %4892 = vmatpush2.msra.mxu0 %v4853
          %4893 = vmatprep.subr.mxu0 %v4852
          %4894 = vmatpush2.msra.mxu0 %v4851
          %4895 = vmatprep.subr.mxu0 %v4850
          %4896 = vmatpush2.msra.mxu0 %v4849
          %4897 = vmatprep.subr.mxu0 %v4848
          %4898 = vmatpush2.msra.mxu0 %v4847
          %4899 = vmatprep.subr.mxu0 %v4846
          %4900 = vmatpush2.msra.mxu0 %v4845
          %4901 = vmatprep.subr.mxu0 %v4844
          %4902 = vmatpush2.msra.mxu0 %v4843
          %4903 = vmatprep.subr.mxu0 %v4842
          %4904 = vmatpush2.msra.mxu0 %v4841
          %4905 = vmatprep.subr.mxu0 %v4840
          %4906 = vmatpush2.msra.mxu0 %v4839
          %4907 = vmatprep.subr.mxu0 %v4838
          %4908 = vmatpush2.msra.mxu0 %v4837
          %4909 = vmatprep.subr.mxu0 %v4836
          %4910 = vmatpush2.msra.mxu0 %v4835
          %4911 = vmatprep.subr.mxu0 %v4834
          %4912 = vmatpush2.msra.mxu0 %v4833
          %4913 = vmatprep.subr.mxu0 %v4832
          %4914 = vmatpush2.msra.mxu0 %v4831
          %4915 = vmatprep.subr.mxu0 %v4830
          %4916 = vmatpush2.msra.mxu0 %v4829
          %4917 = vmatprep.subr.mxu0 %v4828
          %4918 = vmatpush2.msra.mxu0 %v4827
          %4919 = vmatprep.subr.mxu0 %v4826
          %4920 = vmatpush2.msra.mxu0 %v4825
          %4921 = vmatprep.mubr.f32.mxu0 %v3360
          %4922 = vmatmul.mubr.f32.gmra.mxu0 %v989
          %v4923 = vpop.f32.mrf.mxu0
          %v4924 = vadd.f32 0.0, %v4923
          %v4925 = vpop.f32.mrf.mxu0
          %v4926 = vadd.f32 0.0, %v4925
          %4927 = vdwg.mxu0
          %v4928 = vadd.f32 %v4247, %v4924
          %v4929 = vadd.f32 %v4248, %v4926
          %v4930 = vld [vmem:[%s206] sm:$0xff]
          %v4933 = vcombine.low %v4928, %v4929
          %v4935 = vadd.f32 %v4930, %v4933
          %4936 = vst [vmem:[%s206] sm:$0xff] %v4935
        $region36: #{tpu_custom_call.1} parent=27 // pred_fallthru
          _
        %s4937 = sand.u32 %s113, 1
        %s4938 = scalar_lea.sflag [#allocation7], %s4937
        %s4939 = sand.u32 %s113, 1
        %s4940 = smul.addr %s4939, 8
        %s4941 = scalar_lea.vmem [#allocation6], %s4940
        // Predicated region
        $region37: #{tpu_custom_call.1} parent=27 // pred_check
          %p4942 = pneg %p123
        $region38: #{tpu_custom_call.1} parent=27 // pred_check_branch
          %4944 = sbr.rel (%p4942) target = $region40
        $region39: #{tpu_custom_call.1} parent=27 // pred_region
          %s4945 = smul.u32 2, %s34
          %s4947 = ssub.s32 128, 128
          %4948 = vsyncadd %s4938, %s4947
          %s4949 = smul.addr %s33, 2
          %s4950 = sadd.s32 %s4945, %s4949
          %s4951 = smul.addr %s4950, 64
          %s4952 = scalar_lea.hbm %s4, %s4951
          %s4954 = sshll.u32 %s4941, 4
          %s4955 = int_to_ptr.vmem [resolvable:$true] %s4954
          %4957 = dma.vmem_to_hbm [thread:$0]  %s4955, 128, %s4952, %s4938
        $region40: #{tpu_custom_call.1} parent=27 // pred_fallthru
          _
      $region28: #{tpu_custom_call.1} parent=5 // pred_fallthru
        _
      %p4958 = scmp.le.s32.totalorder 2, %s23
      // Predicated region
      $region41: #{tpu_custom_call.1} parent=5 // pred_check
        %p4959 = pneg %p4958
      $region42: #{tpu_custom_call.1} parent=5 // pred_check_branch
        %4961 = sbr.rel (%p4959) target = $region44
      $region43: #{tpu_custom_call.1} parent=5 // pred_region
        %s4962 = ssub.s32 %s23, 2
        // Predicated region
        $region45: #{tpu_custom_call.1} parent=43 // pred_check
          %p4963 = pneg %p129
        $region46: #{tpu_custom_call.1} parent=43 // pred_check_branch
          %4965 = sbr.rel (%p4963) target = $region48
        $region47: #{tpu_custom_call.1} parent=43 // pred_region
          %s4966 = sand.u32 %s114, 1
          %s4967 = scalar_lea.sflag [#allocation7], %s4966
          %s4968 = sand.u32 %s114, 1
          %s4969 = smul.addr %s4968, 8
          %s4970 = scalar_lea.vmem [#allocation6], %s4969
          %4971 = dma.done %s4967, 128
        $region48: #{tpu_custom_call.1} parent=43 // pred_fallthru
          _
      $region44: #{tpu_custom_call.1} parent=5 // pred_fallthru
        _
    $region6: #{tpu_custom_call.1} parent=1 // loop_footer
      %s27 = sadd.s32 1, %s23
    $region7: #{tpu_custom_call.1} parent=1 // loop_footer_branch
      %22 = sbr.rel target = $region3
    $region8: #{tpu_custom_call.1} parent=1 // loop_exit
      _
    %4972 = vsyncpa [#allocation7], 1
    %s4973 = scalar_lea.sflag [#allocation7], 1
    %4974 = vsyncpa %s4973, 1

</llo_original>
